<compile_context>
chip_gen: v7x
topology: tpu7x:2x2x1
jax: 0.10.0
libtpu: 0.0.40
codegen_flags: <defaults>
</compile_context>

<pallas_src>
import functools

import jax
import jax.numpy as jnp
from jax.experimental import pallas as pl
from jax.experimental.pallas import tpu as pltpu


# ---------------------------------------------------------------------------
# In-kernel helpers
# ---------------------------------------------------------------------------
def _layernorm(x, w, b, eps=1e-5):
    m = jnp.mean(x, axis=-1, keepdims=True)
    v = jnp.mean((x - m) ** 2, axis=-1, keepdims=True)
    return (x - m) * jax.lax.rsqrt(v + eps) * w + b


# ---------------------------------------------------------------------------
# Kernel 1: fused dual-encoder.
#   grid = (encoder e in {det, meta}, batch b, layer l)
#   The output block (same index for every l) carries the activation between
#   layers; layer weights are streamed per grid step from (2, L, ...) stacks.
# ---------------------------------------------------------------------------
def _encoder_kernel(bias_ref, src_ref, pos_ref,
                    wqk_ref, bqk_ref, wv_ref, bv_ref,
                    wo_ref, bo_ref,
                    w1_ref, b1_ref, w2_ref, b2_ref,
                    ln1w_ref, ln1b_ref, ln2w_ref, ln2b_ref,
                    o_ref, *, nhead):
    l = pl.program_id(2)

    @pl.when(l == 0)
    def _():
        o_ref[0, 0] = src_ref[0, 0]          # seed the resident activation

    x = o_ref[0, 0]                          # (S, D) activation after layer l-1
    pos = pos_ref[0, 0]                      # (S, D)
    bias = bias_ref[...]                     # (1, 1, S) additive key-padding bias

    S, D = x.shape
    H = nhead
    dh = D // H

    # --- self attention (q = k = x + pos, value = x) -----------------------
    # merged Q/K projection: one (S,D)x(D,2D) matmul; separate V projection.
    qk_in = x + pos
    qk = jnp.dot(qk_in, wqk_ref[0, 0], preferred_element_type=jnp.float32) + bqk_ref[0, 0]
    v = jnp.dot(x, wv_ref[0, 0], preferred_element_type=jnp.float32) + bv_ref[0, 0]

    q = qk[:, :D].reshape(S, H, dh).transpose(1, 0, 2)       # (H, S, dh)
    k = qk[:, D:].reshape(S, H, dh).transpose(1, 0, 2)       # (H, S, dh)
    vh = v.reshape(S, H, dh).transpose(1, 0, 2)              # (H, S, dh)

    scale = 1.0 / (dh ** 0.5)
    s = jnp.einsum('bqd,bkd->bqk', q, k,
                   preferred_element_type=jnp.float32) * scale + bias     # (H,S,S)
    s = s - jnp.max(s, axis=-1, keepdims=True)
    p = jnp.exp(s)
    p = p * pl.reciprocal(jnp.sum(p, axis=-1, keepdims=True))
    attn = jnp.einsum('bqk,bkd->bqd', p, vh,
                      preferred_element_type=jnp.float32)                 # (H,S,dh)
    attn = attn.transpose(1, 0, 2).reshape(S, D)
    attn = jnp.dot(attn, wo_ref[0, 0], preferred_element_type=jnp.float32) + bo_ref[0, 0]

    # residual + norm1 (dropout1 = identity)
    x = _layernorm(x + attn, ln1w_ref[0, 0], ln1b_ref[0, 0])

    # FFN: relu(x W1 + b1) W2 + b2, residual + norm2
    h1 = jnp.maximum(
        jnp.dot(x, w1_ref[0, 0], preferred_element_type=jnp.float32) + b1_ref[0, 0], 0.0)
    h2 = jnp.dot(h1, w2_ref[0, 0], preferred_element_type=jnp.float32) + b2_ref[0, 0]
    o_ref[0, 0] = _layernorm(x + h2, ln2w_ref[0, 0], ln2b_ref[0, 0])


# ---------------------------------------------------------------------------
# Kernel 2: fused dual IntertwinedBranch.
#   grid = (branch e,), src1 = mem[e], src2 = mem[1-e] (picked in index_map).
#   relu(cat(src1 W1 + b1, src2 W2 + b2)) + src1 -> LayerNorm
#   (IntertwinedBranch.linear2 is defined in __init__ but never used.)
# ---------------------------------------------------------------------------
def _branch_kernel(s1_ref, s2_ref, w1_ref, b1_ref, w2_ref, b2_ref,
                   lnw_ref, lnb_ref, o_ref):
    _, B, S, D = s1_ref.shape
    s1 = s1_ref[0].reshape(B * S, D)
    s2 = s2_ref[0].reshape(B * S, D)
    x1 = jnp.dot(s1, w1_ref[0], preferred_element_type=jnp.float32) + b1_ref[0]
    x2 = jnp.dot(s2, w2_ref[0], preferred_element_type=jnp.float32) + b2_ref[0]
    x = jnp.maximum(jnp.concatenate([x1, x2], axis=-1), 0.0)
    y = _layernorm(x + s1, lnw_ref[0], lnb_ref[0])
    o_ref[0] = y.reshape(B, S, D)


# ---------------------------------------------------------------------------
# Wrappers
# ---------------------------------------------------------------------------
_ENC_KEYS = ('wqk', 'bqk', 'wv', 'bv', 'wo', 'bo', 'w1', 'b1', 'w2', 'b2',
             'ln1w', 'ln1b', 'ln2w', 'ln2b')
_BR_KEYS = ('w1', 'b1', 'w2', 'b2', 'lnw', 'lnb')


def dual_kinematic_encoder(packed, src_boxes, src_metadata, mask,
                           pos_boxes, pos_metadata, *, nhead):
    """src_*: (B, S, D) batch-first; mask: (B, S) bool (True = padded key)."""
    B, S, D = src_boxes.shape
    enc = packed['encoders']
    br = packed['branches']
    L = enc['wqk'].shape[1]
    dff = enc['w1'].shape[-1]

    # Stack det/meta streams and precompute the additive mask bias once.
    src = jnp.stack([src_boxes, src_metadata], axis=0)          # (2, B, S, D)
    pos = jnp.stack([pos_boxes, pos_metadata], axis=0)          # (2, B, S, D)
    bias = (mask.astype(jnp.float32) * (-1e9))[:, None, :]      # (B, 1, S)

    seq_spec = pl.BlockSpec((1, 1, S, D), lambda e, b, l: (e, b, 0, 0))
    bias_spec = pl.BlockSpec((1, 1, S), lambda e, b, l: (b, 0, 0))

    def wspec(name):
        shp = enc[name].shape
        nz = len(shp) - 2
        return pl.BlockSpec((1, 1) + shp[2:],
                            lambda e, b, l, _nz=nz: (e, l) + (0,) * _nz)

    # Size the scoped VMEM limit from the per-layer (double-buffered) weight
    # footprint plus activation working set, so real d_model/dff configs fit.
    per_layer_w_bytes = sum(int(enc[k].size) for k in _ENC_KEYS) * 4 // (2 * L)
    act_bytes = 4 * (S * (8 * D + 2 * dff) + 2 * nhead * S * S)
    vmem_limit = int(min(112 * 2**20,
                         max(32 * 2**20, 2 * per_layer_w_bytes + 2 * act_bytes + (4 << 20))))

    mem = pl.pallas_call(
        functools.partial(_encoder_kernel, nhead=nhead),
        out_shape=jax.ShapeDtypeStruct((2, B, S, D), src.dtype),
        grid=(2, B, L),
        in_specs=[bias_spec, seq_spec, seq_spec] + [wspec(k) for k in _ENC_KEYS],
        out_specs=seq_spec,
        compiler_params=pltpu.CompilerParams(
            dimension_semantics=("parallel", "parallel", "arbitrary"),
            vmem_limit_bytes=vmem_limit),
    )(bias, src, pos, *[enc[k] for k in _ENC_KEYS])              # (2, B, S, D)

    full_spec = pl.BlockSpec((1, B, S, D), lambda e: (e, 0, 0, 0))
    cross_spec = pl.BlockSpec((1, B, S, D), lambda e: (1 - e, 0, 0, 0))

    def bspec(name):
        shp = br[name].shape
        nz = len(shp) - 1
        return pl.BlockSpec((1,) + shp[1:], lambda e, _nz=nz: (e,) + (0,) * _nz)

    hs = pl.pallas_call(
        _branch_kernel,
        out_shape=jax.ShapeDtypeStruct((2, B, S, D), src.dtype),
        grid=(2,),
        in_specs=[full_spec, cross_spec] + [bspec(k) for k in _BR_KEYS],
        out_specs=full_spec,
        compiler_params=pltpu.CompilerParams(dimension_semantics=("parallel",)),
    )(mem, mem, *[br[k] for k in _BR_KEYS])                      # (2, B, S, D)

    mem_det, mem_meta = mem[0], mem[1]
    hs_det, hs_meta = hs[0], hs[1]

    # Match PyTorch return layouts exactly.
    return (hs_det[None],                                        # (1, B, S, D)
            hs_meta[None],                                       # (1, B, S, D)
            jnp.transpose(mem_meta, (0, 2, 1)),                  # (B, D, S)
            jnp.transpose(mem_det, (0, 2, 1)))                   # (B, D, S)


# ---------------------------------------------------------------------------
# Pure-JAX reference (same packed params) for correctness validation.
# ---------------------------------------------------------------------------
def _ref_forward(packed, src_boxes, src_metadata, mask, pos_boxes, pos_metadata, *, nhead):
    enc, br = packed['encoders'], packed['branches']
    P = jax.lax.Precision.HIGHEST
    bias = (mask.astype(jnp.float32) * (-1e9))[:, None, None, :]   # (B,1,1,S)

    def ln(x, w, b, eps=1e-5):
        m = jnp.mean(x, -1, keepdims=True)
        v = jnp.mean((x - m) ** 2, -1, keepdims=True)
        return (x - m) * jax.lax.rsqrt(v + eps) * w + b

    def encoder(e, x, pos):
        B, S, D = x.shape
        H, dh = nhead, x.shape[-1] // nhead
        for l in range(enc['wqk'].shape[1]):
            qk = jnp.dot(x + pos, enc['wqk'][e, l], precision=P) + enc['bqk'][e, l]
            v = jnp.dot(x, enc['wv'][e, l], precision=P) + enc['bv'][e, l]
            q = qk[..., :D].reshape(B, S, H, dh).transpose(0, 2, 1, 3)
            k = qk[..., D:].reshape(B, S, H, dh).transpose(0, 2, 1, 3)
            vh = v.reshape(B, S, H, dh).transpose(0, 2, 1, 3)
            s = jnp.einsum('bhqd,bhkd->bhqk', q, k, precision=P) / (dh ** 0.5) + bias
            p = jax.nn.softmax(s, axis=-1)
            a = jnp.einsum('bhqk,bhkd->bhqd', p, vh, precision=P)
            a = a.transpose(0, 2, 1, 3).reshape(B, S, D)
            a = jnp.dot(a, enc['wo'][e, l], precision=P) + enc['bo'][e, l]
            x = ln(x + a, enc['ln1w'][e, l], enc['ln1b'][e, l])
            h = jnp.maximum(jnp.dot(x, enc['w1'][e, l], precision=P) + enc['b1'][e, l], 0.0)
            h = jnp.dot(h, enc['w2'][e, l], precision=P) + enc['b2'][e, l]
            x = ln(x + h, enc['ln2w'][e, l], enc['ln2b'][e, l])
        return x

    def branch(e, s1, s2):
        x1 = jnp.dot(s1, br['w1'][e], precision=P) + br['b1'][e]
        x2 = jnp.dot(s2, br['w2'][e], precision=P) + br['b2'][e]
        x = jnp.maximum(jnp.concatenate([x1, x2], axis=-1), 0.0)
        return ln(x + s1, br['lnw'][e], br['lnb'][e])

    mem_det = encoder(0, src_boxes, pos_boxes)
    mem_meta = encoder(1, src_metadata, pos_metadata)
    hs_det = branch(0, mem_det, mem_meta)
    hs_meta = branch(1, mem_meta, mem_det)
    return (hs_det[None], hs_meta[None],
            jnp.transpose(mem_meta, (0, 2, 1)), jnp.transpose(mem_det, (0, 2, 1)))


# ---------------------------------------------------------------------------
# Parameters: PyTorch-layout init, then one-time packing (stacked over
# {det,meta} x layers, pre-transposed, Q/K merged) for the fused kernels.
# ---------------------------------------------------------------------------
def init_params(key, d_model, num_layers, dff):
    def nrm(k, shape, scale=0.05):
        return scale * jax.random.normal(k, shape, jnp.float32)

    params = {}
    for enc in ('enc_det', 'enc_meta'):
        layers = []
        for _ in range(num_layers):
            key, *ks = jax.random.split(key, 9)
            layers.append({
                'in_w': nrm(ks[0], (3 * d_model, d_model)),     # MHA packed in_proj
                'in_b': nrm(ks[1], (1, 3 * d_model)),
                'out_w': nrm(ks[2], (d_model, d_model)),        # MHA out_proj
                'out_b': nrm(ks[3], (1, d_model)),
                'l1_w': nrm(ks[4], (dff, d_model)),             # linear1
                'l1_b': nrm(ks[5], (1, dff)),
                'l2_w': nrm(ks[6], (d_model, dff)),             # linear2
                'l2_b': nrm(ks[7], (1, d_model)),
                'ln1_w': jnp.ones((1, d_model), jnp.float32),
                'ln1_b': jnp.zeros((1, d_model), jnp.float32),
                'ln2_w': jnp.ones((1, d_model), jnp.float32),
                'ln2_b': jnp.zeros((1, d_model), jnp.float32),
            })
        params[enc] = layers

    for brn in ('det_branch', 'meta_branch'):
        key, *ks = jax.random.split(key, 5)
        params[brn] = {
            'w1': nrm(ks[0], (d_model // 2, d_model)),          # linear_input1
            'b1': nrm(ks[1], (1, d_model // 2)),
            'w2': nrm(ks[2], (d_model // 2, d_model)),          # linear_input2
            'b2': nrm(ks[3], (1, d_model // 2)),
            'ln_w': jnp.ones((1, d_model), jnp.float32),
            'ln_b': jnp.zeros((1, d_model), jnp.float32),
        }
    # TODO(synk): IntertwinedBranch.linear2 is never used in the PyTorch forward, so it is omitted.
    return params


def pack_params(params, d_model):
    """Pre-transpose / pre-split weights once so the kernels do x @ W only."""
    D = d_model

    def stk(fn):
        return jnp.stack([jnp.stack([fn(lp) for lp in params[name]], axis=0)
                          for name in ('enc_det', 'enc_meta')], axis=0)

    enc = {
        'wqk': stk(lambda lp: lp['in_w'][:2 * D, :].T),   # (D, 2D) merged Q|K
        'bqk': stk(lambda lp: lp['in_b'][:, :2 * D]),     # (1, 2D)
        'wv':  stk(lambda lp: lp['in_w'][2 * D:, :].T),   # (D, D)
        'bv':  stk(lambda lp: lp['in_b'][:, 2 * D:]),     # (1, D)
        'wo':  stk(lambda lp: lp['out_w'].T),             # (D, D)
        'bo':  stk(lambda lp: lp['out_b']),               # (1, D)
        'w1':  stk(lambda lp: lp['l1_w'].T),              # (D, DFF)
        'b1':  stk(lambda lp: lp['l1_b']),                # (1, DFF)
        'w2':  stk(lambda lp: lp['l2_w'].T),              # (DFF, D)
        'b2':  stk(lambda lp: lp['l2_b']),                # (1, D)
        'ln1w': stk(lambda lp: lp['ln1_w']),
        'ln1b': stk(lambda lp: lp['ln1_b']),
        'ln2w': stk(lambda lp: lp['ln2_w']),
        'ln2b': stk(lambda lp: lp['ln2_b']),
    }

    def bstk(fn):
        return jnp.stack([fn(params['det_branch']), fn(params['meta_branch'])], axis=0)

    br = {
        'w1': bstk(lambda bp: bp['w1'].T),                # (D, D/2)
        'b1': bstk(lambda bp: bp['b1']),                  # (1, D/2)
        'w2': bstk(lambda bp: bp['w2'].T),                # (D, D/2)
        'b2': bstk(lambda bp: bp['b2']),                  # (1, D/2)
        'lnw': bstk(lambda bp: bp['ln_w']),               # (1, D)
        'lnb': bstk(lambda bp: bp['ln_b']),               # (1, D)
    }
    return {'encoders': enc, 'branches': br}


if __name__ == "__main__":
    B, S, D, H, L, DFF = 2, 8, 32, 4, 2, 64   # small shapes; D % H == 0

    key = jax.random.PRNGKey(0)
    kx, km, kp1, kp2, kw = jax.random.split(key, 5)
    src_boxes = jax.random.normal(kx, (B, S, D), jnp.float32)
    src_metadata = jax.random.normal(km, (B, S, D), jnp.float32)
    pos_boxes = 0.1 * jax.random.normal(kp1, (B, S, D), jnp.float32)
    pos_metadata = 0.1 * jax.random.normal(kp2, (B, S, D), jnp.float32)
    mask = jnp.zeros((B, S), jnp.bool_).at[1, 6:].set(True)   # pad last 2 keys of batch 1

    params = init_params(kw, D, L, DFF)
    packed = pack_params(params, D)

    outs = dual_kinematic_encoder(packed, src_boxes, src_metadata, mask,
                                  pos_boxes, pos_metadata, nhead=H)
    outs = jax.block_until_ready(outs)

    assert outs[0].shape == (1, B, S, D)
    assert outs[1].shape == (1, B, S, D)
    assert outs[2].shape == (B, D, S)
    assert outs[3].shape == (B, D, S)
    assert all(bool(jnp.all(jnp.isfinite(o))) for o in outs)

    # Validate against a pure-JAX reference of the same math.
    ref = _ref_forward(packed, src_boxes, src_metadata, mask,
                       pos_boxes, pos_metadata, nhead=H)
    ref = jax.block_until_ready(ref)
    for got, want in zip(outs, ref):
        assert got.shape == want.shape
        assert bool(jnp.allclose(got, want, atol=2e-2, rtol=2e-2))

    print("KERNEL_OK")
</pallas_src>

<mosaic_0001>
module attributes {stable_mosaic.version = 11 : i64} {
  func.func @_encoder_kernel(%arg0: i32, %arg1: i32, %arg2: i32, %arg3: memref<1x1x8xf32, #tpu.memory_space<vmem>>, %arg4: memref<1x1x8x32xf32, #tpu.memory_space<vmem>>, %arg5: memref<1x1x8x32xf32, #tpu.memory_space<vmem>>, %arg6: memref<1x1x32x64xf32, #tpu.memory_space<vmem>>, %arg7: memref<1x1x1x64xf32, #tpu.memory_space<vmem>>, %arg8: memref<1x1x32x32xf32, #tpu.memory_space<vmem>>, %arg9: memref<1x1x1x32xf32, #tpu.memory_space<vmem>>, %arg10: memref<1x1x32x32xf32, #tpu.memory_space<vmem>>, %arg11: memref<1x1x1x32xf32, #tpu.memory_space<vmem>>, %arg12: memref<1x1x32x64xf32, #tpu.memory_space<vmem>>, %arg13: memref<1x1x1x64xf32, #tpu.memory_space<vmem>>, %arg14: memref<1x1x64x32xf32, #tpu.memory_space<vmem>>, %arg15: memref<1x1x1x32xf32, #tpu.memory_space<vmem>>, %arg16: memref<1x1x1x32xf32, #tpu.memory_space<vmem>>, %arg17: memref<1x1x1x32xf32, #tpu.memory_space<vmem>>, %arg18: memref<1x1x1x32xf32, #tpu.memory_space<vmem>>, %arg19: memref<1x1x1x32xf32, #tpu.memory_space<vmem>>, %arg20: memref<1x1x8x32xf32, #tpu.memory_space<vmem>>) attributes {dimension_semantics = [#tpu.dimension_semantics<parallel>, #tpu.dimension_semantics<parallel>, #tpu.dimension_semantics<arbitrary>], iteration_bounds = array<i64: 2, 2, 2>, scalar_prefetch = 0 : i64, scratch_operands = 0 : i64, tpu.core_type = #tpu.core_type<tc>, window_params = [{transform_indices = @transform_0, window_bounds = array<i64: 1, 1, 8>}, {transform_indices = @transform_1, window_bounds = array<i64: 1, 1, 8, 32>}, {transform_indices = @transform_2, window_bounds = array<i64: 1, 1, 8, 32>}, {transform_indices = @transform_3, window_bounds = array<i64: 1, 1, 32, 64>}, {transform_indices = @transform_4, window_bounds = array<i64: 1, 1, 1, 64>}, {transform_indices = @transform_5, window_bounds = array<i64: 1, 1, 32, 32>}, {transform_indices = @transform_6, window_bounds = array<i64: 1, 1, 1, 32>}, {transform_indices = @transform_7, window_bounds = array<i64: 1, 1, 32, 32>}, {transform_indices = @transform_8, window_bounds = array<i64: 1, 1, 1, 32>}, {transform_indices = @transform_9, window_bounds = array<i64: 1, 1, 32, 64>}, {transform_indices = @transform_10, window_bounds = array<i64: 1, 1, 1, 64>}, {transform_indices = @transform_11, window_bounds = array<i64: 1, 1, 64, 32>}, {transform_indices = @transform_12, window_bounds = array<i64: 1, 1, 1, 32>}, {transform_indices = @transform_13, window_bounds = array<i64: 1, 1, 1, 32>}, {transform_indices = @transform_14, window_bounds = array<i64: 1, 1, 1, 32>}, {transform_indices = @transform_15, window_bounds = array<i64: 1, 1, 1, 32>}, {transform_indices = @transform_16, window_bounds = array<i64: 1, 1, 1, 32>}, {transform_indices = @transform_17, window_bounds = array<i64: 1, 1, 8, 32>}]} {
    %c0_i32 = arith.constant 0 : i32
    %0 = arith.cmpi eq, %arg2, %c0_i32 : i32
    %1 = arith.extui %0 : i1 to i32
    %c0_i32_0 = arith.constant 0 : i32
    %2 = arith.cmpi ne, %1, %c0_i32_0 : i32
    scf.if %2 {
      %c0_91 = arith.constant 0 : index
      %c0_92 = arith.constant 0 : index
      %c0_93 = arith.constant 0 : index
      %c0_94 = arith.constant 0 : index
      %129 = vector.load %arg4[%c0_91, %c0_92, %c0_93, %c0_94] : memref<1x1x8x32xf32, #tpu.memory_space<vmem>>, vector<1x1x8x32xf32>
      %130 = vector.shape_cast %129 : vector<1x1x8x32xf32> to vector<8x32xf32>
      %c0_95 = arith.constant 0 : index
      %c0_96 = arith.constant 0 : index
      %c0_97 = arith.constant 0 : index
      %c0_98 = arith.constant 0 : index
      %131 = vector.load %arg20[%c0_95, %c0_96, %c0_97, %c0_98] : memref<1x1x8x32xf32, #tpu.memory_space<vmem>>, vector<1x1x8x32xf32>
      %132 = vector.shape_cast %131 : vector<1x1x8x32xf32> to vector<8x32xf32>
      %133 = vector.shape_cast %130 : vector<8x32xf32> to vector<1x1x8x32xf32>
      tpu.vector_store %arg20[%c0_95, %c0_96, %c0_97, %c0_98], %133 {strides = array<i32>} : memref<1x1x8x32xf32, #tpu.memory_space<vmem>>, vector<1x1x8x32xf32>,
    } else {
    }
    %c0 = arith.constant 0 : index
    %c0_1 = arith.constant 0 : index
    %c0_2 = arith.constant 0 : index
    %c0_3 = arith.constant 0 : index
    %3 = vector.load %arg20[%c0, %c0_1, %c0_2, %c0_3] : memref<1x1x8x32xf32, #tpu.memory_space<vmem>>, vector<1x1x8x32xf32>
    %4 = vector.shape_cast %3 : vector<1x1x8x32xf32> to vector<8x32xf32>
    %c0_4 = arith.constant 0 : index
    %c0_5 = arith.constant 0 : index
    %c0_6 = arith.constant 0 : index
    %c0_7 = arith.constant 0 : index
    %5 = vector.load %arg5[%c0_4, %c0_5, %c0_6, %c0_7] : memref<1x1x8x32xf32, #tpu.memory_space<vmem>>, vector<1x1x8x32xf32>
    %6 = vector.shape_cast %5 : vector<1x1x8x32xf32> to vector<8x32xf32>
    %c0_8 = arith.constant 0 : index
    %c0_9 = arith.constant 0 : index
    %c0_10 = arith.constant 0 : index
    %7 = vector.load %arg3[%c0_8, %c0_9, %c0_10] : memref<1x1x8xf32, #tpu.memory_space<vmem>>, vector<1x1x8xf32>
    %8 = arith.addf %4, %6 : vector<8x32xf32>
    %c0_11 = arith.constant 0 : index
    %c0_12 = arith.constant 0 : index
    %c0_13 = arith.constant 0 : index
    %c0_14 = arith.constant 0 : index
    %9 = vector.load %arg6[%c0_11, %c0_12, %c0_13, %c0_14] : memref<1x1x32x64xf32, #tpu.memory_space<vmem>>, vector<1x1x32x64xf32>
    %10 = vector.shape_cast %9 : vector<1x1x32x64xf32> to vector<32x64xf32>
    %cst = arith.constant dense<0.000000e+00> : vector<8x64xf32>
    %11 = tpu.matmul %8, %10, %cst {dimension_numbers = #tpu.dot_dimension_numbers<[1], [0], [0], [1], [0, 0, 1, 1], [], []>} : vector<8x32xf32>, vector<32x64xf32>, vector<8x64xf32> -> vector<8x64xf32>
    %c0_15 = arith.constant 0 : index
    %c0_16 = arith.constant 0 : index
    %c0_17 = arith.constant 0 : index
    %c0_18 = arith.constant 0 : index
    %12 = vector.load %arg7[%c0_15, %c0_16, %c0_17, %c0_18] : memref<1x1x1x64xf32, #tpu.memory_space<vmem>>, vector<1x1x1x64xf32>
    %13 = vector.shape_cast %12 : vector<1x1x1x64xf32> to vector<1x64xf32>
    %14 = vector.broadcast %13 : vector<1x64xf32> to vector<8x64xf32>
    %15 = arith.addf %11, %14 : vector<8x64xf32>
    %c0_19 = arith.constant 0 : index
    %c0_20 = arith.constant 0 : index
    %c0_21 = arith.constant 0 : index
    %c0_22 = arith.constant 0 : index
    %16 = vector.load %arg8[%c0_19, %c0_20, %c0_21, %c0_22] : memref<1x1x32x32xf32, #tpu.memory_space<vmem>>, vector<1x1x32x32xf32>
    %17 = vector.shape_cast %16 : vector<1x1x32x32xf32> to vector<32x32xf32>
    %cst_23 = arith.constant dense<0.000000e+00> : vector<8x32xf32>
    %18 = tpu.matmul %4, %17, %cst_23 {dimension_numbers = #tpu.dot_dimension_numbers<[1], [0], [0], [1], [0, 0, 1, 1], [], []>} : vector<8x32xf32>, vector<32x32xf32>, vector<8x32xf32> -> vector<8x32xf32>
    %c0_24 = arith.constant 0 : index
    %c0_25 = arith.constant 0 : index
    %c0_26 = arith.constant 0 : index
    %c0_27 = arith.constant 0 : index
    %19 = vector.load %arg9[%c0_24, %c0_25, %c0_26, %c0_27] : memref<1x1x1x32xf32, #tpu.memory_space<vmem>>, vector<1x1x1x32xf32>
    %20 = vector.shape_cast %19 : vector<1x1x1x32xf32> to vector<1x32xf32>
    %21 = vector.broadcast %20 : vector<1x32xf32> to vector<8x32xf32>
    %22 = arith.addf %18, %21 : vector<8x32xf32>
    %23 = vector.extract_strided_slice %15 {offsets = [0, 0], sizes = [8, 32], strides = [1, 1]} : vector<8x64xf32> to vector<8x32xf32>
    %24 = vector.shape_cast %23 : vector<8x32xf32> to vector<8x4x8xf32>
    %25 = tpu.transpose %24, [1, 0, 2] : vector<8x4x8xf32> -> vector<4x8x8xf32>
    %26 = vector.extract_strided_slice %15 {offsets = [0, 32], sizes = [8, 32], strides = [1, 1]} : vector<8x64xf32> to vector<8x32xf32>
    %27 = vector.shape_cast %26 : vector<8x32xf32> to vector<8x4x8xf32>
    %28 = tpu.transpose %27, [1, 0, 2] : vector<8x4x8xf32> -> vector<4x8x8xf32>
    %29 = vector.shape_cast %22 : vector<8x32xf32> to vector<8x4x8xf32>
    %30 = tpu.transpose %29, [1, 0, 2] : vector<8x4x8xf32> -> vector<4x8x8xf32>
    "tpu.trace_start"() <{level = 10 : i32, message = "bqd,bkd->bqk"}> : () -> ()
    %cst_28 = arith.constant dense<0.000000e+00> : vector<4x8x8xf32>
    %31 = tpu.matmul %25, %28, %cst_28 {dimension_numbers = #tpu.dot_dimension_numbers<[2], [2], [1], [1], [0, 0, 0, 1, 1, 1], [0], [0]>} : vector<4x8x8xf32>, vector<4x8x8xf32>, vector<4x8x8xf32> -> vector<4x8x8xf32>
    "tpu.trace_stop"() : () -> ()
    %cst_29 = arith.constant 0.353553385 : f32
    %32 = vector.broadcast %cst_29 : f32 to vector<4x8x8xf32>
    %33 = arith.mulf %31, %32 : vector<4x8x8xf32>
    %34 = vector.broadcast %7 : vector<1x1x8xf32> to vector<4x8x8xf32>
    %35 = arith.addf %33, %34 : vector<4x8x8xf32>
    %cst_30 = arith.constant dense<0xFF800000> : vector<4x8xf32>
    %36 = vector.multi_reduction <maximumf>, %35, %cst_30 [2] : vector<4x8x8xf32> to vector<4x8xf32>
    %37 = vector.shape_cast %36 : vector<4x8xf32> to vector<4x8x1xf32>
    %38 = vector.broadcast %37 : vector<4x8x1xf32> to vector<4x8x8xf32>
    %39 = arith.subf %35, %38 : vector<4x8x8xf32>
    %40 = math.exp %39 : vector<4x8x8xf32>
    %cst_31 = arith.constant dense<0.000000e+00> : vector<4x8xf32>
    %41 = vector.multi_reduction <add>, %40, %cst_31 [2] : vector<4x8x8xf32> to vector<4x8xf32>
    %42 = vector.shape_cast %41 : vector<4x8xf32> to vector<4x8x1xf32>
    %43 = tpu.reciprocal %42 : vector<4x8x1xf32> -> vector<4x8x1xf32>
    %44 = vector.broadcast %43 : vector<4x8x1xf32> to vector<4x8x8xf32>
    %45 = arith.mulf %40, %44 : vector<4x8x8xf32>
    "tpu.trace_start"() <{level = 10 : i32, message = "bqk,bkd->bqd"}> : () -> ()
    %cst_32 = arith.constant dense<0.000000e+00> : vector<4x8x8xf32>
    %46 = tpu.matmul %45, %30, %cst_32 {dimension_numbers = #tpu.dot_dimension_numbers<[2], [1], [1], [2], [0, 0, 0, 1, 1, 2], [0], [0]>} : vector<4x8x8xf32>, vector<4x8x8xf32>, vector<4x8x8xf32> -> vector<4x8x8xf32>
    "tpu.trace_stop"() : () -> ()
    %47 = tpu.transpose %46, [1, 0, 2] : vector<4x8x8xf32> -> vector<8x4x8xf32>
    %48 = vector.shape_cast %47 : vector<8x4x8xf32> to vector<8x32xf32>
    %c0_33 = arith.constant 0 : index
    %c0_34 = arith.constant 0 : index
    %c0_35 = arith.constant 0 : index
    %c0_36 = arith.constant 0 : index
    %49 = vector.load %arg10[%c0_33, %c0_34, %c0_35, %c0_36] : memref<1x1x32x32xf32, #tpu.memory_space<vmem>>, vector<1x1x32x32xf32>
    %50 = vector.shape_cast %49 : vector<1x1x32x32xf32> to vector<32x32xf32>
    %cst_37 = arith.constant dense<0.000000e+00> : vector<8x32xf32>
    %51 = tpu.matmul %48, %50, %cst_37 {dimension_numbers = #tpu.dot_dimension_numbers<[1], [0], [0], [1], [0, 0, 1, 1], [], []>} : vector<8x32xf32>, vector<32x32xf32>, vector<8x32xf32> -> vector<8x32xf32>
    %c0_38 = arith.constant 0 : index
    %c0_39 = arith.constant 0 : index
    %c0_40 = arith.constant 0 : index
    %c0_41 = arith.constant 0 : index
    %52 = vector.load %arg11[%c0_38, %c0_39, %c0_40, %c0_41] : memref<1x1x1x32xf32, #tpu.memory_space<vmem>>, vector<1x1x1x32xf32>
    %53 = vector.shape_cast %52 : vector<1x1x1x32xf32> to vector<1x32xf32>
    %54 = vector.broadcast %53 : vector<1x32xf32> to vector<8x32xf32>
    %55 = arith.addf %51, %54 : vector<8x32xf32>
    %56 = arith.addf %4, %55 : vector<8x32xf32>
    %c0_42 = arith.constant 0 : index
    %c0_43 = arith.constant 0 : index
    %c0_44 = arith.constant 0 : index
    %c0_45 = arith.constant 0 : index
    %57 = vector.load %arg16[%c0_42, %c0_43, %c0_44, %c0_45] : memref<1x1x1x32xf32, #tpu.memory_space<vmem>>, vector<1x1x1x32xf32>
    %58 = vector.shape_cast %57 : vector<1x1x1x32xf32> to vector<1x32xf32>
    %c0_46 = arith.constant 0 : index
    %c0_47 = arith.constant 0 : index
    %c0_48 = arith.constant 0 : index
    %c0_49 = arith.constant 0 : index
    %59 = vector.load %arg17[%c0_46, %c0_47, %c0_48, %c0_49] : memref<1x1x1x32xf32, #tpu.memory_space<vmem>>, vector<1x1x1x32xf32>
    %60 = vector.shape_cast %59 : vector<1x1x1x32xf32> to vector<1x32xf32>
    %cst_50 = arith.constant dense<0.000000e+00> : vector<8xf32>
    %61 = vector.multi_reduction <add>, %56, %cst_50 [1] : vector<8x32xf32> to vector<8xf32>
    %62 = vector.shape_cast %61 : vector<8xf32> to vector<8x1xf32>
    %cst_51 = arith.constant 3.200000e+01 : f32
    %63 = vector.broadcast %cst_51 : f32 to vector<8x1xf32>
    %64 = arith.divf %62, %63 : vector<8x1xf32>
    %65 = vector.broadcast %64 : vector<8x1xf32> to vector<8x32xf32>
    %66 = arith.subf %56, %65 : vector<8x32xf32>
    %67 = arith.mulf %66, %66 : vector<8x32xf32>
    %cst_52 = arith.constant dense<0.000000e+00> : vector<8xf32>
    %68 = vector.multi_reduction <add>, %67, %cst_52 [1] : vector<8x32xf32> to vector<8xf32>
    %69 = vector.shape_cast %68 : vector<8xf32> to vector<8x1xf32>
    %cst_53 = arith.constant 3.200000e+01 : f32
    %70 = vector.broadcast %cst_53 : f32 to vector<8x1xf32>
    %71 = arith.divf %69, %70 : vector<8x1xf32>
    %72 = vector.broadcast %64 : vector<8x1xf32> to vector<8x32xf32>
    %73 = arith.subf %56, %72 : vector<8x32xf32>
    %cst_54 = arith.constant 9.99999974E-6 : f32
    %74 = vector.broadcast %cst_54 : f32 to vector<8x1xf32>
    %75 = arith.addf %71, %74 : vector<8x1xf32>
    %76 = math.rsqrt %75 : vector<8x1xf32>
    %77 = vector.broadcast %76 : vector<8x1xf32> to vector<8x32xf32>
    %78 = arith.mulf %73, %77 : vector<8x32xf32>
    %79 = vector.broadcast %58 : vector<1x32xf32> to vector<8x32xf32>
    %80 = arith.mulf %78, %79 : vector<8x32xf32>
    %81 = vector.broadcast %60 : vector<1x32xf32> to vector<8x32xf32>
    %82 = arith.addf %80, %81 : vector<8x32xf32>
    %c0_55 = arith.constant 0 : index
    %c0_56 = arith.constant 0 : index
    %c0_57 = arith.constant 0 : index
    %c0_58 = arith.constant 0 : index
    %83 = vector.load %arg12[%c0_55, %c0_56, %c0_57, %c0_58] : memref<1x1x32x64xf32, #tpu.memory_space<vmem>>, vector<1x1x32x64xf32>
    %84 = vector.shape_cast %83 : vector<1x1x32x64xf32> to vector<32x64xf32>
    %cst_59 = arith.constant dense<0.000000e+00> : vector<8x64xf32>
    %85 = tpu.matmul %82, %84, %cst_59 {dimension_numbers = #tpu.dot_dimension_numbers<[1], [0], [0], [1], [0, 0, 1, 1], [], []>} : vector<8x32xf32>, vector<32x64xf32>, vector<8x64xf32> -> vector<8x64xf32>
    %c0_60 = arith.constant 0 : index
    %c0_61 = arith.constant 0 : index
    %c0_62 = arith.constant 0 : index
    %c0_63 = arith.constant 0 : index
    %86 = vector.load %arg13[%c0_60, %c0_61, %c0_62, %c0_63] : memref<1x1x1x64xf32, #tpu.memory_space<vmem>>, vector<1x1x1x64xf32>
    %87 = vector.shape_cast %86 : vector<1x1x1x64xf32> to vector<1x64xf32>
    %88 = vector.broadcast %87 : vector<1x64xf32> to vector<8x64xf32>
    %89 = arith.addf %85, %88 : vector<8x64xf32>
    %cst_64 = arith.constant 0.000000e+00 : f32
    %90 = vector.broadcast %cst_64 : f32 to vector<8x64xf32>
    %91 = arith.maximumf %89, %90 : vector<8x64xf32>
    %c0_65 = arith.constant 0 : index
    %c0_66 = arith.constant 0 : index
    %c0_67 = arith.constant 0 : index
    %c0_68 = arith.constant 0 : index
    %92 = vector.load %arg14[%c0_65, %c0_66, %c0_67, %c0_68] : memref<1x1x64x32xf32, #tpu.memory_space<vmem>>, vector<1x1x64x32xf32>
    %93 = vector.shape_cast %92 : vector<1x1x64x32xf32> to vector<64x32xf32>
    %cst_69 = arith.constant dense<0.000000e+00> : vector<8x32xf32>
    %94 = tpu.matmul %91, %93, %cst_69 {dimension_numbers = #tpu.dot_dimension_numbers<[1], [0], [0], [1], [0, 0, 1, 1], [], []>} : vector<8x64xf32>, vector<64x32xf32>, vector<8x32xf32> -> vector<8x32xf32>
    %c0_70 = arith.constant 0 : index
    %c0_71 = arith.constant 0 : index
    %c0_72 = arith.constant 0 : index
    %c0_73 = arith.constant 0 : index
    %95 = vector.load %arg15[%c0_70, %c0_71, %c0_72, %c0_73] : memref<1x1x1x32xf32, #tpu.memory_space<vmem>>, vector<1x1x1x32xf32>
    %96 = vector.shape_cast %95 : vector<1x1x1x32xf32> to vector<1x32xf32>
    %97 = vector.broadcast %96 : vector<1x32xf32> to vector<8x32xf32>
    %98 = arith.addf %94, %97 : vector<8x32xf32>
    %99 = arith.addf %82, %98 : vector<8x32xf32>
    %c0_74 = arith.constant 0 : index
    %c0_75 = arith.constant 0 : index
    %c0_76 = arith.constant 0 : index
    %c0_77 = arith.constant 0 : index
    %100 = vector.load %arg18[%c0_74, %c0_75, %c0_76, %c0_77] : memref<1x1x1x32xf32, #tpu.memory_space<vmem>>, vector<1x1x1x32xf32>
    %101 = vector.shape_cast %100 : vector<1x1x1x32xf32> to vector<1x32xf32>
    %c0_78 = arith.constant 0 : index
    %c0_79 = arith.constant 0 : index
    %c0_80 = arith.constant 0 : index
    %c0_81 = arith.constant 0 : index
    %102 = vector.load %arg19[%c0_78, %c0_79, %c0_80, %c0_81] : memref<1x1x1x32xf32, #tpu.memory_space<vmem>>, vector<1x1x1x32xf32>
    %103 = vector.shape_cast %102 : vector<1x1x1x32xf32> to vector<1x32xf32>
    %cst_82 = arith.constant dense<0.000000e+00> : vector<8xf32>
    %104 = vector.multi_reduction <add>, %99, %cst_82 [1] : vector<8x32xf32> to vector<8xf32>
    %105 = vector.shape_cast %104 : vector<8xf32> to vector<8x1xf32>
    %cst_83 = arith.constant 3.200000e+01 : f32
    %106 = vector.broadcast %cst_83 : f32 to vector<8x1xf32>
    %107 = arith.divf %105, %106 : vector<8x1xf32>
    %108 = vector.broadcast %107 : vector<8x1xf32> to vector<8x32xf32>
    %109 = arith.subf %99, %108 : vector<8x32xf32>
    %110 = arith.mulf %109, %109 : vector<8x32xf32>
    %cst_84 = arith.constant dense<0.000000e+00> : vector<8xf32>
    %111 = vector.multi_reduction <add>, %110, %cst_84 [1] : vector<8x32xf32> to vector<8xf32>
    %112 = vector.shape_cast %111 : vector<8xf32> to vector<8x1xf32>
    %cst_85 = arith.constant 3.200000e+01 : f32
    %113 = vector.broadcast %cst_85 : f32 to vector<8x1xf32>
    %114 = arith.divf %112, %113 : vector<8x1xf32>
    %115 = vector.broadcast %107 : vector<8x1xf32> to vector<8x32xf32>
    %116 = arith.subf %99, %115 : vector<8x32xf32>
    %cst_86 = arith.constant 9.99999974E-6 : f32
    %117 = vector.broadcast %cst_86 : f32 to vector<8x1xf32>
    %118 = arith.addf %114, %117 : vector<8x1xf32>
    %119 = math.rsqrt %118 : vector<8x1xf32>
    %120 = vector.broadcast %119 : vector<8x1xf32> to vector<8x32xf32>
    %121 = arith.mulf %116, %120 : vector<8x32xf32>
    %122 = vector.broadcast %101 : vector<1x32xf32> to vector<8x32xf32>
    %123 = arith.mulf %121, %122 : vector<8x32xf32>
    %124 = vector.broadcast %103 : vector<1x32xf32> to vector<8x32xf32>
    %125 = arith.addf %123, %124 : vector<8x32xf32>
    %c0_87 = arith.constant 0 : index
    %c0_88 = arith.constant 0 : index
    %c0_89 = arith.constant 0 : index
    %c0_90 = arith.constant 0 : index
    %126 = vector.load %arg20[%c0_87, %c0_88, %c0_89, %c0_90] : memref<1x1x8x32xf32, #tpu.memory_space<vmem>>, vector<1x1x8x32xf32>
    %127 = vector.shape_cast %126 : vector<1x1x8x32xf32> to vector<8x32xf32>
    %128 = vector.shape_cast %125 : vector<8x32xf32> to vector<1x1x8x32xf32>
    tpu.vector_store %arg20[%c0_87, %c0_88, %c0_89, %c0_90], %128 {strides = array<i32>} : memref<1x1x8x32xf32, #tpu.memory_space<vmem>>, vector<1x1x8x32xf32>,
    return
  }
  func.func @transform_0(%arg0: i32, %arg1: i32, %arg2: i32) -> (i32, i32, i32) {
    %c0_i32 = arith.constant 0 : i32
    %c0_i32_0 = arith.constant 0 : i32
    %c0_i32_1 = arith.constant 0 : i32
    return %arg1, %c0_i32, %c0_i32_0 : i32, i32, i32
  }
  func.func @transform_1(%arg0: i32, %arg1: i32, %arg2: i32) -> (i32, i32, i32, i32) {
    %c0_i32 = arith.constant 0 : i32
    %c0_i32_0 = arith.constant 0 : i32
    %c0_i32_1 = arith.constant 0 : i32
    return %arg0, %arg1, %c0_i32, %c0_i32_0 : i32, i32, i32, i32
  }
  func.func @transform_2(%arg0: i32, %arg1: i32, %arg2: i32) -> (i32, i32, i32, i32) {
    %c0_i32 = arith.constant 0 : i32
    %c0_i32_0 = arith.constant 0 : i32
    %c0_i32_1 = arith.constant 0 : i32
    return %arg0, %arg1, %c0_i32, %c0_i32_0 : i32, i32, i32, i32
  }
  func.func @transform_3(%arg0: i32, %arg1: i32, %arg2: i32) -> (i32, i32, i32, i32) {
    %c0_i32 = arith.constant 0 : i32
    %c0_i32_0 = arith.constant 0 : i32
    %c0_i32_1 = arith.constant 0 : i32
    return %arg0, %arg2, %c0_i32, %c0_i32_0 : i32, i32, i32, i32
  }
  func.func @transform_4(%arg0: i32, %arg1: i32, %arg2: i32) -> (i32, i32, i32, i32) {
    %c0_i32 = arith.constant 0 : i32
    %c0_i32_0 = arith.constant 0 : i32
    %c0_i32_1 = arith.constant 0 : i32
    return %arg0, %arg2, %c0_i32, %c0_i32_0 : i32, i32, i32, i32
  }
  func.func @transform_5(%arg0: i32, %arg1: i32, %arg2: i32) -> (i32, i32, i32, i32) {
    %c0_i32 = arith.constant 0 : i32
    %c0_i32_0 = arith.constant 0 : i32
    %c0_i32_1 = arith.constant 0 : i32
    return %arg0, %arg2, %c0_i32, %c0_i32_0 : i32, i32, i32, i32
  }
  func.func @transform_6(%arg0: i32, %arg1: i32, %arg2: i32) -> (i32, i32, i32, i32) {
    %c0_i32 = arith.constant 0 : i32
    %c0_i32_0 = arith.constant 0 : i32
    %c0_i32_1 = arith.constant 0 : i32
    return %arg0, %arg2, %c0_i32, %c0_i32_0 : i32, i32, i32, i32
  }
  func.func @transform_7(%arg0: i32, %arg1: i32, %arg2: i32) -> (i32, i32, i32, i32) {
    %c0_i32 = arith.constant 0 : i32
    %c0_i32_0 = arith.constant 0 : i32
    %c0_i32_1 = arith.constant 0 : i32
    return %arg0, %arg2, %c0_i32, %c0_i32_0 : i32, i32, i32, i32
  }
  func.func @transform_8(%arg0: i32, %arg1: i32, %arg2: i32) -> (i32, i32, i32, i32) {
    %c0_i32 = arith.constant 0 : i32
    %c0_i32_0 = arith.constant 0 : i32
    %c0_i32_1 = arith.constant 0 : i32
    return %arg0, %arg2, %c0_i32, %c0_i32_0 : i32, i32, i32, i32
  }
  func.func @transform_9(%arg0: i32, %arg1: i32, %arg2: i32) -> (i32, i32, i32, i32) {
    %c0_i32 = arith.constant 0 : i32
    %c0_i32_0 = arith.constant 0 : i32
    %c0_i32_1 = arith.constant 0 : i32
    return %arg0, %arg2, %c0_i32, %c0_i32_0 : i32, i32, i32, i32
  }
  func.func @transform_10(%arg0: i32, %arg1: i32, %arg2: i32) -> (i32, i32, i32, i32) {
    %c0_i32 = arith.constant 0 : i32
    %c0_i32_0 = arith.constant 0 : i32
    %c0_i32_1 = arith.constant 0 : i32
    return %arg0, %arg2, %c0_i32, %c0_i32_0 : i32, i32, i32, i32
  }
  func.func @transform_11(%arg0: i32, %arg1: i32, %arg2: i32) -> (i32, i32, i32, i32) {
    %c0_i32 = arith.constant 0 : i32
    %c0_i32_0 = arith.constant 0 : i32
    %c0_i32_1 = arith.constant 0 : i32
    return %arg0, %arg2, %c0_i32, %c0_i32_0 : i32, i32, i32, i32
  }
  func.func @transform_12(%arg0: i32, %arg1: i32, %arg2: i32) -> (i32, i32, i32, i32) {
    %c0_i32 = arith.constant 0 : i32
    %c0_i32_0 = arith.constant 0 : i32
    %c0_i32_1 = arith.constant 0 : i32
    return %arg0, %arg2, %c0_i32, %c0_i32_0 : i32, i32, i32, i32
  }
  func.func @transform_13(%arg0: i32, %arg1: i32, %arg2: i32) -> (i32, i32, i32, i32) {
    %c0_i32 = arith.constant 0 : i32
    %c0_i32_0 = arith.constant 0 : i32
    %c0_i32_1 = arith.constant 0 : i32
    return %arg0, %arg2, %c0_i32, %c0_i32_0 : i32, i32, i32, i32
  }
  func.func @transform_14(%arg0: i32, %arg1: i32, %arg2: i32) -> (i32, i32, i32, i32) {
    %c0_i32 = arith.constant 0 : i32
    %c0_i32_0 = arith.constant 0 : i32
    %c0_i32_1 = arith.constant 0 : i32
    return %arg0, %arg2, %c0_i32, %c0_i32_0 : i32, i32, i32, i32
  }
  func.func @transform_15(%arg0: i32, %arg1: i32, %arg2: i32) -> (i32, i32, i32, i32) {
    %c0_i32 = arith.constant 0 : i32
    %c0_i32_0 = arith.constant 0 : i32
    %c0_i32_1 = arith.constant 0 : i32
    return %arg0, %arg2, %c0_i32, %c0_i32_0 : i32, i32, i32, i32
  }
  func.func @transform_16(%arg0: i32, %arg1: i32, %arg2: i32) -> (i32, i32, i32, i32) {
    %c0_i32 = arith.constant 0 : i32
    %c0_i32_0 = arith.constant 0 : i32
    %c0_i32_1 = arith.constant 0 : i32
    return %arg0, %arg2, %c0_i32, %c0_i32_0 : i32, i32, i32, i32
  }
  func.func @transform_17(%arg0: i32, %arg1: i32, %arg2: i32) -> (i32, i32, i32, i32) {
    %c0_i32 = arith.constant 0 : i32
    %c0_i32_0 = arith.constant 0 : i32
    %c0_i32_1 = arith.constant 0 : i32
    return %arg0, %arg1, %c0_i32, %c0_i32_0 : i32, i32, i32, i32
  }
}

</mosaic_0001>

<llo_original>
// kernel: tpu_custom_call.1
$region0: #{tpu_custom_call.1}
  #allocation0 [shape = 'u32[]', space=smem, size = 0x4, offset = 0x4, fixed_abs, tag = 'smem constant byte address 0x4 - core index']
  #allocation1 [shape = 'u32[144,128]{1,0:T(1,128)}', space=vmem, size = 0x12000, scoped, tag = 'internal scratch']
  %s0 = inlined_call_operand.hbm [shape: f32[2,1,8], index: 0, kind: input, shape index: {}]
  %s1 = inlined_call_operand.hbm [shape: f32[2,2,8,32], index: 1, kind: input, shape index: {}]
  %s2 = inlined_call_operand.hbm [shape: f32[2,2,8,32], index: 2, kind: input, shape index: {}]
  %s3 = inlined_call_operand.vmem [shape: f32[2,2,32,64], index: 3, kind: input, shape index: {}]
  %s4 = inlined_call_operand.vmem [shape: f32[2,2,1,64], index: 4, kind: input, shape index: {}]
  %s5 = inlined_call_operand.vmem [shape: f32[2,2,32,32], index: 5, kind: input, shape index: {}]
  %s6 = inlined_call_operand.vmem [shape: f32[2,2,1,32], index: 6, kind: input, shape index: {}]
  %s7 = inlined_call_operand.vmem [shape: f32[2,2,32,32], index: 7, kind: input, shape index: {}]
  %s8 = inlined_call_operand.vmem [shape: f32[2,2,1,32], index: 8, kind: input, shape index: {}]
  %s9 = inlined_call_operand.hbm [shape: f32[2,2,32,64], index: 9, kind: input, shape index: {}]
  %s10 = inlined_call_operand.vmem [shape: f32[2,2,1,64], index: 10, kind: input, shape index: {}]
  %s11 = inlined_call_operand.vmem [shape: f32[2,2,64,32], index: 11, kind: input, shape index: {}]
  %s12 = inlined_call_operand.vmem [shape: f32[2,2,1,32], index: 12, kind: input, shape index: {}]
  %s13 = inlined_call_operand.vmem [shape: f32[2,2,1,32], index: 13, kind: input, shape index: {}]
  %s14 = inlined_call_operand.vmem [shape: f32[2,2,1,32], index: 14, kind: input, shape index: {}]
  %s15 = inlined_call_operand.vmem [shape: f32[2,2,1,32], index: 15, kind: input, shape index: {}]
  %s16 = inlined_call_operand.vmem [shape: f32[2,2,1,32], index: 16, kind: input, shape index: {}]
  %s17 = inlined_call_operand.hbm [shape: f32[2,2,8,32], index: 17, kind: output, shape index: {}]
  %s18 = sld [smem:[#allocation0]]
  $region121: #{tpu_custom_call.1} parent=0
    _
  %s20 = ssub.s32 1, %s18
  %s21 = scalar_select 0, %s20, %s18
  $region1: #{tpu_custom_call.1} parent=0
    #allocation2 [shape = 'u8[1024]{0}', space=vmem, size = 0x400, scoped, tag = 'input window, operand 0']
    #allocation3 [shape = 's32[2]{0}', space=sflag, size = 0x8, scoped, tag = 'scoped memory for tpu_custom_call.1']
    #allocation4 [shape = 's32[2]{0}', space=sflag, size = 0x8, scoped, tag = 'scoped memory for tpu_custom_call.1']
    #allocation5 [shape = 'u8[8192]{0}', space=vmem, size = 0x2000, scoped, tag = 'input window, operand 1']
    #allocation6 [shape = 's32[2]{0}', space=sflag, size = 0x8, scoped, tag = 'scoped memory for tpu_custom_call.1']
    #allocation7 [shape = 'u8[8192]{0}', space=vmem, size = 0x2000, scoped, tag = 'input window, operand 2']
    #allocation8 [shape = 'u8[32768]{0}', space=vmem, size = 0x8000, scoped, tag = 'input window, operand 9']
    #allocation9 [shape = 's32[2]{0}', space=sflag, size = 0x8, scoped, tag = 'scoped memory for tpu_custom_call.1']
    #allocation10 [shape = 'u8[8192]{0}', space=vmem, size = 0x2000, scoped, tag = 'output window, operand 0']
    %22 = vsyncpa [#allocation3], 0
    %s23 = scalar_lea.sflag [#allocation3], 1
    %24 = vsyncpa %s23, 0
    %25 = vsyncpa [#allocation6], 0
    %s26 = scalar_lea.sflag [#allocation6], 1
    %27 = vsyncpa %s26, 0
    %28 = vsyncpa [#allocation9], 0
    %s29 = scalar_lea.sflag [#allocation9], 1
    %30 = vsyncpa %s29, 0
    %31 = vsyncpa [#allocation4], 0
    %s32 = scalar_lea.sflag [#allocation4], 1
    %33 = vsyncpa %s32, 0
    loop: start=0, step=1, limit=10
    $region2: #{tpu_custom_call.1} parent=1 // loop_pre_header
      _
    $region3: #{tpu_custom_call.1} parent=1 // loop_header
      %s35 = sphi 0, %s39
      %p36 = scmp.ge.s32.totalorder %s35, 10
      %s42 = sphi 0, %s61
      %s43 = sphi 0, %s57
      %s44 = sphi 0, %s53
      %s45 = sphi 0, %s42
      %s46 = sphi 0, %s43
      %s47 = sphi 0, %s44
      %s48 = sphi 0, %s45
      %s49 = sphi 0, %s46
      %s50 = sphi 0, %s47
      %s64 = sphi 0, %s66
      %s67 = sphi 0, %s64
      %s68 = sphi 0, %s67
      %s84 = sphi 0, %s68
      %s92 = sphi 0, %s94
      %s95 = sphi 0, %s92
      %s96 = sphi 0, %s95
      %s112 = sphi 0, %s96
      %s120 = sphi 0, %s122
      %s123 = sphi 0, %s120
      %s124 = sphi 0, %s123
      %s140 = sphi 0, %s124
      %s148 = sphi 0, %s150
      %s151 = sphi 0, %s148
      %s152 = sphi 0, %s151
      %s168 = sphi 0, %s152
      %s176 = sphi 0, %s178
      %s179 = sphi 0, %s176
      %s180 = sphi 0, %s179
      %s196 = sphi 0, %s180
      %s204 = sphi 0, %s206
      %s207 = sphi 0, %s204
      %s208 = sphi 0, %s207
      %s224 = sphi 0, %s208
      %s232 = sphi 0, %s234
      %s235 = sphi 0, %s232
      %s236 = sphi 0, %s235
      %s252 = sphi 0, %s236
      %s260 = sphi 0, %s262
      %s263 = sphi 0, %s260
      %s264 = sphi 0, %s263
      %s280 = sphi 0, %s264
      %s288 = sphi 0, %s290
      %s291 = sphi 0, %s288
      %s292 = sphi 0, %s291
      %s308 = sphi 0, %s292
      %s316 = sphi 0, %s318
      %s319 = sphi 0, %s316
      %s320 = sphi 0, %s319
      %s336 = sphi 0, %s320
      %s344 = sphi 0, %s346
      %s347 = sphi 0, %s344
      %s348 = sphi 0, %s347
      %s364 = sphi 0, %s348
      %s372 = sphi 0, %s374
      %s375 = sphi 0, %s372
      %s376 = sphi 0, %s375
      %s392 = sphi 0, %s376
      %s400 = sphi 0, %s402
      %s403 = sphi 0, %s400
      %s404 = sphi 0, %s403
      %s420 = sphi 0, %s404
      %s428 = sphi 0, %s430
      %s431 = sphi 0, %s428
      %s432 = sphi 0, %s431
      %s448 = sphi 0, %s432
      %s456 = sphi 0, %s458
      %s459 = sphi 0, %s456
      %s460 = sphi 0, %s459
      %s476 = sphi 0, %s460
      %s484 = sphi 0, %s486
      %s487 = sphi 0, %s484
      %s488 = sphi 0, %s487
      %s504 = sphi 0, %s488
      %s512 = sphi 0, %s514
      %s515 = sphi 0, %s512
      %s516 = sphi 0, %s515
      %s532 = sphi 0, %s516
      %s540 = sphi 0, %s542
      %s543 = sphi 0, %s540
      %s544 = sphi 0, %s543
      %s560 = sphi 0, %s544
    $region4: #{tpu_custom_call.1} parent=1 // loop_header_branch
      %38 = sbr.rel (%p36) target = $region8
    $region5: #{tpu_custom_call.1} parent=1 // loop_body
      %s40 = ssub.s32 %s35, 1
      %s41 = ssub.s32 %s35, 2
      %s51 = sadd.s32 1, %s44
      %p52 = scmp.ge.s32.totalorder %s51, 2
      %s53 = scalar_select %p52, 0, %s51
      %s54 = sadd.s32 1, %s43
      %s55 = scalar_select %p52, %s54, %s43
      %p56 = scmp.ge.s32.totalorder %s55, 2
      %s57 = scalar_select %p56, 0, %s55
      %s58 = sadd.s32 1, %s42
      %s59 = scalar_select %p56, %s58, %s42
      %p60 = scmp.ge.s32.totalorder %s59, 2
      %s61 = scalar_select %p60, 0, %s59
      %s62 = ssub.s32 %s43, %s57
      %p63 = scmp.eq.s32.totalorder %s62, 0
      %s65 = sadd.s32 %s64, 1
      %s66 = scalar_select %p63, %s64, %s65
      %p69 = pneg %p63
      %p70 = scmp.eq.s32.totalorder %s35, 7
      %p71 = por %p69, %p70
      %p72 = scmp.ne.s32.totalorder %s64, %s67
      %p73 = scmp.eq.s32.totalorder %s35, 0
      %p74 = por %p72, %p73
      %p75 = scmp.ne.s32.totalorder %s64, %s67
      %p76 = scmp.eq.s32.totalorder %s40, 7
      %p77 = por %p75, %p76
      %p78 = scmp.ne.s32.totalorder %s67, %s68
      %p79 = scmp.eq.s32.totalorder %s40, 0
      %p80 = por %p78, %p79
      %p81 = scmp.ne.s32.totalorder %s67, %s68
      %p82 = scmp.eq.s32.totalorder %s41, 7
      %p83 = por %p81, %p82
      %p85 = scmp.ne.s32.totalorder %s68, %s84
      %p86 = scmp.eq.s32.totalorder %s41, 0
      %p87 = por %p85, %p86
      %s88 = ssub.s32 %s42, %s61
      %s89 = ssub.s32 %s43, %s57
      %s90 = sor.u32 %s88, %s89
      %p91 = scmp.eq.s32.totalorder %s90, 0
      %s93 = sadd.s32 %s92, 1
      %s94 = scalar_select %p91, %s92, %s93
      %p97 = pneg %p91
      %p98 = scmp.eq.s32.totalorder %s35, 7
      %p99 = por %p97, %p98
      %p100 = scmp.ne.s32.totalorder %s92, %s95
      %p101 = scmp.eq.s32.totalorder %s35, 0
      %p102 = por %p100, %p101
      %p103 = scmp.ne.s32.totalorder %s92, %s95
      %p104 = scmp.eq.s32.totalorder %s40, 7
      %p105 = por %p103, %p104
      %p106 = scmp.ne.s32.totalorder %s95, %s96
      %p107 = scmp.eq.s32.totalorder %s40, 0
      %p108 = por %p106, %p107
      %p109 = scmp.ne.s32.totalorder %s95, %s96
      %p110 = scmp.eq.s32.totalorder %s41, 7
      %p111 = por %p109, %p110
      %p113 = scmp.ne.s32.totalorder %s96, %s112
      %p114 = scmp.eq.s32.totalorder %s41, 0
      %p115 = por %p113, %p114
      %s116 = ssub.s32 %s42, %s61
      %s117 = ssub.s32 %s43, %s57
      %s118 = sor.u32 %s116, %s117
      %p119 = scmp.eq.s32.totalorder %s118, 0
      %s121 = sadd.s32 %s120, 1
      %s122 = scalar_select %p119, %s120, %s121
      %p125 = pneg %p119
      %p126 = scmp.eq.s32.totalorder %s35, 7
      %p127 = por %p125, %p126
      %p128 = scmp.ne.s32.totalorder %s120, %s123
      %p129 = scmp.eq.s32.totalorder %s35, 0
      %p130 = por %p128, %p129
      %p131 = scmp.ne.s32.totalorder %s120, %s123
      %p132 = scmp.eq.s32.totalorder %s40, 7
      %p133 = por %p131, %p132
      %p134 = scmp.ne.s32.totalorder %s123, %s124
      %p135 = scmp.eq.s32.totalorder %s40, 0
      %p136 = por %p134, %p135
      %p137 = scmp.ne.s32.totalorder %s123, %s124
      %p138 = scmp.eq.s32.totalorder %s41, 7
      %p139 = por %p137, %p138
      %p141 = scmp.ne.s32.totalorder %s124, %s140
      %p142 = scmp.eq.s32.totalorder %s41, 0
      %p143 = por %p141, %p142
      %s144 = ssub.s32 %s42, %s61
      %s145 = ssub.s32 %s44, %s53
      %s146 = sor.u32 %s144, %s145
      %p147 = scmp.eq.s32.totalorder %s146, 0
      %s149 = sadd.s32 %s148, 1
      %s150 = scalar_select %p147, %s148, %s149
      %p153 = pneg %p147
      %p154 = scmp.eq.s32.totalorder %s35, 7
      %p155 = por %p153, %p154
      %p156 = scmp.ne.s32.totalorder %s148, %s151
      %p157 = scmp.eq.s32.totalorder %s35, 0
      %p158 = por %p156, %p157
      %p159 = scmp.ne.s32.totalorder %s148, %s151
      %p160 = scmp.eq.s32.totalorder %s40, 7
      %p161 = por %p159, %p160
      %p162 = scmp.ne.s32.totalorder %s151, %s152
      %p163 = scmp.eq.s32.totalorder %s40, 0
      %p164 = por %p162, %p163
      %p165 = scmp.ne.s32.totalorder %s151, %s152
      %p166 = scmp.eq.s32.totalorder %s41, 7
      %p167 = por %p165, %p166
      %p169 = scmp.ne.s32.totalorder %s152, %s168
      %p170 = scmp.eq.s32.totalorder %s41, 0
      %p171 = por %p169, %p170
      %s172 = ssub.s32 %s42, %s61
      %s173 = ssub.s32 %s44, %s53
      %s174 = sor.u32 %s172, %s173
      %p175 = scmp.eq.s32.totalorder %s174, 0
      %s177 = sadd.s32 %s176, 1
      %s178 = scalar_select %p175, %s176, %s177
      %p181 = pneg %p175
      %p182 = scmp.eq.s32.totalorder %s35, 7
      %p183 = por %p181, %p182
      %p184 = scmp.ne.s32.totalorder %s176, %s179
      %p185 = scmp.eq.s32.totalorder %s35, 0
      %p186 = por %p184, %p185
      %p187 = scmp.ne.s32.totalorder %s176, %s179
      %p188 = scmp.eq.s32.totalorder %s40, 7
      %p189 = por %p187, %p188
      %p190 = scmp.ne.s32.totalorder %s179, %s180
      %p191 = scmp.eq.s32.totalorder %s40, 0
      %p192 = por %p190, %p191
      %p193 = scmp.ne.s32.totalorder %s179, %s180
      %p194 = scmp.eq.s32.totalorder %s41, 7
      %p195 = por %p193, %p194
      %p197 = scmp.ne.s32.totalorder %s180, %s196
      %p198 = scmp.eq.s32.totalorder %s41, 0
      %p199 = por %p197, %p198
      %s200 = ssub.s32 %s42, %s61
      %s201 = ssub.s32 %s44, %s53
      %s202 = sor.u32 %s200, %s201
      %p203 = scmp.eq.s32.totalorder %s202, 0
      %s205 = sadd.s32 %s204, 1
      %s206 = scalar_select %p203, %s204, %s205
      %p209 = pneg %p203
      %p210 = scmp.eq.s32.totalorder %s35, 7
      %p211 = por %p209, %p210
      %p212 = scmp.ne.s32.totalorder %s204, %s207
      %p213 = scmp.eq.s32.totalorder %s35, 0
      %p214 = por %p212, %p213
      %p215 = scmp.ne.s32.totalorder %s204, %s207
      %p216 = scmp.eq.s32.totalorder %s40, 7
      %p217 = por %p215, %p216
      %p218 = scmp.ne.s32.totalorder %s207, %s208
      %p219 = scmp.eq.s32.totalorder %s40, 0
      %p220 = por %p218, %p219
      %p221 = scmp.ne.s32.totalorder %s207, %s208
      %p222 = scmp.eq.s32.totalorder %s41, 7
      %p223 = por %p221, %p222
      %p225 = scmp.ne.s32.totalorder %s208, %s224
      %p226 = scmp.eq.s32.totalorder %s41, 0
      %p227 = por %p225, %p226
      %s228 = ssub.s32 %s42, %s61
      %s229 = ssub.s32 %s44, %s53
      %s230 = sor.u32 %s228, %s229
      %p231 = scmp.eq.s32.totalorder %s230, 0
      %s233 = sadd.s32 %s232, 1
      %s234 = scalar_select %p231, %s232, %s233
      %p237 = pneg %p231
      %p238 = scmp.eq.s32.totalorder %s35, 7
      %p239 = por %p237, %p238
      %p240 = scmp.ne.s32.totalorder %s232, %s235
      %p241 = scmp.eq.s32.totalorder %s35, 0
      %p242 = por %p240, %p241
      %p243 = scmp.ne.s32.totalorder %s232, %s235
      %p244 = scmp.eq.s32.totalorder %s40, 7
      %p245 = por %p243, %p244
      %p246 = scmp.ne.s32.totalorder %s235, %s236
      %p247 = scmp.eq.s32.totalorder %s40, 0
      %p248 = por %p246, %p247
      %p249 = scmp.ne.s32.totalorder %s235, %s236
      %p250 = scmp.eq.s32.totalorder %s41, 7
      %p251 = por %p249, %p250
      %p253 = scmp.ne.s32.totalorder %s236, %s252
      %p254 = scmp.eq.s32.totalorder %s41, 0
      %p255 = por %p253, %p254
      %s256 = ssub.s32 %s42, %s61
      %s257 = ssub.s32 %s44, %s53
      %s258 = sor.u32 %s256, %s257
      %p259 = scmp.eq.s32.totalorder %s258, 0
      %s261 = sadd.s32 %s260, 1
      %s262 = scalar_select %p259, %s260, %s261
      %p265 = pneg %p259
      %p266 = scmp.eq.s32.totalorder %s35, 7
      %p267 = por %p265, %p266
      %p268 = scmp.ne.s32.totalorder %s260, %s263
      %p269 = scmp.eq.s32.totalorder %s35, 0
      %p270 = por %p268, %p269
      %p271 = scmp.ne.s32.totalorder %s260, %s263
      %p272 = scmp.eq.s32.totalorder %s40, 7
      %p273 = por %p271, %p272
      %p274 = scmp.ne.s32.totalorder %s263, %s264
      %p275 = scmp.eq.s32.totalorder %s40, 0
      %p276 = por %p274, %p275
      %p277 = scmp.ne.s32.totalorder %s263, %s264
      %p278 = scmp.eq.s32.totalorder %s41, 7
      %p279 = por %p277, %p278
      %p281 = scmp.ne.s32.totalorder %s264, %s280
      %p282 = scmp.eq.s32.totalorder %s41, 0
      %p283 = por %p281, %p282
      %s284 = ssub.s32 %s42, %s61
      %s285 = ssub.s32 %s44, %s53
      %s286 = sor.u32 %s284, %s285
      %p287 = scmp.eq.s32.totalorder %s286, 0
      %s289 = sadd.s32 %s288, 1
      %s290 = scalar_select %p287, %s288, %s289
      %p293 = pneg %p287
      %p294 = scmp.eq.s32.totalorder %s35, 7
      %p295 = por %p293, %p294
      %p296 = scmp.ne.s32.totalorder %s288, %s291
      %p297 = scmp.eq.s32.totalorder %s35, 0
      %p298 = por %p296, %p297
      %p299 = scmp.ne.s32.totalorder %s288, %s291
      %p300 = scmp.eq.s32.totalorder %s40, 7
      %p301 = por %p299, %p300
      %p302 = scmp.ne.s32.totalorder %s291, %s292
      %p303 = scmp.eq.s32.totalorder %s40, 0
      %p304 = por %p302, %p303
      %p305 = scmp.ne.s32.totalorder %s291, %s292
      %p306 = scmp.eq.s32.totalorder %s41, 7
      %p307 = por %p305, %p306
      %p309 = scmp.ne.s32.totalorder %s292, %s308
      %p310 = scmp.eq.s32.totalorder %s41, 0
      %p311 = por %p309, %p310
      %s312 = ssub.s32 %s42, %s61
      %s313 = ssub.s32 %s44, %s53
      %s314 = sor.u32 %s312, %s313
      %p315 = scmp.eq.s32.totalorder %s314, 0
      %s317 = sadd.s32 %s316, 1
      %s318 = scalar_select %p315, %s316, %s317
      %p321 = pneg %p315
      %p322 = scmp.eq.s32.totalorder %s35, 7
      %p323 = por %p321, %p322
      %p324 = scmp.ne.s32.totalorder %s316, %s319
      %p325 = scmp.eq.s32.totalorder %s35, 0
      %p326 = por %p324, %p325
      %p327 = scmp.ne.s32.totalorder %s316, %s319
      %p328 = scmp.eq.s32.totalorder %s40, 7
      %p329 = por %p327, %p328
      %p330 = scmp.ne.s32.totalorder %s319, %s320
      %p331 = scmp.eq.s32.totalorder %s40, 0
      %p332 = por %p330, %p331
      %p333 = scmp.ne.s32.totalorder %s319, %s320
      %p334 = scmp.eq.s32.totalorder %s41, 7
      %p335 = por %p333, %p334
      %p337 = scmp.ne.s32.totalorder %s320, %s336
      %p338 = scmp.eq.s32.totalorder %s41, 0
      %p339 = por %p337, %p338
      %s340 = ssub.s32 %s42, %s61
      %s341 = ssub.s32 %s44, %s53
      %s342 = sor.u32 %s340, %s341
      %p343 = scmp.eq.s32.totalorder %s342, 0
      %s345 = sadd.s32 %s344, 1
      %s346 = scalar_select %p343, %s344, %s345
      %p349 = pneg %p343
      %p350 = scmp.eq.s32.totalorder %s35, 7
      %p351 = por %p349, %p350
      %p352 = scmp.ne.s32.totalorder %s344, %s347
      %p353 = scmp.eq.s32.totalorder %s35, 0
      %p354 = por %p352, %p353
      %p355 = scmp.ne.s32.totalorder %s344, %s347
      %p356 = scmp.eq.s32.totalorder %s40, 7
      %p357 = por %p355, %p356
      %p358 = scmp.ne.s32.totalorder %s347, %s348
      %p359 = scmp.eq.s32.totalorder %s40, 0
      %p360 = por %p358, %p359
      %p361 = scmp.ne.s32.totalorder %s347, %s348
      %p362 = scmp.eq.s32.totalorder %s41, 7
      %p363 = por %p361, %p362
      %p365 = scmp.ne.s32.totalorder %s348, %s364
      %p366 = scmp.eq.s32.totalorder %s41, 0
      %p367 = por %p365, %p366
      %s368 = ssub.s32 %s42, %s61
      %s369 = ssub.s32 %s44, %s53
      %s370 = sor.u32 %s368, %s369
      %p371 = scmp.eq.s32.totalorder %s370, 0
      %s373 = sadd.s32 %s372, 1
      %s374 = scalar_select %p371, %s372, %s373
      %p377 = pneg %p371
      %p378 = scmp.eq.s32.totalorder %s35, 7
      %p379 = por %p377, %p378
      %p380 = scmp.ne.s32.totalorder %s372, %s375
      %p381 = scmp.eq.s32.totalorder %s35, 0
      %p382 = por %p380, %p381
      %p383 = scmp.ne.s32.totalorder %s372, %s375
      %p384 = scmp.eq.s32.totalorder %s40, 7
      %p385 = por %p383, %p384
      %p386 = scmp.ne.s32.totalorder %s375, %s376
      %p387 = scmp.eq.s32.totalorder %s40, 0
      %p388 = por %p386, %p387
      %p389 = scmp.ne.s32.totalorder %s375, %s376
      %p390 = scmp.eq.s32.totalorder %s41, 7
      %p391 = por %p389, %p390
      %p393 = scmp.ne.s32.totalorder %s376, %s392
      %p394 = scmp.eq.s32.totalorder %s41, 0
      %p395 = por %p393, %p394
      %s396 = ssub.s32 %s42, %s61
      %s397 = ssub.s32 %s44, %s53
      %s398 = sor.u32 %s396, %s397
      %p399 = scmp.eq.s32.totalorder %s398, 0
      %s401 = sadd.s32 %s400, 1
      %s402 = scalar_select %p399, %s400, %s401
      %p405 = pneg %p399
      %p406 = scmp.eq.s32.totalorder %s35, 7
      %p407 = por %p405, %p406
      %p408 = scmp.ne.s32.totalorder %s400, %s403
      %p409 = scmp.eq.s32.totalorder %s35, 0
      %p410 = por %p408, %p409
      %p411 = scmp.ne.s32.totalorder %s400, %s403
      %p412 = scmp.eq.s32.totalorder %s40, 7
      %p413 = por %p411, %p412
      %p414 = scmp.ne.s32.totalorder %s403, %s404
      %p415 = scmp.eq.s32.totalorder %s40, 0
      %p416 = por %p414, %p415
      %p417 = scmp.ne.s32.totalorder %s403, %s404
      %p418 = scmp.eq.s32.totalorder %s41, 7
      %p419 = por %p417, %p418
      %p421 = scmp.ne.s32.totalorder %s404, %s420
      %p422 = scmp.eq.s32.totalorder %s41, 0
      %p423 = por %p421, %p422
      %s424 = ssub.s32 %s42, %s61
      %s425 = ssub.s32 %s44, %s53
      %s426 = sor.u32 %s424, %s425
      %p427 = scmp.eq.s32.totalorder %s426, 0
      %s429 = sadd.s32 %s428, 1
      %s430 = scalar_select %p427, %s428, %s429
      %p433 = pneg %p427
      %p434 = scmp.eq.s32.totalorder %s35, 7
      %p435 = por %p433, %p434
      %p436 = scmp.ne.s32.totalorder %s428, %s431
      %p437 = scmp.eq.s32.totalorder %s35, 0
      %p438 = por %p436, %p437
      %p439 = scmp.ne.s32.totalorder %s428, %s431
      %p440 = scmp.eq.s32.totalorder %s40, 7
      %p441 = por %p439, %p440
      %p442 = scmp.ne.s32.totalorder %s431, %s432
      %p443 = scmp.eq.s32.totalorder %s40, 0
      %p444 = por %p442, %p443
      %p445 = scmp.ne.s32.totalorder %s431, %s432
      %p446 = scmp.eq.s32.totalorder %s41, 7
      %p447 = por %p445, %p446
      %p449 = scmp.ne.s32.totalorder %s432, %s448
      %p450 = scmp.eq.s32.totalorder %s41, 0
      %p451 = por %p449, %p450
      %s452 = ssub.s32 %s42, %s61
      %s453 = ssub.s32 %s44, %s53
      %s454 = sor.u32 %s452, %s453
      %p455 = scmp.eq.s32.totalorder %s454, 0
      %s457 = sadd.s32 %s456, 1
      %s458 = scalar_select %p455, %s456, %s457
      %p461 = pneg %p455
      %p462 = scmp.eq.s32.totalorder %s35, 7
      %p463 = por %p461, %p462
      %p464 = scmp.ne.s32.totalorder %s456, %s459
      %p465 = scmp.eq.s32.totalorder %s35, 0
      %p466 = por %p464, %p465
      %p467 = scmp.ne.s32.totalorder %s456, %s459
      %p468 = scmp.eq.s32.totalorder %s40, 7
      %p469 = por %p467, %p468
      %p470 = scmp.ne.s32.totalorder %s459, %s460
      %p471 = scmp.eq.s32.totalorder %s40, 0
      %p472 = por %p470, %p471
      %p473 = scmp.ne.s32.totalorder %s459, %s460
      %p474 = scmp.eq.s32.totalorder %s41, 7
      %p475 = por %p473, %p474
      %p477 = scmp.ne.s32.totalorder %s460, %s476
      %p478 = scmp.eq.s32.totalorder %s41, 0
      %p479 = por %p477, %p478
      %s480 = ssub.s32 %s42, %s61
      %s481 = ssub.s32 %s44, %s53
      %s482 = sor.u32 %s480, %s481
      %p483 = scmp.eq.s32.totalorder %s482, 0
      %s485 = sadd.s32 %s484, 1
      %s486 = scalar_select %p483, %s484, %s485
      %p489 = pneg %p483
      %p490 = scmp.eq.s32.totalorder %s35, 7
      %p491 = por %p489, %p490
      %p492 = scmp.ne.s32.totalorder %s484, %s487
      %p493 = scmp.eq.s32.totalorder %s35, 0
      %p494 = por %p492, %p493
      %p495 = scmp.ne.s32.totalorder %s484, %s487
      %p496 = scmp.eq.s32.totalorder %s40, 7
      %p497 = por %p495, %p496
      %p498 = scmp.ne.s32.totalorder %s487, %s488
      %p499 = scmp.eq.s32.totalorder %s40, 0
      %p500 = por %p498, %p499
      %p501 = scmp.ne.s32.totalorder %s487, %s488
      %p502 = scmp.eq.s32.totalorder %s41, 7
      %p503 = por %p501, %p502
      %p505 = scmp.ne.s32.totalorder %s488, %s504
      %p506 = scmp.eq.s32.totalorder %s41, 0
      %p507 = por %p505, %p506
      %s508 = ssub.s32 %s42, %s61
      %s509 = ssub.s32 %s44, %s53
      %s510 = sor.u32 %s508, %s509
      %p511 = scmp.eq.s32.totalorder %s510, 0
      %s513 = sadd.s32 %s512, 1
      %s514 = scalar_select %p511, %s512, %s513
      %p517 = pneg %p511
      %p518 = scmp.eq.s32.totalorder %s35, 7
      %p519 = por %p517, %p518
      %p520 = scmp.ne.s32.totalorder %s512, %s515
      %p521 = scmp.eq.s32.totalorder %s35, 0
      %p522 = por %p520, %p521
      %p523 = scmp.ne.s32.totalorder %s512, %s515
      %p524 = scmp.eq.s32.totalorder %s40, 7
      %p525 = por %p523, %p524
      %p526 = scmp.ne.s32.totalorder %s515, %s516
      %p527 = scmp.eq.s32.totalorder %s40, 0
      %p528 = por %p526, %p527
      %p529 = scmp.ne.s32.totalorder %s515, %s516
      %p530 = scmp.eq.s32.totalorder %s41, 7
      %p531 = por %p529, %p530
      %p533 = scmp.ne.s32.totalorder %s516, %s532
      %p534 = scmp.eq.s32.totalorder %s41, 0
      %p535 = por %p533, %p534
      %s536 = ssub.s32 %s42, %s61
      %s537 = ssub.s32 %s43, %s57
      %s538 = sor.u32 %s536, %s537
      %p539 = scmp.eq.s32.totalorder %s538, 0
      %s541 = sadd.s32 %s540, 1
      %s542 = scalar_select %p539, %s540, %s541
      %p545 = pneg %p539
      %p546 = scmp.eq.s32.totalorder %s35, 7
      %p547 = por %p545, %p546
      %p548 = scmp.ne.s32.totalorder %s540, %s543
      %p549 = scmp.eq.s32.totalorder %s35, 0
      %p550 = por %p548, %p549
      %p551 = scmp.ne.s32.totalorder %s540, %s543
      %p552 = scmp.eq.s32.totalorder %s40, 7
      %p553 = por %p551, %p552
      %p554 = scmp.ne.s32.totalorder %s543, %s544
      %p555 = scmp.eq.s32.totalorder %s40, 0
      %p556 = por %p554, %p555
      %p557 = scmp.ne.s32.totalorder %s543, %s544
      %p558 = scmp.eq.s32.totalorder %s41, 7
      %p559 = por %p557, %p558
      %p561 = scmp.ne.s32.totalorder %s544, %s560
      %p562 = scmp.eq.s32.totalorder %s41, 0
      %p563 = por %p561, %p562
      %p564 = scmp.le.s32.totalorder 1, %s35
      %p565 = scmp.lt.s32.totalorder %s35, 9
      %p566 = pnand %p564, %p565
      %p567 = pneg %p566
      // Predicated region
      $region9: #{tpu_custom_call.1} parent=5 // pred_check
        _
      $region10: #{tpu_custom_call.1} parent=5 // pred_check_branch
        %569 = sbr.rel (%p566) target = $region12
      $region11: #{tpu_custom_call.1} parent=5 // pred_region
        %s570 = ssub.s32 %s35, 1
      $region12: #{tpu_custom_call.1} parent=5 // pred_fallthru
        _
      %p571 = scmp.lt.s32.totalorder %s35, 8
      // Predicated region
      $region13: #{tpu_custom_call.1} parent=5 // pred_check
        %p572 = pneg %p571
      $region14: #{tpu_custom_call.1} parent=5 // pred_check_branch
        %574 = sbr.rel (%p572) target = $region16
      $region15: #{tpu_custom_call.1} parent=5 // pred_region
        // Predicated region
        $region17: #{tpu_custom_call.1} parent=15 // pred_check
          %p575 = pneg %p74
        $region18: #{tpu_custom_call.1} parent=15 // pred_check_branch
          %577 = sbr.rel (%p575) target = $region20
        $region19: #{tpu_custom_call.1} parent=15 // pred_region
          %s578 = sand.u32 %s64, 1
          %s579 = scalar_lea.sflag [#allocation3], %s578
          %s580 = sand.u32 %s64, 1
          %s581 = scalar_lea.vmem [#allocation2], %s580
          %s583 = ssub.s32 16, 16
          %584 = vsyncadd %s579, %s583
          %s585 = smul.addr %s43, 16
          %s586 = scalar_lea.hbm %s0, %s585
          %s588 = sshll.u32 %s581, 4
          %s589 = int_to_ptr.vmem [resolvable:$true] %s588
          %591 = dma.hbm_to_vmem [thread:$0]  %s586, 16, %s589, %s579
        $region20: #{tpu_custom_call.1} parent=15 // pred_fallthru
          _
        // Predicated region
        $region21: #{tpu_custom_call.1} parent=15 // pred_check
          %p592 = pneg %p102
        $region22: #{tpu_custom_call.1} parent=15 // pred_check_branch
          %594 = sbr.rel (%p592) target = $region24
        $region23: #{tpu_custom_call.1} parent=15 // pred_region
          %s595 = sand.u32 %s35, 1
          %s596 = scalar_lea.sflag [#allocation6], %s595
          %s597 = sand.u32 %s92, 1
          %s598 = smul.addr %s597, 8
          %s599 = scalar_lea.vmem [#allocation5], %s598
          %s601 = ssub.s32 128, 128
          %602 = vsyncadd %s596, %s601
          %s603 = smul.addr %s42, 2
          %s604 = sadd.s32 %s43, %s603
          %s605 = smul.addr %s604, 128
          %s606 = scalar_lea.hbm %s1, %s605
          %s608 = sshll.u32 %s599, 4
          %s609 = int_to_ptr.vmem [resolvable:$true] %s608
          %611 = dma.hbm_to_vmem [thread:$0]  %s606, 128, %s609, %s596
        $region24: #{tpu_custom_call.1} parent=15 // pred_fallthru
          _
        // Predicated region
        $region25: #{tpu_custom_call.1} parent=15 // pred_check
          %p612 = pneg %p130
        $region26: #{tpu_custom_call.1} parent=15 // pred_check_branch
          %614 = sbr.rel (%p612) target = $region28
        $region27: #{tpu_custom_call.1} parent=15 // pred_region
          %s615 = sand.u32 %s35, 1
          %s616 = scalar_lea.sflag [#allocation6], %s615
          %s617 = sand.u32 %s120, 1
          %s618 = smul.addr %s617, 8
          %s619 = scalar_lea.vmem [#allocation7], %s618
          %s621 = ssub.s32 128, 128
          %622 = vsyncadd %s616, %s621
          %s623 = smul.addr %s42, 2
          %s624 = sadd.s32 %s43, %s623
          %s625 = smul.addr %s624, 128
          %s626 = scalar_lea.hbm %s2, %s625
          %s628 = sshll.u32 %s619, 4
          %s629 = int_to_ptr.vmem [resolvable:$true] %s628
          %631 = dma.hbm_to_vmem [thread:$0]  %s626, 128, %s629, %s616
        $region28: #{tpu_custom_call.1} parent=15 // pred_fallthru
          _
        // Predicated region
        $region29: #{tpu_custom_call.1} parent=15 // pred_check
          %p632 = pneg %p158
        $region30: #{tpu_custom_call.1} parent=15 // pred_check_branch
          %634 = sbr.rel (%p632) target = $region32
        $region31: #{tpu_custom_call.1} parent=15 // pred_region
          %p635 = scmp.lt.s32.totalorder %s42, 1
          %s636 = scalar_select %p635, %s42, 1
          %p637 = scmp.lt.s32.totalorder %s44, 1
          %s638 = scalar_select %p637, %s44, 1
          %s639 = smul.addr %s638, 4
          %s640 = smul.addr %s636, 8
          %s641 = sadd.s32 %s639, %s640
          %s642 = smul.addr %s641, 8
          %s643 = scalar_lea.vmem %s3, %s642
        $region32: #{tpu_custom_call.1} parent=15 // pred_fallthru
          _
        // Predicated region
        $region33: #{tpu_custom_call.1} parent=15 // pred_check
          %p644 = pneg %p186
        $region34: #{tpu_custom_call.1} parent=15 // pred_check_branch
          %646 = sbr.rel (%p644) target = $region36
        $region35: #{tpu_custom_call.1} parent=15 // pred_region
          %p647 = scmp.lt.s32.totalorder %s42, 1
          %s648 = scalar_select %p647, %s42, 1
          %p649 = scmp.lt.s32.totalorder %s44, 1
          %s650 = scalar_select %p649, %s44, 1
          %s651 = smul.addr %s648, 2
          %s652 = sadd.s32 %s650, %s651
          %s653 = scalar_lea.vmem %s4, %s652
        $region36: #{tpu_custom_call.1} parent=15 // pred_fallthru
          _
        // Predicated region
        $region37: #{tpu_custom_call.1} parent=15 // pred_check
          %p654 = pneg %p214
        $region38: #{tpu_custom_call.1} parent=15 // pred_check_branch
          %656 = sbr.rel (%p654) target = $region40
        $region39: #{tpu_custom_call.1} parent=15 // pred_region
          %p657 = scmp.lt.s32.totalorder %s42, 1
          %s658 = scalar_select %p657, %s42, 1
          %p659 = scmp.lt.s32.totalorder %s44, 1
          %s660 = scalar_select %p659, %s44, 1
          %s661 = smul.addr %s660, 4
          %s662 = smul.addr %s658, 8
          %s663 = sadd.s32 %s661, %s662
          %s664 = smul.addr %s663, 8
          %s665 = scalar_lea.vmem %s5, %s664
        $region40: #{tpu_custom_call.1} parent=15 // pred_fallthru
          _
        // Predicated region
        $region41: #{tpu_custom_call.1} parent=15 // pred_check
          %p666 = pneg %p242
        $region42: #{tpu_custom_call.1} parent=15 // pred_check_branch
          %668 = sbr.rel (%p666) target = $region44
        $region43: #{tpu_custom_call.1} parent=15 // pred_region
          %p669 = scmp.lt.s32.totalorder %s42, 1
          %s670 = scalar_select %p669, %s42, 1
          %p671 = scmp.lt.s32.totalorder %s44, 1
          %s672 = scalar_select %p671, %s44, 1
          %s673 = smul.addr %s670, 2
          %s674 = sadd.s32 %s672, %s673
          %s675 = scalar_lea.vmem %s6, %s674
        $region44: #{tpu_custom_call.1} parent=15 // pred_fallthru
          _
        // Predicated region
        $region45: #{tpu_custom_call.1} parent=15 // pred_check
          %p676 = pneg %p270
        $region46: #{tpu_custom_call.1} parent=15 // pred_check_branch
          %678 = sbr.rel (%p676) target = $region48
        $region47: #{tpu_custom_call.1} parent=15 // pred_region
          %p679 = scmp.lt.s32.totalorder %s42, 1
          %s680 = scalar_select %p679, %s42, 1
          %p681 = scmp.lt.s32.totalorder %s44, 1
          %s682 = scalar_select %p681, %s44, 1
          %s683 = smul.addr %s682, 4
          %s684 = smul.addr %s680, 8
          %s685 = sadd.s32 %s683, %s684
          %s686 = smul.addr %s685, 8
          %s687 = scalar_lea.vmem %s7, %s686
        $region48: #{tpu_custom_call.1} parent=15 // pred_fallthru
          _
        // Predicated region
        $region49: #{tpu_custom_call.1} parent=15 // pred_check
          %p688 = pneg %p298
        $region50: #{tpu_custom_call.1} parent=15 // pred_check_branch
          %690 = sbr.rel (%p688) target = $region52
        $region51: #{tpu_custom_call.1} parent=15 // pred_region
          %p691 = scmp.lt.s32.totalorder %s42, 1
          %s692 = scalar_select %p691, %s42, 1
          %p693 = scmp.lt.s32.totalorder %s44, 1
          %s694 = scalar_select %p693, %s44, 1
          %s695 = smul.addr %s692, 2
          %s696 = sadd.s32 %s694, %s695
          %s697 = scalar_lea.vmem %s8, %s696
        $region52: #{tpu_custom_call.1} parent=15 // pred_fallthru
          _
        // Predicated region
        $region53: #{tpu_custom_call.1} parent=15 // pred_check
          %p698 = pneg %p326
        $region54: #{tpu_custom_call.1} parent=15 // pred_check_branch
          %700 = sbr.rel (%p698) target = $region56
        $region55: #{tpu_custom_call.1} parent=15 // pred_region
          %s701 = sand.u32 %s316, 1
          %s702 = scalar_lea.sflag [#allocation9], %s701
          %s703 = sand.u32 %s316, 1
          %s704 = smul.addr %s703, 32
          %s705 = scalar_lea.vmem [#allocation8], %s704
          %s707 = ssub.s32 512, 512
          %708 = vsyncadd %s702, %s707
          %s709 = smul.addr %s44, 4
          %s710 = smul.addr %s42, 8
          %s711 = sadd.s32 %s709, %s710
          %s712 = smul.addr %s711, 128
          %s713 = scalar_lea.hbm %s9, %s712
          %s714 = sshll.u32 %s705, 4
          %s715 = int_to_ptr.vmem [resolvable:$true] %s714
          %720 = dma.hbm_to_vmem [thread:$0]  %s713, 512, %s715, %s702, 128, 128, 8
        $region56: #{tpu_custom_call.1} parent=15 // pred_fallthru
          _
        // Predicated region
        $region57: #{tpu_custom_call.1} parent=15 // pred_check
          %p721 = pneg %p354
        $region58: #{tpu_custom_call.1} parent=15 // pred_check_branch
          %723 = sbr.rel (%p721) target = $region60
        $region59: #{tpu_custom_call.1} parent=15 // pred_region
          %p724 = scmp.lt.s32.totalorder %s42, 1
          %s725 = scalar_select %p724, %s42, 1
          %p726 = scmp.lt.s32.totalorder %s44, 1
          %s727 = scalar_select %p726, %s44, 1
          %s728 = smul.addr %s725, 2
          %s729 = sadd.s32 %s727, %s728
          %s730 = scalar_lea.vmem %s10, %s729
        $region60: #{tpu_custom_call.1} parent=15 // pred_fallthru
          _
        // Predicated region
        $region61: #{tpu_custom_call.1} parent=15 // pred_check
          %p731 = pneg %p382
        $region62: #{tpu_custom_call.1} parent=15 // pred_check_branch
          %733 = sbr.rel (%p731) target = $region64
        $region63: #{tpu_custom_call.1} parent=15 // pred_region
          %p734 = scmp.lt.s32.totalorder %s42, 1
          %s735 = scalar_select %p734, %s42, 1
          %p736 = scmp.lt.s32.totalorder %s44, 1
          %s737 = scalar_select %p736, %s44, 1
          %s738 = smul.addr %s737, 8
          %s739 = smul.addr %s735, 16
          %s740 = sadd.s32 %s738, %s739
          %s741 = smul.addr %s740, 8
          %s742 = scalar_lea.vmem %s11, %s741
        $region64: #{tpu_custom_call.1} parent=15 // pred_fallthru
          _
        // Predicated region
        $region65: #{tpu_custom_call.1} parent=15 // pred_check
          %p743 = pneg %p410
        $region66: #{tpu_custom_call.1} parent=15 // pred_check_branch
          %745 = sbr.rel (%p743) target = $region68
        $region67: #{tpu_custom_call.1} parent=15 // pred_region
          %p746 = scmp.lt.s32.totalorder %s42, 1
          %s747 = scalar_select %p746, %s42, 1
          %p748 = scmp.lt.s32.totalorder %s44, 1
          %s749 = scalar_select %p748, %s44, 1
          %s750 = smul.addr %s747, 2
          %s751 = sadd.s32 %s749, %s750
          %s752 = scalar_lea.vmem %s12, %s751
        $region68: #{tpu_custom_call.1} parent=15 // pred_fallthru
          _
        // Predicated region
        $region69: #{tpu_custom_call.1} parent=15 // pred_check
          %p753 = pneg %p438
        $region70: #{tpu_custom_call.1} parent=15 // pred_check_branch
          %755 = sbr.rel (%p753) target = $region72
        $region71: #{tpu_custom_call.1} parent=15 // pred_region
          %p756 = scmp.lt.s32.totalorder %s42, 1
          %s757 = scalar_select %p756, %s42, 1
          %p758 = scmp.lt.s32.totalorder %s44, 1
          %s759 = scalar_select %p758, %s44, 1
          %s760 = smul.addr %s757, 2
          %s761 = sadd.s32 %s759, %s760
          %s762 = scalar_lea.vmem %s13, %s761
        $region72: #{tpu_custom_call.1} parent=15 // pred_fallthru
          _
        // Predicated region
        $region73: #{tpu_custom_call.1} parent=15 // pred_check
          %p763 = pneg %p466
        $region74: #{tpu_custom_call.1} parent=15 // pred_check_branch
          %765 = sbr.rel (%p763) target = $region76
        $region75: #{tpu_custom_call.1} parent=15 // pred_region
          %p766 = scmp.lt.s32.totalorder %s42, 1
          %s767 = scalar_select %p766, %s42, 1
          %p768 = scmp.lt.s32.totalorder %s44, 1
          %s769 = scalar_select %p768, %s44, 1
          %s770 = smul.addr %s767, 2
          %s771 = sadd.s32 %s769, %s770
          %s772 = scalar_lea.vmem %s14, %s771
        $region76: #{tpu_custom_call.1} parent=15 // pred_fallthru
          _
        // Predicated region
        $region77: #{tpu_custom_call.1} parent=15 // pred_check
          %p773 = pneg %p494
        $region78: #{tpu_custom_call.1} parent=15 // pred_check_branch
          %775 = sbr.rel (%p773) target = $region80
        $region79: #{tpu_custom_call.1} parent=15 // pred_region
          %p776 = scmp.lt.s32.totalorder %s42, 1
          %s777 = scalar_select %p776, %s42, 1
          %p778 = scmp.lt.s32.totalorder %s44, 1
          %s779 = scalar_select %p778, %s44, 1
          %s780 = smul.addr %s777, 2
          %s781 = sadd.s32 %s779, %s780
          %s782 = scalar_lea.vmem %s15, %s781
        $region80: #{tpu_custom_call.1} parent=15 // pred_fallthru
          _
        // Predicated region
        $region81: #{tpu_custom_call.1} parent=15 // pred_check
          %p783 = pneg %p522
        $region82: #{tpu_custom_call.1} parent=15 // pred_check_branch
          %785 = sbr.rel (%p783) target = $region84
        $region83: #{tpu_custom_call.1} parent=15 // pred_region
          %p786 = scmp.lt.s32.totalorder %s42, 1
          %s787 = scalar_select %p786, %s42, 1
          %p788 = scmp.lt.s32.totalorder %s44, 1
          %s789 = scalar_select %p788, %s44, 1
          %s790 = smul.addr %s787, 2
          %s791 = sadd.s32 %s789, %s790
          %s792 = scalar_lea.vmem %s16, %s791
        $region84: #{tpu_custom_call.1} parent=15 // pred_fallthru
          _
      $region16: #{tpu_custom_call.1} parent=5 // pred_fallthru
        _
      %p793 = scmp.le.s32.totalorder 1, %s35
      %p794 = scmp.lt.s32.totalorder %s35, 9
      %p795 = pnand %p793, %p794
      %p796 = pneg %p795
      // Predicated region
      $region85: #{tpu_custom_call.1} parent=5 // pred_check
        _
      $region86: #{tpu_custom_call.1} parent=5 // pred_check_branch
        %798 = sbr.rel (%p795) target = $region88
      $region87: #{tpu_custom_call.1} parent=5 // pred_region
        %s799 = ssub.s32 %s35, 1
        %s800 = sand.u32 %s67, 1
        %s801 = scalar_lea.sflag [#allocation3], %s800
        %s802 = sand.u32 %s67, 1
        %s803 = scalar_lea.vmem [#allocation2], %s802
        // Predicated region
        $region89: #{tpu_custom_call.1} parent=87 // pred_check
          %p804 = pneg %p80
        $region90: #{tpu_custom_call.1} parent=87 // pred_check_branch
          %806 = sbr.rel (%p804) target = $region92
        $region91: #{tpu_custom_call.1} parent=87 // pred_region
          %807 = dma.done %s801, 16
        $region92: #{tpu_custom_call.1} parent=87 // pred_fallthru
          _
        %s808 = sand.u32 %s40, 1
        %s809 = scalar_lea.sflag [#allocation6], %s808
        %s810 = sand.u32 %s95, 1
        %s811 = smul.addr %s810, 8
        %s812 = scalar_lea.vmem [#allocation5], %s811
        // Predicated region
        $region93: #{tpu_custom_call.1} parent=87 // pred_check
          %p813 = pneg %p108
        $region94: #{tpu_custom_call.1} parent=87 // pred_check_branch
          %815 = sbr.rel (%p813) target = $region96
        $region95: #{tpu_custom_call.1} parent=87 // pred_region
          %816 = dma.done %s809, 128
        $region96: #{tpu_custom_call.1} parent=87 // pred_fallthru
          _
        %s817 = sand.u32 %s40, 1
        %s818 = scalar_lea.sflag [#allocation6], %s817
        %s819 = sand.u32 %s123, 1
        %s820 = smul.addr %s819, 8
        %s821 = scalar_lea.vmem [#allocation7], %s820
        // Predicated region
        $region97: #{tpu_custom_call.1} parent=87 // pred_check
          %p822 = pneg %p136
        $region98: #{tpu_custom_call.1} parent=87 // pred_check_branch
          %824 = sbr.rel (%p822) target = $region100
        $region99: #{tpu_custom_call.1} parent=87 // pred_region
          %825 = dma.done %s818, 128
        $region100: #{tpu_custom_call.1} parent=87 // pred_fallthru
          _
        %s826 = sand.u32 %s319, 1
        %s827 = scalar_lea.sflag [#allocation9], %s826
        %s828 = sand.u32 %s319, 1
        %s829 = smul.addr %s828, 32
        %s830 = scalar_lea.vmem [#allocation8], %s829
        // Predicated region
        $region101: #{tpu_custom_call.1} parent=87 // pred_check
          %p831 = pneg %p332
        $region102: #{tpu_custom_call.1} parent=87 // pred_check_branch
          %833 = sbr.rel (%p831) target = $region104
        $region103: #{tpu_custom_call.1} parent=87 // pred_region
          %834 = dma.done %s827, 512
        $region104: #{tpu_custom_call.1} parent=87 // pred_fallthru
          _
        %s835 = sand.u32 %s67, 1
        %s836 = scalar_lea.sflag [#allocation3], %s835
        %s837 = sand.u32 %s67, 1
        %s838 = scalar_lea.vmem [#allocation2], %s837
        %p839 = pneg %p80
        %p840 = pneg %p77
        %s841 = sand.u32 %s40, 1
        %s842 = scalar_lea.sflag [#allocation6], %s841
        %s843 = sand.u32 %s95, 1
        %s844 = smul.addr %s843, 8
        %s845 = scalar_lea.vmem [#allocation5], %s844
        %p846 = pneg %p108
        %p847 = pneg %p105
        %s848 = sand.u32 %s40, 1
        %s849 = scalar_lea.sflag [#allocation6], %s848
        %s850 = sand.u32 %s123, 1
        %s851 = smul.addr %s850, 8
        %s852 = scalar_lea.vmem [#allocation7], %s851
        %p853 = pneg %p136
        %p854 = pneg %p133
        %p855 = scmp.lt.s32.totalorder %s45, 1
        %s856 = scalar_select %p855, %s45, 1
        %p857 = scmp.lt.s32.totalorder %s47, 1
        %s858 = scalar_select %p857, %s47, 1
        %s859 = smul.addr %s858, 4
        %s860 = smul.addr %s856, 8
        %s861 = sadd.s32 %s859, %s860
        %s862 = smul.addr %s861, 8
        %s863 = scalar_lea.vmem %s3, %s862
        %p864 = pneg %p164
        %p865 = pneg %p161
        %p866 = scmp.lt.s32.totalorder %s45, 1
        %s867 = scalar_select %p866, %s45, 1
        %p868 = scmp.lt.s32.totalorder %s47, 1
        %s869 = scalar_select %p868, %s47, 1
        %s870 = smul.addr %s867, 2
        %s871 = sadd.s32 %s869, %s870
        %s872 = scalar_lea.vmem %s4, %s871
        %p873 = pneg %p192
        %p874 = pneg %p189
        %p875 = scmp.lt.s32.totalorder %s45, 1
        %s876 = scalar_select %p875, %s45, 1
        %p877 = scmp.lt.s32.totalorder %s47, 1
        %s878 = scalar_select %p877, %s47, 1
        %s879 = smul.addr %s878, 4
        %s880 = smul.addr %s876, 8
        %s881 = sadd.s32 %s879, %s880
        %s882 = smul.addr %s881, 8
        %s883 = scalar_lea.vmem %s5, %s882
        %p884 = pneg %p220
        %p885 = pneg %p217
        %p886 = scmp.lt.s32.totalorder %s45, 1
        %s887 = scalar_select %p886, %s45, 1
        %p888 = scmp.lt.s32.totalorder %s47, 1
        %s889 = scalar_select %p888, %s47, 1
        %s890 = smul.addr %s887, 2
        %s891 = sadd.s32 %s889, %s890
        %s892 = scalar_lea.vmem %s6, %s891
        %p893 = pneg %p248
        %p894 = pneg %p245
        %p895 = scmp.lt.s32.totalorder %s45, 1
        %s896 = scalar_select %p895, %s45, 1
        %p897 = scmp.lt.s32.totalorder %s47, 1
        %s898 = scalar_select %p897, %s47, 1
        %s899 = smul.addr %s898, 4
        %s900 = smul.addr %s896, 8
        %s901 = sadd.s32 %s899, %s900
        %s902 = smul.addr %s901, 8
        %s903 = scalar_lea.vmem %s7, %s902
        %p904 = pneg %p276
        %p905 = pneg %p273
        %p906 = scmp.lt.s32.totalorder %s45, 1
        %s907 = scalar_select %p906, %s45, 1
        %p908 = scmp.lt.s32.totalorder %s47, 1
        %s909 = scalar_select %p908, %s47, 1
        %s910 = smul.addr %s907, 2
        %s911 = sadd.s32 %s909, %s910
        %s912 = scalar_lea.vmem %s8, %s911
        %p913 = pneg %p304
        %p914 = pneg %p301
        %s915 = sand.u32 %s319, 1
        %s916 = scalar_lea.sflag [#allocation9], %s915
        %s917 = sand.u32 %s319, 1
        %s918 = smul.addr %s917, 32
        %s919 = scalar_lea.vmem [#allocation8], %s918
        %p920 = pneg %p332
        %p921 = pneg %p329
        %p922 = scmp.lt.s32.totalorder %s45, 1
        %s923 = scalar_select %p922, %s45, 1
        %p924 = scmp.lt.s32.totalorder %s47, 1
        %s925 = scalar_select %p924, %s47, 1
        %s926 = smul.addr %s923, 2
        %s927 = sadd.s32 %s925, %s926
        %s928 = scalar_lea.vmem %s10, %s927
        %p929 = pneg %p360
        %p930 = pneg %p357
        %p931 = scmp.lt.s32.totalorder %s45, 1
        %s932 = scalar_select %p931, %s45, 1
        %p933 = scmp.lt.s32.totalorder %s47, 1
        %s934 = scalar_select %p933, %s47, 1
        %s935 = smul.addr %s934, 8
        %s936 = smul.addr %s932, 16
        %s937 = sadd.s32 %s935, %s936
        %s938 = smul.addr %s937, 8
        %s939 = scalar_lea.vmem %s11, %s938
        %p940 = pneg %p388
        %p941 = pneg %p385
        %p942 = scmp.lt.s32.totalorder %s45, 1
        %s943 = scalar_select %p942, %s45, 1
        %p944 = scmp.lt.s32.totalorder %s47, 1
        %s945 = scalar_select %p944, %s47, 1
        %s946 = smul.addr %s943, 2
        %s947 = sadd.s32 %s945, %s946
        %s948 = scalar_lea.vmem %s12, %s947
        %p949 = pneg %p416
        %p950 = pneg %p413
        %p951 = scmp.lt.s32.totalorder %s45, 1
        %s952 = scalar_select %p951, %s45, 1
        %p953 = scmp.lt.s32.totalorder %s47, 1
        %s954 = scalar_select %p953, %s47, 1
        %s955 = smul.addr %s952, 2
        %s956 = sadd.s32 %s954, %s955
        %s957 = scalar_lea.vmem %s13, %s956
        %p958 = pneg %p444
        %p959 = pneg %p441
        %p960 = scmp.lt.s32.totalorder %s45, 1
        %s961 = scalar_select %p960, %s45, 1
        %p962 = scmp.lt.s32.totalorder %s47, 1
        %s963 = scalar_select %p962, %s47, 1
        %s964 = smul.addr %s961, 2
        %s965 = sadd.s32 %s963, %s964
        %s966 = scalar_lea.vmem %s14, %s965
        %p967 = pneg %p472
        %p968 = pneg %p469
        %p969 = scmp.lt.s32.totalorder %s45, 1
        %s970 = scalar_select %p969, %s45, 1
        %p971 = scmp.lt.s32.totalorder %s47, 1
        %s972 = scalar_select %p971, %s47, 1
        %s973 = smul.addr %s970, 2
        %s974 = sadd.s32 %s972, %s973
        %s975 = scalar_lea.vmem %s15, %s974
        %p976 = pneg %p500
        %p977 = pneg %p497
        %p978 = scmp.lt.s32.totalorder %s45, 1
        %s979 = scalar_select %p978, %s45, 1
        %p980 = scmp.lt.s32.totalorder %s47, 1
        %s981 = scalar_select %p980, %s47, 1
        %s982 = smul.addr %s979, 2
        %s983 = sadd.s32 %s981, %s982
        %s984 = scalar_lea.vmem %s16, %s983
        %p985 = pneg %p528
        %p986 = pneg %p525
        %p987 = pneg %p556
        %p988 = pneg %p553
        %s989 = sand.u32 %s543, 1
        %s990 = scalar_lea.sflag [#allocation4], %s989
        %s991 = sand.u32 %s543, 1
        %s992 = smul.addr %s991, 8
        %s993 = scalar_lea.vmem [#allocation10], %s992
        %p994 = scmp.lt.s32.totalorder %s45, 1
        %s995 = scalar_select %p994, %s45, 1
        %p996 = scmp.lt.s32.totalorder %s47, 1
        %s997 = scalar_select %p996, %s47, 1
        %s998 = smul.addr %s997, 4
        %s999 = smul.addr %s995, 8
        %s1000 = sadd.s32 %s998, %s999
        %s1001 = smul.addr %s1000, 8
        %s1002 = scalar_lea.vmem %s3, %s1001
        %p1003 = scmp.lt.s32.totalorder %s45, 1
        %s1004 = scalar_select %p1003, %s45, 1
        %p1005 = scmp.lt.s32.totalorder %s47, 1
        %s1006 = scalar_select %p1005, %s47, 1
        %s1007 = smul.addr %s1004, 2
        %s1008 = sadd.s32 %s1006, %s1007
        %s1009 = scalar_lea.vmem %s4, %s1008
        %p1010 = scmp.lt.s32.totalorder %s45, 1
        %s1011 = scalar_select %p1010, %s45, 1
        %p1012 = scmp.lt.s32.totalorder %s47, 1
        %s1013 = scalar_select %p1012, %s47, 1
        %s1014 = smul.addr %s1013, 4
        %s1015 = smul.addr %s1011, 8
        %s1016 = sadd.s32 %s1014, %s1015
        %s1017 = smul.addr %s1016, 8
        %s1018 = scalar_lea.vmem %s5, %s1017
        %p1019 = scmp.lt.s32.totalorder %s45, 1
        %s1020 = scalar_select %p1019, %s45, 1
        %p1021 = scmp.lt.s32.totalorder %s47, 1
        %s1022 = scalar_select %p1021, %s47, 1
        %s1023 = smul.addr %s1020, 2
        %s1024 = sadd.s32 %s1022, %s1023
        %s1025 = scalar_lea.vmem %s6, %s1024
        %p1026 = scmp.lt.s32.totalorder %s45, 1
        %s1027 = scalar_select %p1026, %s45, 1
        %p1028 = scmp.lt.s32.totalorder %s47, 1
        %s1029 = scalar_select %p1028, %s47, 1
        %s1030 = smul.addr %s1029, 4
        %s1031 = smul.addr %s1027, 8
        %s1032 = sadd.s32 %s1030, %s1031
        %s1033 = smul.addr %s1032, 8
        %s1034 = scalar_lea.vmem %s7, %s1033
        %p1035 = scmp.lt.s32.totalorder %s45, 1
        %s1036 = scalar_select %p1035, %s45, 1
        %p1037 = scmp.lt.s32.totalorder %s47, 1
        %s1038 = scalar_select %p1037, %s47, 1
        %s1039 = smul.addr %s1036, 2
        %s1040 = sadd.s32 %s1038, %s1039
        %s1041 = scalar_lea.vmem %s8, %s1040
        %p1042 = scmp.lt.s32.totalorder %s45, 1
        %s1043 = scalar_select %p1042, %s45, 1
        %p1044 = scmp.lt.s32.totalorder %s47, 1
        %s1045 = scalar_select %p1044, %s47, 1
        %s1046 = smul.addr %s1043, 2
        %s1047 = sadd.s32 %s1045, %s1046
        %s1048 = scalar_lea.vmem %s10, %s1047
        %p1049 = scmp.lt.s32.totalorder %s45, 1
        %s1050 = scalar_select %p1049, %s45, 1
        %p1051 = scmp.lt.s32.totalorder %s47, 1
        %s1052 = scalar_select %p1051, %s47, 1
        %s1053 = smul.addr %s1052, 8
        %s1054 = smul.addr %s1050, 16
        %s1055 = sadd.s32 %s1053, %s1054
        %s1056 = smul.addr %s1055, 8
        %s1057 = scalar_lea.vmem %s11, %s1056
        %p1058 = scmp.lt.s32.totalorder %s45, 1
        %s1059 = scalar_select %p1058, %s45, 1
        %p1060 = scmp.lt.s32.totalorder %s47, 1
        %s1061 = scalar_select %p1060, %s47, 1
        %s1062 = smul.addr %s1059, 2
        %s1063 = sadd.s32 %s1061, %s1062
        %s1064 = scalar_lea.vmem %s12, %s1063
        %p1065 = scmp.lt.s32.totalorder %s45, 1
        %s1066 = scalar_select %p1065, %s45, 1
        %p1067 = scmp.lt.s32.totalorder %s47, 1
        %s1068 = scalar_select %p1067, %s47, 1
        %s1069 = smul.addr %s1066, 2
        %s1070 = sadd.s32 %s1068, %s1069
        %s1071 = scalar_lea.vmem %s13, %s1070
        %p1072 = scmp.lt.s32.totalorder %s45, 1
        %s1073 = scalar_select %p1072, %s45, 1
        %p1074 = scmp.lt.s32.totalorder %s47, 1
        %s1075 = scalar_select %p1074, %s47, 1
        %s1076 = smul.addr %s1073, 2
        %s1077 = sadd.s32 %s1075, %s1076
        %s1078 = scalar_lea.vmem %s14, %s1077
        %p1079 = scmp.lt.s32.totalorder %s45, 1
        %s1080 = scalar_select %p1079, %s45, 1
        %p1081 = scmp.lt.s32.totalorder %s47, 1
        %s1082 = scalar_select %p1081, %s47, 1
        %s1083 = smul.addr %s1080, 2
        %s1084 = sadd.s32 %s1082, %s1083
        %s1085 = scalar_lea.vmem %s15, %s1084
        %p1086 = scmp.lt.s32.totalorder %s45, 1
        %s1087 = scalar_select %p1086, %s45, 1
        %p1088 = scmp.lt.s32.totalorder %s47, 1
        %s1089 = scalar_select %p1088, %s47, 1
        %s1090 = smul.addr %s1087, 2
        %s1091 = sadd.s32 %s1089, %s1090
        %s1092 = scalar_lea.vmem %s16, %s1091
        %p1093 = scmp.eq.s32.totalorder %s47, 0
        // Predicated region
        $region105: #{tpu_custom_call.1} parent=87 // pred_check
          %p1094 = pneg %p1093
        $region106: #{tpu_custom_call.1} parent=87 // pred_check_branch
          %1096 = sbr.rel (%p1094) target = $region108
        $region107: #{tpu_custom_call.1} parent=87 // pred_region
          %v1097 = vld [vmem:[%s812] sm:$0xff]
          %vm1098 = vcmask 261120
          %1099 = vst.msk [vmem:[%s993] sm:$0xff] %vm1098, %v1097
        $region108: #{tpu_custom_call.1} parent=87 // pred_fallthru
          _
        %v1100 = vld [vmem:[%s993] sm:$0xff]
        %v1101 = vld [vmem:[%s821] sm:$0xff]
        %v1102 = vld [vmem:[%s803] sm:$0x1]
        %v1103 = vadd.f32 %v1100, %v1101
        %v1104 = vld [vmem:[%s1002] sm:$0xff]
        %v1105 = vld [vmem:[%s1002 + $0x8] sm:$0xff]
        %v1106 = vld [vmem:[%s1002 + $0x10] sm:$0xff]
        %v1107 = vld [vmem:[%s1002 + $0x18] sm:$0xff]
        %v1108 = vld [vmem:[%s1009] sm:$0x1]
        %v1110 = vlaneseq
        %v1111 = vshrl.u32 %v1110, 7
        %v1112 = vsub.s32 0, %v1111
        %v1113 = vrot.slane %v1108, %v1112
        %vm1115 = vcmask 261120
        %v1117 = vsel %vm1115, %v1103, 0
        %1119 = vmatprep.subr.mxu0 0.0
        %1120 = vmatpush1.msra.mxu0 %v1104
        %1121 = vmatprep.subr.mxu0 0.0
        %1122 = vmatpush1.msra.mxu0 %v1105
        %1123 = vmatprep.subr.mxu0 0.0
        %1124 = vmatpush1.msra.mxu0 %v1106
        %1125 = vmatprep.subr.mxu0 0.0
        %1126 = vmatpush1.msra.mxu0 %v1107
        %1127 = vmatprep.subr.mxu0 0.0
        %1128 = vmatpush1.msra.mxu0 0.0
        %1129 = vmatprep.subr.mxu0 0.0
        %1130 = vmatpush1.msra.mxu0 0.0
        %1131 = vmatprep.subr.mxu0 0.0
        %1132 = vmatpush1.msra.mxu0 0.0
        %1133 = vmatprep.subr.mxu0 0.0
        %1134 = vmatpush1.msra.mxu0 0.0
        %1135 = vmatprep.subr.mxu0 0.0
        %1136 = vmatpush1.msra.mxu0 0.0
        %1137 = vmatprep.subr.mxu0 0.0
        %1138 = vmatpush1.msra.mxu0 0.0
        %1139 = vmatprep.subr.mxu0 0.0
        %1140 = vmatpush1.msra.mxu0 0.0
        %1141 = vmatprep.subr.mxu0 0.0
        %1142 = vmatpush1.msra.mxu0 0.0
        %1143 = vmatprep.subr.mxu0 0.0
        %1144 = vmatpush1.msra.mxu0 0.0
        %1145 = vmatprep.subr.mxu0 0.0
        %1146 = vmatpush1.msra.mxu0 0.0
        %1147 = vmatprep.subr.mxu0 0.0
        %1148 = vmatpush1.msra.mxu0 0.0
        %1149 = vmatprep.subr.mxu0 0.0
        %1150 = vmatpush1.msra.mxu0 0.0
        %1151 = vmatprep.subr.mxu0 0.0
        %1152 = vmatpush1.msra.mxu0 0.0
        %1153 = vmatprep.subr.mxu0 0.0
        %1154 = vmatpush1.msra.mxu0 0.0
        %1155 = vmatprep.subr.mxu0 0.0
        %1156 = vmatpush1.msra.mxu0 0.0
        %1157 = vmatprep.subr.mxu0 0.0
        %1158 = vmatpush1.msra.mxu0 0.0
        %1159 = vmatprep.subr.mxu0 0.0
        %1160 = vmatpush1.msra.mxu0 0.0
        %1161 = vmatprep.subr.mxu0 0.0
        %1162 = vmatpush1.msra.mxu0 0.0
        %1163 = vmatprep.subr.mxu0 0.0
        %1164 = vmatpush1.msra.mxu0 0.0
        %1165 = vmatprep.subr.mxu0 0.0
        %1166 = vmatpush1.msra.mxu0 0.0
        %1167 = vmatprep.subr.mxu0 0.0
        %1168 = vmatpush1.msra.mxu0 0.0
        %1169 = vmatprep.subr.mxu0 0.0
        %1170 = vmatpush1.msra.mxu0 0.0
        %1171 = vmatprep.subr.mxu0 0.0
        %1172 = vmatpush1.msra.mxu0 0.0
        %1173 = vmatprep.subr.mxu0 0.0
        %1174 = vmatpush1.msra.mxu0 0.0
        %1175 = vmatprep.subr.mxu0 0.0
        %1176 = vmatpush1.msra.mxu0 0.0
        %1177 = vmatprep.subr.mxu0 0.0
        %1178 = vmatpush1.msra.mxu0 0.0
        %1179 = vmatprep.subr.mxu0 0.0
        %1180 = vmatpush1.msra.mxu0 0.0
        %1181 = vmatprep.subr.mxu0 0.0
        %1182 = vmatpush1.msra.mxu0 0.0
        %1183 = vmatprep.mubr.f32.mxu0 0.0
        %1184 = vmatmul.mubr.f32.gmra.mrb[0].mxu0 %v1117
        %v1185 = vpop.f32.mrb[0].mxu0
        %v1186 = vadd.f32 %v1113, %v1185
        %v1187 = vpop.f32.mrb[0].mxu0
        %1188 = vdwg.mxu0
        %v1189 = vld [vmem:[%s1018] sm:$0xff]
        %v1190 = vld [vmem:[%s1018 + $0x8] sm:$0xff]
        %v1191 = vld [vmem:[%s1018 + $0x10] sm:$0xff]
        %v1192 = vld [vmem:[%s1018 + $0x18] sm:$0xff]
        %v1193 = vld [vmem:[%s1025] sm:$0x1]
        %v1195 = vlaneseq
        %v1196 = vshrl.u32 %v1195, 7
        %v1197 = vsub.s32 0, %v1196
        %v1198 = vrot.slane %v1193, %v1197
        %v1201 = vsel %vm1115, %v1100, 0
        %1203 = vmatprep.subr.mxu0 0.0
        %1204 = vmatpush1.msra.mxu0 %v1189
        %1205 = vmatprep.subr.mxu0 0.0
        %1206 = vmatpush1.msra.mxu0 %v1190
        %1207 = vmatprep.subr.mxu0 0.0
        %1208 = vmatpush1.msra.mxu0 %v1191
        %1209 = vmatprep.subr.mxu0 0.0
        %1210 = vmatpush1.msra.mxu0 %v1192
        %1211 = vmatprep.subr.mxu0 0.0
        %1212 = vmatpush1.msra.mxu0 0.0
        %1213 = vmatprep.subr.mxu0 0.0
        %1214 = vmatpush1.msra.mxu0 0.0
        %1215 = vmatprep.subr.mxu0 0.0
        %1216 = vmatpush1.msra.mxu0 0.0
        %1217 = vmatprep.subr.mxu0 0.0
        %1218 = vmatpush1.msra.mxu0 0.0
        %1219 = vmatprep.subr.mxu0 0.0
        %1220 = vmatpush1.msra.mxu0 0.0
        %1221 = vmatprep.subr.mxu0 0.0
        %1222 = vmatpush1.msra.mxu0 0.0
        %1223 = vmatprep.subr.mxu0 0.0
        %1224 = vmatpush1.msra.mxu0 0.0
        %1225 = vmatprep.subr.mxu0 0.0
        %1226 = vmatpush1.msra.mxu0 0.0
        %1227 = vmatprep.subr.mxu0 0.0
        %1228 = vmatpush1.msra.mxu0 0.0
        %1229 = vmatprep.subr.mxu0 0.0
        %1230 = vmatpush1.msra.mxu0 0.0
        %1231 = vmatprep.subr.mxu0 0.0
        %1232 = vmatpush1.msra.mxu0 0.0
        %1233 = vmatprep.subr.mxu0 0.0
        %1234 = vmatpush1.msra.mxu0 0.0
        %1235 = vmatprep.subr.mxu0 0.0
        %1236 = vmatpush1.msra.mxu0 0.0
        %1237 = vmatprep.subr.mxu0 0.0
        %1238 = vmatpush1.msra.mxu0 0.0
        %1239 = vmatprep.subr.mxu0 0.0
        %1240 = vmatpush1.msra.mxu0 0.0
        %1241 = vmatprep.subr.mxu0 0.0
        %1242 = vmatpush1.msra.mxu0 0.0
        %1243 = vmatprep.subr.mxu0 0.0
        %1244 = vmatpush1.msra.mxu0 0.0
        %1245 = vmatprep.subr.mxu0 0.0
        %1246 = vmatpush1.msra.mxu0 0.0
        %1247 = vmatprep.subr.mxu0 0.0
        %1248 = vmatpush1.msra.mxu0 0.0
        %1249 = vmatprep.subr.mxu0 0.0
        %1250 = vmatpush1.msra.mxu0 0.0
        %1251 = vmatprep.subr.mxu0 0.0
        %1252 = vmatpush1.msra.mxu0 0.0
        %1253 = vmatprep.subr.mxu0 0.0
        %1254 = vmatpush1.msra.mxu0 0.0
        %1255 = vmatprep.subr.mxu0 0.0
        %1256 = vmatpush1.msra.mxu0 0.0
        %1257 = vmatprep.subr.mxu0 0.0
        %1258 = vmatpush1.msra.mxu0 0.0
        %1259 = vmatprep.subr.mxu0 0.0
        %1260 = vmatpush1.msra.mxu0 0.0
        %1261 = vmatprep.subr.mxu0 0.0
        %1262 = vmatpush1.msra.mxu0 0.0
        %1263 = vmatprep.subr.mxu0 0.0
        %1264 = vmatpush1.msra.mxu0 0.0
        %1265 = vmatprep.subr.mxu0 0.0
        %1266 = vmatpush1.msra.mxu0 0.0
        %1267 = vmatprep.mubr.f32.mxu0 0.0
        %1268 = vmatmul.mubr.f32.gmra.mrb[0].mxu0 %v1201
        %v1269 = vpop.f32.mrb[0].mxu0
        %v1270 = vadd.f32 %v1198, %v1269
        %v1271 = vpop.f32.mrb[0].mxu0
        %1272 = vdwg.mxu0
        %1274 = vrot.lane.b32.xlu0 %v1186, 120
        %v1275 = vpop.permute.xlu0 %1274
        %1277 = vrot.lane.b32.xlu0 %v1186, 112
        %v1278 = vpop.permute.xlu0 %1277
        %1280 = vrot.lane.b32.xlu0 %v1186, 104
        %v1281 = vpop.permute.xlu0 %1280
        %v1283 = vcombine.low %v1186, %v1278
        %v1284 = vcombine.high %v1186, %v1278
        %v1286 = vunpack.c.l.s4 1983009808
        %v1287 = vunpack.c.0.s8 %v1286
        %v1288 = vlaneseq
        %v1289 = vshrl.u32 %v1288, 7
        %v1290 = vsub.s32 %v1287, %v1289
        %v1291 = vrot.slane %v1283, %v1290
        %v1293 = vunpack.c.l.s4 1983009808
        %v1294 = vunpack.c.0.s8 %v1293
        %v1295 = vlaneseq
        %v1296 = vshrl.u32 %v1295, 7
        %v1297 = vsub.s32 %v1294, %v1296
        %v1298 = vrot.slane %v1284, %v1297
        %v1299 = vcombine.low %v1275, %v1281
        %v1300 = vcombine.high %v1275, %v1281
        %v1302 = vunpack.c.l.s4 1983009808
        %v1303 = vunpack.c.0.s8 %v1302
        %v1304 = vlaneseq
        %v1305 = vshrl.u32 %v1304, 7
        %v1306 = vsub.s32 %v1303, %v1305
        %v1307 = vrot.slane %v1299, %v1306
        %v1309 = vunpack.c.l.s4 1983009808
        %v1310 = vunpack.c.0.s8 %v1309
        %v1311 = vlaneseq
        %v1312 = vshrl.u32 %v1311, 7
        %v1313 = vsub.s32 %v1310, %v1312
        %v1314 = vrot.slane %v1300, %v1313
        %v1315 = vcombine.low %v1291, %v1307
        %v1316 = vcombine.high %v1291, %v1307
        %v1318 = vunpack.c.l.s4 1934713408
        %v1319 = vunpack.c.0.s8 %v1318
        %v1320 = vlaneseq
        %v1321 = vshrl.u32 %v1320, 7
        %v1322 = vsub.s32 %v1319, %v1321
        %v1323 = vrot.slane %v1315, %v1322
        %v1325 = vunpack.c.l.s4 1934713408
        %v1326 = vunpack.c.0.s8 %v1325
        %v1327 = vlaneseq
        %v1328 = vshrl.u32 %v1327, 7
        %v1329 = vsub.s32 %v1326, %v1328
        %v1330 = vrot.slane %v1316, %v1329
        %v1331 = vcombine.low %v1298, %v1314
        %v1332 = vcombine.high %v1298, %v1314
        %v1334 = vunpack.c.l.s4 1934713408
        %v1335 = vunpack.c.0.s8 %v1334
        %v1336 = vlaneseq
        %v1337 = vshrl.u32 %v1336, 7
        %v1338 = vsub.s32 %v1335, %v1337
        %v1339 = vrot.slane %v1331, %v1338
        %v1341 = vunpack.c.l.s4 1934713408
        %v1342 = vunpack.c.0.s8 %v1341
        %v1343 = vlaneseq
        %v1344 = vshrl.u32 %v1343, 7
        %v1345 = vsub.s32 %v1342, %v1344
        %v1346 = vrot.slane %v1332, %v1345
        %v1347 = vcombine.high %v1323, 0.0
        %v1348 = vcombine.high %v1330, 0.0
        %v1349 = vcombine.high %v1339, 0.0
        %v1350 = vcombine.high %v1346, 0.0
        %v1351 = vcombine.low %v1323, %v1330
        %v1353 = vunpack.c.l.s4 1983009808
        %v1354 = vunpack.c.0.s8 %v1353
        %v1355 = vlaneseq
        %v1356 = vshrl.u32 %v1355, 7
        %v1357 = vsub.s32 %v1354, %v1356
        %v1358 = vrot.slane %v1351, %v1357
        %v1359 = vcombine.low %v1347, %v1348
        %v1361 = vunpack.c.l.s4 1983009808
        %v1362 = vunpack.c.0.s8 %v1361
        %v1363 = vlaneseq
        %v1364 = vshrl.u32 %v1363, 7
        %v1365 = vsub.s32 %v1362, %v1364
        %v1366 = vrot.slane %v1359, %v1365
        %v1367 = vcombine.low %v1339, %v1346
        %v1369 = vunpack.c.l.s4 1983009808
        %v1370 = vunpack.c.0.s8 %v1369
        %v1371 = vlaneseq
        %v1372 = vshrl.u32 %v1371, 7
        %v1373 = vsub.s32 %v1370, %v1372
        %v1374 = vrot.slane %v1367, %v1373
        %v1375 = vcombine.low %v1349, %v1350
        %v1377 = vunpack.c.l.s4 1983009808
        %v1378 = vunpack.c.0.s8 %v1377
        %v1379 = vlaneseq
        %v1380 = vshrl.u32 %v1379, 7
        %v1381 = vsub.s32 %v1378, %v1380
        %v1382 = vrot.slane %v1375, %v1381
        %v1383 = vcombine.low %v1358, %v1366
        %v1384 = vcombine.high %v1358, %v1366
        %v1386 = vunpack.c.l.s4 1934713408
        %v1387 = vunpack.c.0.s8 %v1386
        %v1388 = vlaneseq
        %v1389 = vshrl.u32 %v1388, 7
        %v1390 = vsub.s32 %v1387, %v1389
        %v1391 = vrot.slane %v1383, %v1390
        %v1393 = vunpack.c.l.s4 1934713408
        %v1394 = vunpack.c.0.s8 %v1393
        %v1395 = vlaneseq
        %v1396 = vshrl.u32 %v1395, 7
        %v1397 = vsub.s32 %v1394, %v1396
        %v1398 = vrot.slane %v1384, %v1397
        %v1399 = vcombine.low %v1374, %v1382
        %v1400 = vcombine.high %v1374, %v1382
        %v1402 = vunpack.c.l.s4 1934713408
        %v1403 = vunpack.c.0.s8 %v1402
        %v1404 = vlaneseq
        %v1405 = vshrl.u32 %v1404, 7
        %v1406 = vsub.s32 %v1403, %v1405
        %v1407 = vrot.slane %v1399, %v1406
        %v1409 = vunpack.c.l.s4 1934713408
        %v1410 = vunpack.c.0.s8 %v1409
        %v1411 = vlaneseq
        %v1412 = vshrl.u32 %v1411, 7
        %v1413 = vsub.s32 %v1410, %v1412
        %v1414 = vrot.slane %v1400, %v1413
        %v1415 = vcombine.low %v1391, %v1407
        %v1416 = vcombine.high %v1391, %v1407
        %v1417 = vcombine.low %v1398, %v1414
        %v1418 = vcombine.high %v1398, %v1414
        %1419 = vrot.lane.b32.xlu0 %v1186, 96
        %v1420 = vpop.permute.xlu0 %1419
        %1421 = vrot.lane.b32.xlu0 %v1275, 96
        %v1422 = vpop.permute.xlu0 %1421
        %1423 = vrot.lane.b32.xlu0 %v1278, 96
        %v1424 = vpop.permute.xlu0 %1423
        %1425 = vrot.lane.b32.xlu0 %v1281, 96
        %v1426 = vpop.permute.xlu0 %1425
        %v1431 = vcombine.low %v1420, %v1424
        %v1432 = vcombine.high %v1420, %v1424
        %v1434 = vunpack.c.l.s4 1983009808
        %v1435 = vunpack.c.0.s8 %v1434
        %v1436 = vlaneseq
        %v1437 = vshrl.u32 %v1436, 7
        %v1438 = vsub.s32 %v1435, %v1437
        %v1439 = vrot.slane %v1431, %v1438
        %v1441 = vunpack.c.l.s4 1983009808
        %v1442 = vunpack.c.0.s8 %v1441
        %v1443 = vlaneseq
        %v1444 = vshrl.u32 %v1443, 7
        %v1445 = vsub.s32 %v1442, %v1444
        %v1446 = vrot.slane %v1432, %v1445
        %v1447 = vcombine.low %v1422, %v1426
        %v1448 = vcombine.high %v1422, %v1426
        %v1450 = vunpack.c.l.s4 1983009808
        %v1451 = vunpack.c.0.s8 %v1450
        %v1452 = vlaneseq
        %v1453 = vshrl.u32 %v1452, 7
        %v1454 = vsub.s32 %v1451, %v1453
        %v1455 = vrot.slane %v1447, %v1454
        %v1457 = vunpack.c.l.s4 1983009808
        %v1458 = vunpack.c.0.s8 %v1457
        %v1459 = vlaneseq
        %v1460 = vshrl.u32 %v1459, 7
        %v1461 = vsub.s32 %v1458, %v1460
        %v1462 = vrot.slane %v1448, %v1461
        %v1463 = vcombine.low %v1439, %v1455
        %v1464 = vcombine.high %v1439, %v1455
        %v1466 = vunpack.c.l.s4 1934713408
        %v1467 = vunpack.c.0.s8 %v1466
        %v1468 = vlaneseq
        %v1469 = vshrl.u32 %v1468, 7
        %v1470 = vsub.s32 %v1467, %v1469
        %v1471 = vrot.slane %v1463, %v1470
        %v1473 = vunpack.c.l.s4 1934713408
        %v1474 = vunpack.c.0.s8 %v1473
        %v1475 = vlaneseq
        %v1476 = vshrl.u32 %v1475, 7
        %v1477 = vsub.s32 %v1474, %v1476
        %v1478 = vrot.slane %v1464, %v1477
        %v1479 = vcombine.low %v1446, %v1462
        %v1480 = vcombine.high %v1446, %v1462
        %v1482 = vunpack.c.l.s4 1934713408
        %v1483 = vunpack.c.0.s8 %v1482
        %v1484 = vlaneseq
        %v1485 = vshrl.u32 %v1484, 7
        %v1486 = vsub.s32 %v1483, %v1485
        %v1487 = vrot.slane %v1479, %v1486
        %v1489 = vunpack.c.l.s4 1934713408
        %v1490 = vunpack.c.0.s8 %v1489
        %v1491 = vlaneseq
        %v1492 = vshrl.u32 %v1491, 7
        %v1493 = vsub.s32 %v1490, %v1492
        %v1494 = vrot.slane %v1480, %v1493
        %v1495 = vcombine.high %v1471, 0.0
        %v1496 = vcombine.high %v1478, 0.0
        %v1497 = vcombine.high %v1487, 0.0
        %v1498 = vcombine.high %v1494, 0.0
        %v1499 = vcombine.low %v1471, %v1478
        %v1501 = vunpack.c.l.s4 1983009808
        %v1502 = vunpack.c.0.s8 %v1501
        %v1503 = vlaneseq
        %v1504 = vshrl.u32 %v1503, 7
        %v1505 = vsub.s32 %v1502, %v1504
        %v1506 = vrot.slane %v1499, %v1505
        %v1507 = vcombine.low %v1495, %v1496
        %v1509 = vunpack.c.l.s4 1983009808
        %v1510 = vunpack.c.0.s8 %v1509
        %v1511 = vlaneseq
        %v1512 = vshrl.u32 %v1511, 7
        %v1513 = vsub.s32 %v1510, %v1512
        %v1514 = vrot.slane %v1507, %v1513
        %v1515 = vcombine.low %v1487, %v1494
        %v1517 = vunpack.c.l.s4 1983009808
        %v1518 = vunpack.c.0.s8 %v1517
        %v1519 = vlaneseq
        %v1520 = vshrl.u32 %v1519, 7
        %v1521 = vsub.s32 %v1518, %v1520
        %v1522 = vrot.slane %v1515, %v1521
        %v1523 = vcombine.low %v1497, %v1498
        %v1525 = vunpack.c.l.s4 1983009808
        %v1526 = vunpack.c.0.s8 %v1525
        %v1527 = vlaneseq
        %v1528 = vshrl.u32 %v1527, 7
        %v1529 = vsub.s32 %v1526, %v1528
        %v1530 = vrot.slane %v1523, %v1529
        %v1531 = vcombine.low %v1506, %v1514
        %v1532 = vcombine.high %v1506, %v1514
        %v1534 = vunpack.c.l.s4 1934713408
        %v1535 = vunpack.c.0.s8 %v1534
        %v1536 = vlaneseq
        %v1537 = vshrl.u32 %v1536, 7
        %v1538 = vsub.s32 %v1535, %v1537
        %v1539 = vrot.slane %v1531, %v1538
        %v1541 = vunpack.c.l.s4 1934713408
        %v1542 = vunpack.c.0.s8 %v1541
        %v1543 = vlaneseq
        %v1544 = vshrl.u32 %v1543, 7
        %v1545 = vsub.s32 %v1542, %v1544
        %v1546 = vrot.slane %v1532, %v1545
        %v1547 = vcombine.low %v1522, %v1530
        %v1548 = vcombine.high %v1522, %v1530
        %v1550 = vunpack.c.l.s4 1934713408
        %v1551 = vunpack.c.0.s8 %v1550
        %v1552 = vlaneseq
        %v1553 = vshrl.u32 %v1552, 7
        %v1554 = vsub.s32 %v1551, %v1553
        %v1555 = vrot.slane %v1547, %v1554
        %v1557 = vunpack.c.l.s4 1934713408
        %v1558 = vunpack.c.0.s8 %v1557
        %v1559 = vlaneseq
        %v1560 = vshrl.u32 %v1559, 7
        %v1561 = vsub.s32 %v1558, %v1560
        %v1562 = vrot.slane %v1548, %v1561
        %v1563 = vcombine.low %v1539, %v1555
        %v1564 = vcombine.high %v1539, %v1555
        %v1565 = vcombine.low %v1546, %v1562
        %v1566 = vcombine.high %v1546, %v1562
        %1568 = vrot.lane.b32.xlu0 %v1270, 120
        %v1569 = vpop.permute.xlu0 %1568
        %1571 = vrot.lane.b32.xlu0 %v1270, 112
        %v1572 = vpop.permute.xlu0 %1571
        %1574 = vrot.lane.b32.xlu0 %v1270, 104
        %v1575 = vpop.permute.xlu0 %1574
        %v1577 = vcombine.low %v1270, %v1572
        %v1578 = vcombine.high %v1270, %v1572
        %v1580 = vunpack.c.l.s4 1983009808
        %v1581 = vunpack.c.0.s8 %v1580
        %v1582 = vlaneseq
        %v1583 = vshrl.u32 %v1582, 7
        %v1584 = vsub.s32 %v1581, %v1583
        %v1585 = vrot.slane %v1577, %v1584
        %v1587 = vunpack.c.l.s4 1983009808
        %v1588 = vunpack.c.0.s8 %v1587
        %v1589 = vlaneseq
        %v1590 = vshrl.u32 %v1589, 7
        %v1591 = vsub.s32 %v1588, %v1590
        %v1592 = vrot.slane %v1578, %v1591
        %v1593 = vcombine.low %v1569, %v1575
        %v1594 = vcombine.high %v1569, %v1575
        %v1596 = vunpack.c.l.s4 1983009808
        %v1597 = vunpack.c.0.s8 %v1596
        %v1598 = vlaneseq
        %v1599 = vshrl.u32 %v1598, 7
        %v1600 = vsub.s32 %v1597, %v1599
        %v1601 = vrot.slane %v1593, %v1600
        %v1603 = vunpack.c.l.s4 1983009808
        %v1604 = vunpack.c.0.s8 %v1603
        %v1605 = vlaneseq
        %v1606 = vshrl.u32 %v1605, 7
        %v1607 = vsub.s32 %v1604, %v1606
        %v1608 = vrot.slane %v1594, %v1607
        %v1609 = vcombine.low %v1585, %v1601
        %v1610 = vcombine.high %v1585, %v1601
        %v1612 = vunpack.c.l.s4 1934713408
        %v1613 = vunpack.c.0.s8 %v1612
        %v1614 = vlaneseq
        %v1615 = vshrl.u32 %v1614, 7
        %v1616 = vsub.s32 %v1613, %v1615
        %v1617 = vrot.slane %v1609, %v1616
        %v1619 = vunpack.c.l.s4 1934713408
        %v1620 = vunpack.c.0.s8 %v1619
        %v1621 = vlaneseq
        %v1622 = vshrl.u32 %v1621, 7
        %v1623 = vsub.s32 %v1620, %v1622
        %v1624 = vrot.slane %v1610, %v1623
        %v1625 = vcombine.low %v1592, %v1608
        %v1626 = vcombine.high %v1592, %v1608
        %v1628 = vunpack.c.l.s4 1934713408
        %v1629 = vunpack.c.0.s8 %v1628
        %v1630 = vlaneseq
        %v1631 = vshrl.u32 %v1630, 7
        %v1632 = vsub.s32 %v1629, %v1631
        %v1633 = vrot.slane %v1625, %v1632
        %v1635 = vunpack.c.l.s4 1934713408
        %v1636 = vunpack.c.0.s8 %v1635
        %v1637 = vlaneseq
        %v1638 = vshrl.u32 %v1637, 7
        %v1639 = vsub.s32 %v1636, %v1638
        %v1640 = vrot.slane %v1626, %v1639
        %v1641 = vcombine.high %v1617, 0.0
        %v1642 = vcombine.high %v1624, 0.0
        %v1643 = vcombine.high %v1633, 0.0
        %v1644 = vcombine.high %v1640, 0.0
        %v1645 = vcombine.low %v1617, %v1624
        %v1647 = vunpack.c.l.s4 1983009808
        %v1648 = vunpack.c.0.s8 %v1647
        %v1649 = vlaneseq
        %v1650 = vshrl.u32 %v1649, 7
        %v1651 = vsub.s32 %v1648, %v1650
        %v1652 = vrot.slane %v1645, %v1651
        %v1653 = vcombine.low %v1641, %v1642
        %v1655 = vunpack.c.l.s4 1983009808
        %v1656 = vunpack.c.0.s8 %v1655
        %v1657 = vlaneseq
        %v1658 = vshrl.u32 %v1657, 7
        %v1659 = vsub.s32 %v1656, %v1658
        %v1660 = vrot.slane %v1653, %v1659
        %v1661 = vcombine.low %v1633, %v1640
        %v1663 = vunpack.c.l.s4 1983009808
        %v1664 = vunpack.c.0.s8 %v1663
        %v1665 = vlaneseq
        %v1666 = vshrl.u32 %v1665, 7
        %v1667 = vsub.s32 %v1664, %v1666
        %v1668 = vrot.slane %v1661, %v1667
        %v1669 = vcombine.low %v1643, %v1644
        %v1671 = vunpack.c.l.s4 1983009808
        %v1672 = vunpack.c.0.s8 %v1671
        %v1673 = vlaneseq
        %v1674 = vshrl.u32 %v1673, 7
        %v1675 = vsub.s32 %v1672, %v1674
        %v1676 = vrot.slane %v1669, %v1675
        %v1677 = vcombine.low %v1652, %v1660
        %v1678 = vcombine.high %v1652, %v1660
        %v1680 = vunpack.c.l.s4 1934713408
        %v1681 = vunpack.c.0.s8 %v1680
        %v1682 = vlaneseq
        %v1683 = vshrl.u32 %v1682, 7
        %v1684 = vsub.s32 %v1681, %v1683
        %v1685 = vrot.slane %v1677, %v1684
        %v1687 = vunpack.c.l.s4 1934713408
        %v1688 = vunpack.c.0.s8 %v1687
        %v1689 = vlaneseq
        %v1690 = vshrl.u32 %v1689, 7
        %v1691 = vsub.s32 %v1688, %v1690
        %v1692 = vrot.slane %v1678, %v1691
        %v1693 = vcombine.low %v1668, %v1676
        %v1694 = vcombine.high %v1668, %v1676
        %v1696 = vunpack.c.l.s4 1934713408
        %v1697 = vunpack.c.0.s8 %v1696
        %v1698 = vlaneseq
        %v1699 = vshrl.u32 %v1698, 7
        %v1700 = vsub.s32 %v1697, %v1699
        %v1701 = vrot.slane %v1693, %v1700
        %v1703 = vunpack.c.l.s4 1934713408
        %v1704 = vunpack.c.0.s8 %v1703
        %v1705 = vlaneseq
        %v1706 = vshrl.u32 %v1705, 7
        %v1707 = vsub.s32 %v1704, %v1706
        %v1708 = vrot.slane %v1694, %v1707
        %v1709 = vcombine.low %v1685, %v1701
        %v1710 = vcombine.high %v1685, %v1701
        %v1711 = vcombine.low %v1692, %v1708
        %v1712 = vcombine.high %v1692, %v1708
        %vm1713 = vcmask 64512
        %v1715 = vsel %vm1713, %v1415, 0
        %v1718 = vsel %vm1713, %v1563, 0
        %1720 = vmatprep.subr.mxu0 0.0
        %1721 = vmatpush1.xpose.msra.mxu0 %v1718
        %1722 = vmatprep.subr.mxu0 0.0
        %1723 = vmatpush1.xpose.msra.mxu0 0.0
        %1724 = vmatprep.subr.mxu0 0.0
        %1725 = vmatpush1.xpose.msra.mxu0 0.0
        %1726 = vmatprep.subr.mxu0 0.0
        %1727 = vmatpush1.xpose.msra.mxu0 0.0
        %1728 = vmatprep.subr.mxu0 0.0
        %1729 = vmatpush1.xpose.msra.mxu0 0.0
        %1730 = vmatprep.subr.mxu0 0.0
        %1731 = vmatpush1.xpose.msra.mxu0 0.0
        %1732 = vmatprep.subr.mxu0 0.0
        %1733 = vmatpush1.xpose.msra.mxu0 0.0
        %1734 = vmatprep.subr.mxu0 0.0
        %1735 = vmatpush1.xpose.msra.mxu0 0.0
        %1736 = vmatprep.subr.mxu0 0.0
        %1737 = vmatpush1.xpose.msra.mxu0 0.0
        %1738 = vmatprep.subr.mxu0 0.0
        %1739 = vmatpush1.xpose.msra.mxu0 0.0
        %1740 = vmatprep.subr.mxu0 0.0
        %1741 = vmatpush1.xpose.msra.mxu0 0.0
        %1742 = vmatprep.subr.mxu0 0.0
        %1743 = vmatpush1.xpose.msra.mxu0 0.0
        %1744 = vmatprep.subr.mxu0 0.0
        %1745 = vmatpush1.xpose.msra.mxu0 0.0
        %1746 = vmatprep.subr.mxu0 0.0
        %1747 = vmatpush1.xpose.msra.mxu0 0.0
        %1748 = vmatprep.subr.mxu0 0.0
        %1749 = vmatpush1.xpose.msra.mxu0 0.0
        %1750 = vmatprep.subr.mxu0 0.0
        %1751 = vmatpush1.xpose.msra.mxu0 0.0
        %1752 = vmatprep.subr.mxu0 0.0
        %1753 = vmatpush1.xpose.msra.mxu0 0.0
        %1754 = vmatprep.subr.mxu0 0.0
        %1755 = vmatpush1.xpose.msra.mxu0 0.0
        %1756 = vmatprep.subr.mxu0 0.0
        %1757 = vmatpush1.xpose.msra.mxu0 0.0
        %1758 = vmatprep.subr.mxu0 0.0
        %1759 = vmatpush1.xpose.msra.mxu0 0.0
        %1760 = vmatprep.subr.mxu0 0.0
        %1761 = vmatpush1.xpose.msra.mxu0 0.0
        %1762 = vmatprep.subr.mxu0 0.0
        %1763 = vmatpush1.xpose.msra.mxu0 0.0
        %1764 = vmatprep.subr.mxu0 0.0
        %1765 = vmatpush1.xpose.msra.mxu0 0.0
        %1766 = vmatprep.subr.mxu0 0.0
        %1767 = vmatpush1.xpose.msra.mxu0 0.0
        %1768 = vmatprep.subr.mxu0 0.0
        %1769 = vmatpush1.xpose.msra.mxu0 0.0
        %1770 = vmatprep.subr.mxu0 0.0
        %1771 = vmatpush1.xpose.msra.mxu0 0.0
        %1772 = vmatprep.subr.mxu0 0.0
        %1773 = vmatpush1.xpose.msra.mxu0 0.0
        %1774 = vmatprep.subr.mxu0 0.0
        %1775 = vmatpush1.xpose.msra.mxu0 0.0
        %1776 = vmatprep.subr.mxu0 0.0
        %1777 = vmatpush1.xpose.msra.mxu0 0.0
        %1778 = vmatprep.subr.mxu0 0.0
        %1779 = vmatpush1.xpose.msra.mxu0 0.0
        %1780 = vmatprep.subr.mxu0 0.0
        %1781 = vmatpush1.xpose.msra.mxu0 0.0
        %1782 = vmatprep.subr.mxu0 0.0
        %1783 = vmatpush1.xpose.msra.mxu0 0.0
        %1784 = vmatprep.mubr.f32.mxu0 0.0
        %1785 = vmatmul.mubr.f32.gmra.mrb[0].mxu0 %v1715
        %v1786 = vpop.f32.mrb[0].mxu0
        %v1787 = vadd.f32 0.0, %v1786
        %v1788 = vpop.f32.mrb[0].mxu0
        %1789 = vdwg.mxu0
        %v1791 = vsel %vm1713, %v1416, 0
        %v1794 = vsel %vm1713, %v1564, 0
        %1796 = vmatprep.subr.mxu0 0.0
        %1797 = vmatpush1.xpose.msra.mxu0 %v1794
        %1798 = vmatprep.subr.mxu0 0.0
        %1799 = vmatpush1.xpose.msra.mxu0 0.0
        %1800 = vmatprep.subr.mxu0 0.0
        %1801 = vmatpush1.xpose.msra.mxu0 0.0
        %1802 = vmatprep.subr.mxu0 0.0
        %1803 = vmatpush1.xpose.msra.mxu0 0.0
        %1804 = vmatprep.subr.mxu0 0.0
        %1805 = vmatpush1.xpose.msra.mxu0 0.0
        %1806 = vmatprep.subr.mxu0 0.0
        %1807 = vmatpush1.xpose.msra.mxu0 0.0
        %1808 = vmatprep.subr.mxu0 0.0
        %1809 = vmatpush1.xpose.msra.mxu0 0.0
        %1810 = vmatprep.subr.mxu0 0.0
        %1811 = vmatpush1.xpose.msra.mxu0 0.0
        %1812 = vmatprep.subr.mxu0 0.0
        %1813 = vmatpush1.xpose.msra.mxu0 0.0
        %1814 = vmatprep.subr.mxu0 0.0
        %1815 = vmatpush1.xpose.msra.mxu0 0.0
        %1816 = vmatprep.subr.mxu0 0.0
        %1817 = vmatpush1.xpose.msra.mxu0 0.0
        %1818 = vmatprep.subr.mxu0 0.0
        %1819 = vmatpush1.xpose.msra.mxu0 0.0
        %1820 = vmatprep.subr.mxu0 0.0
        %1821 = vmatpush1.xpose.msra.mxu0 0.0
        %1822 = vmatprep.subr.mxu0 0.0
        %1823 = vmatpush1.xpose.msra.mxu0 0.0
        %1824 = vmatprep.subr.mxu0 0.0
        %1825 = vmatpush1.xpose.msra.mxu0 0.0
        %1826 = vmatprep.subr.mxu0 0.0
        %1827 = vmatpush1.xpose.msra.mxu0 0.0
        %1828 = vmatprep.subr.mxu0 0.0
        %1829 = vmatpush1.xpose.msra.mxu0 0.0
        %1830 = vmatprep.subr.mxu0 0.0
        %1831 = vmatpush1.xpose.msra.mxu0 0.0
        %1832 = vmatprep.subr.mxu0 0.0
        %1833 = vmatpush1.xpose.msra.mxu0 0.0
        %1834 = vmatprep.subr.mxu0 0.0
        %1835 = vmatpush1.xpose.msra.mxu0 0.0
        %1836 = vmatprep.subr.mxu0 0.0
        %1837 = vmatpush1.xpose.msra.mxu0 0.0
        %1838 = vmatprep.subr.mxu0 0.0
        %1839 = vmatpush1.xpose.msra.mxu0 0.0
        %1840 = vmatprep.subr.mxu0 0.0
        %1841 = vmatpush1.xpose.msra.mxu0 0.0
        %1842 = vmatprep.subr.mxu0 0.0
        %1843 = vmatpush1.xpose.msra.mxu0 0.0
        %1844 = vmatprep.subr.mxu0 0.0
        %1845 = vmatpush1.xpose.msra.mxu0 0.0
        %1846 = vmatprep.subr.mxu0 0.0
        %1847 = vmatpush1.xpose.msra.mxu0 0.0
        %1848 = vmatprep.subr.mxu0 0.0
        %1849 = vmatpush1.xpose.msra.mxu0 0.0
        %1850 = vmatprep.subr.mxu0 0.0
        %1851 = vmatpush1.xpose.msra.mxu0 0.0
        %1852 = vmatprep.subr.mxu0 0.0
        %1853 = vmatpush1.xpose.msra.mxu0 0.0
        %1854 = vmatprep.subr.mxu0 0.0
        %1855 = vmatpush1.xpose.msra.mxu0 0.0
        %1856 = vmatprep.subr.mxu0 0.0
        %1857 = vmatpush1.xpose.msra.mxu0 0.0
        %1858 = vmatprep.subr.mxu0 0.0
        %1859 = vmatpush1.xpose.msra.mxu0 0.0
        %1860 = vmatprep.mubr.f32.mxu0 0.0
        %1861 = vmatmul.mubr.f32.gmra.mrb[0].mxu0 %v1791
        %v1862 = vpop.f32.mrb[0].mxu0
        %v1863 = vadd.f32 0.0, %v1862
        %v1864 = vpop.f32.mrb[0].mxu0
        %1865 = vdwg.mxu0
        %v1867 = vsel %vm1713, %v1417, 0
        %v1870 = vsel %vm1713, %v1565, 0
        %1872 = vmatprep.subr.mxu0 0.0
        %1873 = vmatpush1.xpose.msra.mxu0 %v1870
        %1874 = vmatprep.subr.mxu0 0.0
        %1875 = vmatpush1.xpose.msra.mxu0 0.0
        %1876 = vmatprep.subr.mxu0 0.0
        %1877 = vmatpush1.xpose.msra.mxu0 0.0
        %1878 = vmatprep.subr.mxu0 0.0
        %1879 = vmatpush1.xpose.msra.mxu0 0.0
        %1880 = vmatprep.subr.mxu0 0.0
        %1881 = vmatpush1.xpose.msra.mxu0 0.0
        %1882 = vmatprep.subr.mxu0 0.0
        %1883 = vmatpush1.xpose.msra.mxu0 0.0
        %1884 = vmatprep.subr.mxu0 0.0
        %1885 = vmatpush1.xpose.msra.mxu0 0.0
        %1886 = vmatprep.subr.mxu0 0.0
        %1887 = vmatpush1.xpose.msra.mxu0 0.0
        %1888 = vmatprep.subr.mxu0 0.0
        %1889 = vmatpush1.xpose.msra.mxu0 0.0
        %1890 = vmatprep.subr.mxu0 0.0
        %1891 = vmatpush1.xpose.msra.mxu0 0.0
        %1892 = vmatprep.subr.mxu0 0.0
        %1893 = vmatpush1.xpose.msra.mxu0 0.0
        %1894 = vmatprep.subr.mxu0 0.0
        %1895 = vmatpush1.xpose.msra.mxu0 0.0
        %1896 = vmatprep.subr.mxu0 0.0
        %1897 = vmatpush1.xpose.msra.mxu0 0.0
        %1898 = vmatprep.subr.mxu0 0.0
        %1899 = vmatpush1.xpose.msra.mxu0 0.0
        %1900 = vmatprep.subr.mxu0 0.0
        %1901 = vmatpush1.xpose.msra.mxu0 0.0
        %1902 = vmatprep.subr.mxu0 0.0
        %1903 = vmatpush1.xpose.msra.mxu0 0.0
        %1904 = vmatprep.subr.mxu0 0.0
        %1905 = vmatpush1.xpose.msra.mxu0 0.0
        %1906 = vmatprep.subr.mxu0 0.0
        %1907 = vmatpush1.xpose.msra.mxu0 0.0
        %1908 = vmatprep.subr.mxu0 0.0
        %1909 = vmatpush1.xpose.msra.mxu0 0.0
        %1910 = vmatprep.subr.mxu0 0.0
        %1911 = vmatpush1.xpose.msra.mxu0 0.0
        %1912 = vmatprep.subr.mxu0 0.0
        %1913 = vmatpush1.xpose.msra.mxu0 0.0
        %1914 = vmatprep.subr.mxu0 0.0
        %1915 = vmatpush1.xpose.msra.mxu0 0.0
        %1916 = vmatprep.subr.mxu0 0.0
        %1917 = vmatpush1.xpose.msra.mxu0 0.0
        %1918 = vmatprep.subr.mxu0 0.0
        %1919 = vmatpush1.xpose.msra.mxu0 0.0
        %1920 = vmatprep.subr.mxu0 0.0
        %1921 = vmatpush1.xpose.msra.mxu0 0.0
        %1922 = vmatprep.subr.mxu0 0.0
        %1923 = vmatpush1.xpose.msra.mxu0 0.0
        %1924 = vmatprep.subr.mxu0 0.0
        %1925 = vmatpush1.xpose.msra.mxu0 0.0
        %1926 = vmatprep.subr.mxu0 0.0
        %1927 = vmatpush1.xpose.msra.mxu0 0.0
        %1928 = vmatprep.subr.mxu0 0.0
        %1929 = vmatpush1.xpose.msra.mxu0 0.0
        %1930 = vmatprep.subr.mxu0 0.0
        %1931 = vmatpush1.xpose.msra.mxu0 0.0
        %1932 = vmatprep.subr.mxu0 0.0
        %1933 = vmatpush1.xpose.msra.mxu0 0.0
        %1934 = vmatprep.subr.mxu0 0.0
        %1935 = vmatpush1.xpose.msra.mxu0 0.0
        %1936 = vmatprep.mubr.f32.mxu0 0.0
        %1937 = vmatmul.mubr.f32.gmra.mrb[0].mxu0 %v1867
        %v1938 = vpop.f32.mrb[0].mxu0
        %v1939 = vadd.f32 0.0, %v1938
        %v1940 = vpop.f32.mrb[0].mxu0
        %1941 = vdwg.mxu0
        %v1943 = vsel %vm1713, %v1418, 0
        %v1946 = vsel %vm1713, %v1566, 0
        %1948 = vmatprep.subr.mxu0 0.0
        %1949 = vmatpush1.xpose.msra.mxu0 %v1946
        %1950 = vmatprep.subr.mxu0 0.0
        %1951 = vmatpush1.xpose.msra.mxu0 0.0
        %1952 = vmatprep.subr.mxu0 0.0
        %1953 = vmatpush1.xpose.msra.mxu0 0.0
        %1954 = vmatprep.subr.mxu0 0.0
        %1955 = vmatpush1.xpose.msra.mxu0 0.0
        %1956 = vmatprep.subr.mxu0 0.0
        %1957 = vmatpush1.xpose.msra.mxu0 0.0
        %1958 = vmatprep.subr.mxu0 0.0
        %1959 = vmatpush1.xpose.msra.mxu0 0.0
        %1960 = vmatprep.subr.mxu0 0.0
        %1961 = vmatpush1.xpose.msra.mxu0 0.0
        %1962 = vmatprep.subr.mxu0 0.0
        %1963 = vmatpush1.xpose.msra.mxu0 0.0
        %1964 = vmatprep.subr.mxu0 0.0
        %1965 = vmatpush1.xpose.msra.mxu0 0.0
        %1966 = vmatprep.subr.mxu0 0.0
        %1967 = vmatpush1.xpose.msra.mxu0 0.0
        %1968 = vmatprep.subr.mxu0 0.0
        %1969 = vmatpush1.xpose.msra.mxu0 0.0
        %1970 = vmatprep.subr.mxu0 0.0
        %1971 = vmatpush1.xpose.msra.mxu0 0.0
        %1972 = vmatprep.subr.mxu0 0.0
        %1973 = vmatpush1.xpose.msra.mxu0 0.0
        %1974 = vmatprep.subr.mxu0 0.0
        %1975 = vmatpush1.xpose.msra.mxu0 0.0
        %1976 = vmatprep.subr.mxu0 0.0
        %1977 = vmatpush1.xpose.msra.mxu0 0.0
        %1978 = vmatprep.subr.mxu0 0.0
        %1979 = vmatpush1.xpose.msra.mxu0 0.0
        %1980 = vmatprep.subr.mxu0 0.0
        %1981 = vmatpush1.xpose.msra.mxu0 0.0
        %1982 = vmatprep.subr.mxu0 0.0
        %1983 = vmatpush1.xpose.msra.mxu0 0.0
        %1984 = vmatprep.subr.mxu0 0.0
        %1985 = vmatpush1.xpose.msra.mxu0 0.0
        %1986 = vmatprep.subr.mxu0 0.0
        %1987 = vmatpush1.xpose.msra.mxu0 0.0
        %1988 = vmatprep.subr.mxu0 0.0
        %1989 = vmatpush1.xpose.msra.mxu0 0.0
        %1990 = vmatprep.subr.mxu0 0.0
        %1991 = vmatpush1.xpose.msra.mxu0 0.0
        %1992 = vmatprep.subr.mxu0 0.0
        %1993 = vmatpush1.xpose.msra.mxu0 0.0
        %1994 = vmatprep.subr.mxu0 0.0
        %1995 = vmatpush1.xpose.msra.mxu0 0.0
        %1996 = vmatprep.subr.mxu0 0.0
        %1997 = vmatpush1.xpose.msra.mxu0 0.0
        %1998 = vmatprep.subr.mxu0 0.0
        %1999 = vmatpush1.xpose.msra.mxu0 0.0
        %2000 = vmatprep.subr.mxu0 0.0
        %2001 = vmatpush1.xpose.msra.mxu0 0.0
        %2002 = vmatprep.subr.mxu0 0.0
        %2003 = vmatpush1.xpose.msra.mxu0 0.0
        %2004 = vmatprep.subr.mxu0 0.0
        %2005 = vmatpush1.xpose.msra.mxu0 0.0
        %2006 = vmatprep.subr.mxu0 0.0
        %2007 = vmatpush1.xpose.msra.mxu0 0.0
        %2008 = vmatprep.subr.mxu0 0.0
        %2009 = vmatpush1.xpose.msra.mxu0 0.0
        %2010 = vmatprep.subr.mxu0 0.0
        %2011 = vmatpush1.xpose.msra.mxu0 0.0
        %2012 = vmatprep.mubr.f32.mxu0 0.0
        %2013 = vmatmul.mubr.f32.gmra.mrb[0].mxu0 %v1943
        %v2014 = vpop.f32.mrb[0].mxu0
        %v2015 = vadd.f32 0.0, %v2014
        %v2016 = vpop.f32.mrb[0].mxu0
        %2017 = vdwg.mxu0
        %v2018 = vmul.f32 %v1787, 0.35355338
        %v2019 = vmul.f32 %v1863, 0.35355338
        %v2020 = vmul.f32 %v1939, 0.35355338
        %v2021 = vmul.f32 %v2015, 0.35355338
        %v2023 = vlaneseq
        %v2024 = vshrl.u32 %v2023, 7
        %v2025 = vsub.s32 0, %v2024
        %v2026 = vrot.slane %v1102, %v2025
        %v2028 = vadd.f32 %v2018, %v2026
        %v2029 = vadd.f32 %v2019, %v2026
        %v2030 = vadd.f32 %v2020, %v2026
        %v2031 = vadd.f32 %v2021, %v2026
        %v2032 = vsel %vm1713, %v2028, -inf
        %2033 = vmax.xlane.f32.xlu0 %v2032
        %v2034 = vpop.xlane.xlu0 %2033
        %v2035 = vsel %vm1713, %v2029, -inf
        %2036 = vmax.xlane.f32.xlu0 %v2035
        %v2037 = vpop.xlane.xlu0 %2036
        %v2038 = vsel %vm1713, %v2030, -inf
        %2039 = vmax.xlane.f32.xlu0 %v2038
        %v2040 = vpop.xlane.xlu0 %2039
        %v2041 = vsel %vm1713, %v2031, -inf
        %2042 = vmax.xlane.f32.xlu0 %v2041
        %v2043 = vpop.xlane.xlu0 %2042
        %v2044 = vsub.f32 %v2028, %v2034
        %v2045 = vsub.f32 %v2029, %v2037
        %v2046 = vsub.f32 %v2030, %v2040
        %v2047 = vsub.f32 %v2031, %v2043
        %v2048 = vmul.f32 %v2044, 1.442695
        %v2049 = vpow.pop %v2048
        %v2050 = vmul.f32 %v2045, 1.442695
        %v2051 = vpow.pop %v2050
        %v2052 = vmul.f32 %v2046, 1.442695
        %v2053 = vpow.pop %v2052
        %v2054 = vmul.f32 %v2047, 1.442695
        %v2055 = vpow.pop %v2054
        %v2056 = vsel %vm1713, %v2049, 0.0
        %2057 = vadd.xlane.f32.xlu0 %v2056
        %v2058 = vpop.xlane.xlu0 %2057
        %v2059 = vsel %vm1713, %v2051, 0.0
        %2060 = vadd.xlane.f32.xlu0 %v2059
        %v2061 = vpop.xlane.xlu0 %2060
        %v2062 = vsel %vm1713, %v2053, 0.0
        %2063 = vadd.xlane.f32.xlu0 %v2062
        %v2064 = vpop.xlane.xlu0 %2063
        %v2065 = vsel %vm1713, %v2055, 0.0
        %2066 = vadd.xlane.f32.xlu0 %v2065
        %v2067 = vpop.xlane.xlu0 %2066
        %v2068 = vrcp.pop %v2058
        %v2069 = vrcp.pop %v2061
        %v2070 = vrcp.pop %v2064
        %v2071 = vrcp.pop %v2067
        %v2072 = vmul.f32 %v2049, %v2068
        %v2073 = vmul.f32 %v2051, %v2069
        %v2074 = vmul.f32 %v2053, %v2070
        %v2075 = vmul.f32 %v2055, %v2071
        %v2077 = vsel %vm1713, %v2072, 0
        %2079 = vmatprep.subr.mxu0 0.0
        %2080 = vmatpush1.msra.mxu0 %v1709
        %2081 = vmatprep.subr.mxu0 0.0
        %2082 = vmatpush1.msra.mxu0 0.0
        %2083 = vmatprep.subr.mxu0 0.0
        %2084 = vmatpush1.msra.mxu0 0.0
        %2085 = vmatprep.subr.mxu0 0.0
        %2086 = vmatpush1.msra.mxu0 0.0
        %2087 = vmatprep.subr.mxu0 0.0
        %2088 = vmatpush1.msra.mxu0 0.0
        %2089 = vmatprep.subr.mxu0 0.0
        %2090 = vmatpush1.msra.mxu0 0.0
        %2091 = vmatprep.subr.mxu0 0.0
        %2092 = vmatpush1.msra.mxu0 0.0
        %2093 = vmatprep.subr.mxu0 0.0
        %2094 = vmatpush1.msra.mxu0 0.0
        %2095 = vmatprep.subr.mxu0 0.0
        %2096 = vmatpush1.msra.mxu0 0.0
        %2097 = vmatprep.subr.mxu0 0.0
        %2098 = vmatpush1.msra.mxu0 0.0
        %2099 = vmatprep.subr.mxu0 0.0
        %2100 = vmatpush1.msra.mxu0 0.0
        %2101 = vmatprep.subr.mxu0 0.0
        %2102 = vmatpush1.msra.mxu0 0.0
        %2103 = vmatprep.subr.mxu0 0.0
        %2104 = vmatpush1.msra.mxu0 0.0
        %2105 = vmatprep.subr.mxu0 0.0
        %2106 = vmatpush1.msra.mxu0 0.0
        %2107 = vmatprep.subr.mxu0 0.0
        %2108 = vmatpush1.msra.mxu0 0.0
        %2109 = vmatprep.subr.mxu0 0.0
        %2110 = vmatpush1.msra.mxu0 0.0
        %2111 = vmatprep.subr.mxu0 0.0
        %2112 = vmatpush1.msra.mxu0 0.0
        %2113 = vmatprep.subr.mxu0 0.0
        %2114 = vmatpush1.msra.mxu0 0.0
        %2115 = vmatprep.subr.mxu0 0.0
        %2116 = vmatpush1.msra.mxu0 0.0
        %2117 = vmatprep.subr.mxu0 0.0
        %2118 = vmatpush1.msra.mxu0 0.0
        %2119 = vmatprep.subr.mxu0 0.0
        %2120 = vmatpush1.msra.mxu0 0.0
        %2121 = vmatprep.subr.mxu0 0.0
        %2122 = vmatpush1.msra.mxu0 0.0
        %2123 = vmatprep.subr.mxu0 0.0
        %2124 = vmatpush1.msra.mxu0 0.0
        %2125 = vmatprep.subr.mxu0 0.0
        %2126 = vmatpush1.msra.mxu0 0.0
        %2127 = vmatprep.subr.mxu0 0.0
        %2128 = vmatpush1.msra.mxu0 0.0
        %2129 = vmatprep.subr.mxu0 0.0
        %2130 = vmatpush1.msra.mxu0 0.0
        %2131 = vmatprep.subr.mxu0 0.0
        %2132 = vmatpush1.msra.mxu0 0.0
        %2133 = vmatprep.subr.mxu0 0.0
        %2134 = vmatpush1.msra.mxu0 0.0
        %2135 = vmatprep.subr.mxu0 0.0
        %2136 = vmatpush1.msra.mxu0 0.0
        %2137 = vmatprep.subr.mxu0 0.0
        %2138 = vmatpush1.msra.mxu0 0.0
        %2139 = vmatprep.subr.mxu0 0.0
        %2140 = vmatpush1.msra.mxu0 0.0
        %2141 = vmatprep.subr.mxu0 0.0
        %2142 = vmatpush1.msra.mxu0 0.0
        %2143 = vmatprep.mubr.f32.mxu0 0.0
        %2144 = vmatmul.mubr.f32.gmra.mrb[0].mxu0 %v2077
        %v2145 = vpop.f32.mrb[0].mxu0
        %v2146 = vadd.f32 0.0, %v2145
        %v2147 = vpop.f32.mrb[0].mxu0
        %2148 = vdwg.mxu0
        %v2150 = vsel %vm1713, %v2073, 0
        %2152 = vmatprep.subr.mxu0 0.0
        %2153 = vmatpush1.msra.mxu0 %v1710
        %2154 = vmatprep.subr.mxu0 0.0
        %2155 = vmatpush1.msra.mxu0 0.0
        %2156 = vmatprep.subr.mxu0 0.0
        %2157 = vmatpush1.msra.mxu0 0.0
        %2158 = vmatprep.subr.mxu0 0.0
        %2159 = vmatpush1.msra.mxu0 0.0
        %2160 = vmatprep.subr.mxu0 0.0
        %2161 = vmatpush1.msra.mxu0 0.0
        %2162 = vmatprep.subr.mxu0 0.0
        %2163 = vmatpush1.msra.mxu0 0.0
        %2164 = vmatprep.subr.mxu0 0.0
        %2165 = vmatpush1.msra.mxu0 0.0
        %2166 = vmatprep.subr.mxu0 0.0
        %2167 = vmatpush1.msra.mxu0 0.0
        %2168 = vmatprep.subr.mxu0 0.0
        %2169 = vmatpush1.msra.mxu0 0.0
        %2170 = vmatprep.subr.mxu0 0.0
        %2171 = vmatpush1.msra.mxu0 0.0
        %2172 = vmatprep.subr.mxu0 0.0
        %2173 = vmatpush1.msra.mxu0 0.0
        %2174 = vmatprep.subr.mxu0 0.0
        %2175 = vmatpush1.msra.mxu0 0.0
        %2176 = vmatprep.subr.mxu0 0.0
        %2177 = vmatpush1.msra.mxu0 0.0
        %2178 = vmatprep.subr.mxu0 0.0
        %2179 = vmatpush1.msra.mxu0 0.0
        %2180 = vmatprep.subr.mxu0 0.0
        %2181 = vmatpush1.msra.mxu0 0.0
        %2182 = vmatprep.subr.mxu0 0.0
        %2183 = vmatpush1.msra.mxu0 0.0
        %2184 = vmatprep.subr.mxu0 0.0
        %2185 = vmatpush1.msra.mxu0 0.0
        %2186 = vmatprep.subr.mxu0 0.0
        %2187 = vmatpush1.msra.mxu0 0.0
        %2188 = vmatprep.subr.mxu0 0.0
        %2189 = vmatpush1.msra.mxu0 0.0
        %2190 = vmatprep.subr.mxu0 0.0
        %2191 = vmatpush1.msra.mxu0 0.0
        %2192 = vmatprep.subr.mxu0 0.0
        %2193 = vmatpush1.msra.mxu0 0.0
        %2194 = vmatprep.subr.mxu0 0.0
        %2195 = vmatpush1.msra.mxu0 0.0
        %2196 = vmatprep.subr.mxu0 0.0
        %2197 = vmatpush1.msra.mxu0 0.0
        %2198 = vmatprep.subr.mxu0 0.0
        %2199 = vmatpush1.msra.mxu0 0.0
        %2200 = vmatprep.subr.mxu0 0.0
        %2201 = vmatpush1.msra.mxu0 0.0
        %2202 = vmatprep.subr.mxu0 0.0
        %2203 = vmatpush1.msra.mxu0 0.0
        %2204 = vmatprep.subr.mxu0 0.0
        %2205 = vmatpush1.msra.mxu0 0.0
        %2206 = vmatprep.subr.mxu0 0.0
        %2207 = vmatpush1.msra.mxu0 0.0
        %2208 = vmatprep.subr.mxu0 0.0
        %2209 = vmatpush1.msra.mxu0 0.0
        %2210 = vmatprep.subr.mxu0 0.0
        %2211 = vmatpush1.msra.mxu0 0.0
        %2212 = vmatprep.subr.mxu0 0.0
        %2213 = vmatpush1.msra.mxu0 0.0
        %2214 = vmatprep.subr.mxu0 0.0
        %2215 = vmatpush1.msra.mxu0 0.0
        %2216 = vmatprep.mubr.f32.mxu0 0.0
        %2217 = vmatmul.mubr.f32.gmra.mrb[0].mxu0 %v2150
        %v2218 = vpop.f32.mrb[0].mxu0
        %v2219 = vadd.f32 0.0, %v2218
        %v2220 = vpop.f32.mrb[0].mxu0
        %2221 = vdwg.mxu0
        %v2223 = vsel %vm1713, %v2074, 0
        %2225 = vmatprep.subr.mxu0 0.0
        %2226 = vmatpush1.msra.mxu0 %v1711
        %2227 = vmatprep.subr.mxu0 0.0
        %2228 = vmatpush1.msra.mxu0 0.0
        %2229 = vmatprep.subr.mxu0 0.0
        %2230 = vmatpush1.msra.mxu0 0.0
        %2231 = vmatprep.subr.mxu0 0.0
        %2232 = vmatpush1.msra.mxu0 0.0
        %2233 = vmatprep.subr.mxu0 0.0
        %2234 = vmatpush1.msra.mxu0 0.0
        %2235 = vmatprep.subr.mxu0 0.0
        %2236 = vmatpush1.msra.mxu0 0.0
        %2237 = vmatprep.subr.mxu0 0.0
        %2238 = vmatpush1.msra.mxu0 0.0
        %2239 = vmatprep.subr.mxu0 0.0
        %2240 = vmatpush1.msra.mxu0 0.0
        %2241 = vmatprep.subr.mxu0 0.0
        %2242 = vmatpush1.msra.mxu0 0.0
        %2243 = vmatprep.subr.mxu0 0.0
        %2244 = vmatpush1.msra.mxu0 0.0
        %2245 = vmatprep.subr.mxu0 0.0
        %2246 = vmatpush1.msra.mxu0 0.0
        %2247 = vmatprep.subr.mxu0 0.0
        %2248 = vmatpush1.msra.mxu0 0.0
        %2249 = vmatprep.subr.mxu0 0.0
        %2250 = vmatpush1.msra.mxu0 0.0
        %2251 = vmatprep.subr.mxu0 0.0
        %2252 = vmatpush1.msra.mxu0 0.0
        %2253 = vmatprep.subr.mxu0 0.0
        %2254 = vmatpush1.msra.mxu0 0.0
        %2255 = vmatprep.subr.mxu0 0.0
        %2256 = vmatpush1.msra.mxu0 0.0
        %2257 = vmatprep.subr.mxu0 0.0
        %2258 = vmatpush1.msra.mxu0 0.0
        %2259 = vmatprep.subr.mxu0 0.0
        %2260 = vmatpush1.msra.mxu0 0.0
        %2261 = vmatprep.subr.mxu0 0.0
        %2262 = vmatpush1.msra.mxu0 0.0
        %2263 = vmatprep.subr.mxu0 0.0
        %2264 = vmatpush1.msra.mxu0 0.0
        %2265 = vmatprep.subr.mxu0 0.0
        %2266 = vmatpush1.msra.mxu0 0.0
        %2267 = vmatprep.subr.mxu0 0.0
        %2268 = vmatpush1.msra.mxu0 0.0
        %2269 = vmatprep.subr.mxu0 0.0
        %2270 = vmatpush1.msra.mxu0 0.0
        %2271 = vmatprep.subr.mxu0 0.0
        %2272 = vmatpush1.msra.mxu0 0.0
        %2273 = vmatprep.subr.mxu0 0.0
        %2274 = vmatpush1.msra.mxu0 0.0
        %2275 = vmatprep.subr.mxu0 0.0
        %2276 = vmatpush1.msra.mxu0 0.0
        %2277 = vmatprep.subr.mxu0 0.0
        %2278 = vmatpush1.msra.mxu0 0.0
        %2279 = vmatprep.subr.mxu0 0.0
        %2280 = vmatpush1.msra.mxu0 0.0
        %2281 = vmatprep.subr.mxu0 0.0
        %2282 = vmatpush1.msra.mxu0 0.0
        %2283 = vmatprep.subr.mxu0 0.0
        %2284 = vmatpush1.msra.mxu0 0.0
        %2285 = vmatprep.subr.mxu0 0.0
        %2286 = vmatpush1.msra.mxu0 0.0
        %2287 = vmatprep.subr.mxu0 0.0
        %2288 = vmatpush1.msra.mxu0 0.0
        %2289 = vmatprep.mubr.f32.mxu0 0.0
        %2290 = vmatmul.mubr.f32.gmra.mrb[0].mxu0 %v2223
        %v2291 = vpop.f32.mrb[0].mxu0
        %v2292 = vadd.f32 0.0, %v2291
        %v2293 = vpop.f32.mrb[0].mxu0
        %2294 = vdwg.mxu0
        %v2296 = vsel %vm1713, %v2075, 0
        %2298 = vmatprep.subr.mxu0 0.0
        %2299 = vmatpush1.msra.mxu0 %v1712
        %2300 = vmatprep.subr.mxu0 0.0
        %2301 = vmatpush1.msra.mxu0 0.0
        %2302 = vmatprep.subr.mxu0 0.0
        %2303 = vmatpush1.msra.mxu0 0.0
        %2304 = vmatprep.subr.mxu0 0.0
        %2305 = vmatpush1.msra.mxu0 0.0
        %2306 = vmatprep.subr.mxu0 0.0
        %2307 = vmatpush1.msra.mxu0 0.0
        %2308 = vmatprep.subr.mxu0 0.0
        %2309 = vmatpush1.msra.mxu0 0.0
        %2310 = vmatprep.subr.mxu0 0.0
        %2311 = vmatpush1.msra.mxu0 0.0
        %2312 = vmatprep.subr.mxu0 0.0
        %2313 = vmatpush1.msra.mxu0 0.0
        %2314 = vmatprep.subr.mxu0 0.0
        %2315 = vmatpush1.msra.mxu0 0.0
        %2316 = vmatprep.subr.mxu0 0.0
        %2317 = vmatpush1.msra.mxu0 0.0
        %2318 = vmatprep.subr.mxu0 0.0
        %2319 = vmatpush1.msra.mxu0 0.0
        %2320 = vmatprep.subr.mxu0 0.0
        %2321 = vmatpush1.msra.mxu0 0.0
        %2322 = vmatprep.subr.mxu0 0.0
        %2323 = vmatpush1.msra.mxu0 0.0
        %2324 = vmatprep.subr.mxu0 0.0
        %2325 = vmatpush1.msra.mxu0 0.0
        %2326 = vmatprep.subr.mxu0 0.0
        %2327 = vmatpush1.msra.mxu0 0.0
        %2328 = vmatprep.subr.mxu0 0.0
        %2329 = vmatpush1.msra.mxu0 0.0
        %2330 = vmatprep.subr.mxu0 0.0
        %2331 = vmatpush1.msra.mxu0 0.0
        %2332 = vmatprep.subr.mxu0 0.0
        %2333 = vmatpush1.msra.mxu0 0.0
        %2334 = vmatprep.subr.mxu0 0.0
        %2335 = vmatpush1.msra.mxu0 0.0
        %2336 = vmatprep.subr.mxu0 0.0
        %2337 = vmatpush1.msra.mxu0 0.0
        %2338 = vmatprep.subr.mxu0 0.0
        %2339 = vmatpush1.msra.mxu0 0.0
        %2340 = vmatprep.subr.mxu0 0.0
        %2341 = vmatpush1.msra.mxu0 0.0
        %2342 = vmatprep.subr.mxu0 0.0
        %2343 = vmatpush1.msra.mxu0 0.0
        %2344 = vmatprep.subr.mxu0 0.0
        %2345 = vmatpush1.msra.mxu0 0.0
        %2346 = vmatprep.subr.mxu0 0.0
        %2347 = vmatpush1.msra.mxu0 0.0
        %2348 = vmatprep.subr.mxu0 0.0
        %2349 = vmatpush1.msra.mxu0 0.0
        %2350 = vmatprep.subr.mxu0 0.0
        %2351 = vmatpush1.msra.mxu0 0.0
        %2352 = vmatprep.subr.mxu0 0.0
        %2353 = vmatpush1.msra.mxu0 0.0
        %2354 = vmatprep.subr.mxu0 0.0
        %2355 = vmatpush1.msra.mxu0 0.0
        %2356 = vmatprep.subr.mxu0 0.0
        %2357 = vmatpush1.msra.mxu0 0.0
        %2358 = vmatprep.subr.mxu0 0.0
        %2359 = vmatpush1.msra.mxu0 0.0
        %2360 = vmatprep.subr.mxu0 0.0
        %2361 = vmatpush1.msra.mxu0 0.0
        %2362 = vmatprep.mubr.f32.mxu0 0.0
        %2363 = vmatmul.mubr.f32.gmra.mrb[0].mxu0 %v2296
        %v2364 = vpop.f32.mrb[0].mxu0
        %v2365 = vadd.f32 0.0, %v2364
        %v2366 = vpop.f32.mrb[0].mxu0
        %2367 = vdwg.mxu0
        %v2368 = vcombine.low %v2146, %v2292
        %v2369 = vcombine.high %v2146, %v2292
        %v2371 = vunpack.c.l.s4 1983009808
        %v2372 = vunpack.c.0.s8 %v2371
        %v2373 = vlaneseq
        %v2374 = vshrl.u32 %v2373, 7
        %v2375 = vsub.s32 %v2372, %v2374
        %v2376 = vrot.slane %v2368, %v2375
        %v2378 = vunpack.c.l.s4 1983009808
        %v2379 = vunpack.c.0.s8 %v2378
        %v2380 = vlaneseq
        %v2381 = vshrl.u32 %v2380, 7
        %v2382 = vsub.s32 %v2379, %v2381
        %v2383 = vrot.slane %v2369, %v2382
        %v2384 = vcombine.low %v2219, %v2365
        %v2385 = vcombine.high %v2219, %v2365
        %v2387 = vunpack.c.l.s4 1983009808
        %v2388 = vunpack.c.0.s8 %v2387
        %v2389 = vlaneseq
        %v2390 = vshrl.u32 %v2389, 7
        %v2391 = vsub.s32 %v2388, %v2390
        %v2392 = vrot.slane %v2384, %v2391
        %v2394 = vunpack.c.l.s4 1983009808
        %v2395 = vunpack.c.0.s8 %v2394
        %v2396 = vlaneseq
        %v2397 = vshrl.u32 %v2396, 7
        %v2398 = vsub.s32 %v2395, %v2397
        %v2399 = vrot.slane %v2385, %v2398
        %v2400 = vcombine.low %v2376, %v2392
        %v2401 = vcombine.high %v2376, %v2392
        %v2403 = vunpack.c.l.s4 1934713408
        %v2404 = vunpack.c.0.s8 %v2403
        %v2405 = vlaneseq
        %v2406 = vshrl.u32 %v2405, 7
        %v2407 = vsub.s32 %v2404, %v2406
        %v2408 = vrot.slane %v2400, %v2407
        %v2410 = vunpack.c.l.s4 1934713408
        %v2411 = vunpack.c.0.s8 %v2410
        %v2412 = vlaneseq
        %v2413 = vshrl.u32 %v2412, 7
        %v2414 = vsub.s32 %v2411, %v2413
        %v2415 = vrot.slane %v2401, %v2414
        %v2416 = vcombine.low %v2383, %v2399
        %v2417 = vcombine.high %v2383, %v2399
        %v2419 = vunpack.c.l.s4 1934713408
        %v2420 = vunpack.c.0.s8 %v2419
        %v2421 = vlaneseq
        %v2422 = vshrl.u32 %v2421, 7
        %v2423 = vsub.s32 %v2420, %v2422
        %v2424 = vrot.slane %v2416, %v2423
        %v2426 = vunpack.c.l.s4 1934713408
        %v2427 = vunpack.c.0.s8 %v2426
        %v2428 = vlaneseq
        %v2429 = vshrl.u32 %v2428, 7
        %v2430 = vsub.s32 %v2427, %v2429
        %v2431 = vrot.slane %v2417, %v2430
        %v2432 = vcombine.high %v2408, 0.0
        %v2433 = vcombine.high %v2415, 0.0
        %v2434 = vcombine.high %v2424, 0.0
        %v2435 = vcombine.high %v2431, 0.0
        %v2436 = vcombine.low %v2408, %v2415
        %v2438 = vunpack.c.l.s4 1983009808
        %v2439 = vunpack.c.0.s8 %v2438
        %v2440 = vlaneseq
        %v2441 = vshrl.u32 %v2440, 7
        %v2442 = vsub.s32 %v2439, %v2441
        %v2443 = vrot.slane %v2436, %v2442
        %v2444 = vcombine.low %v2432, %v2433
        %v2446 = vunpack.c.l.s4 1983009808
        %v2447 = vunpack.c.0.s8 %v2446
        %v2448 = vlaneseq
        %v2449 = vshrl.u32 %v2448, 7
        %v2450 = vsub.s32 %v2447, %v2449
        %v2451 = vrot.slane %v2444, %v2450
        %v2452 = vcombine.low %v2424, %v2431
        %v2454 = vunpack.c.l.s4 1983009808
        %v2455 = vunpack.c.0.s8 %v2454
        %v2456 = vlaneseq
        %v2457 = vshrl.u32 %v2456, 7
        %v2458 = vsub.s32 %v2455, %v2457
        %v2459 = vrot.slane %v2452, %v2458
        %v2460 = vcombine.low %v2434, %v2435
        %v2462 = vunpack.c.l.s4 1983009808
        %v2463 = vunpack.c.0.s8 %v2462
        %v2464 = vlaneseq
        %v2465 = vshrl.u32 %v2464, 7
        %v2466 = vsub.s32 %v2463, %v2465
        %v2467 = vrot.slane %v2460, %v2466
        %v2468 = vcombine.low %v2443, %v2451
        %v2469 = vcombine.high %v2443, %v2451
        %v2471 = vunpack.c.l.s4 1934713408
        %v2472 = vunpack.c.0.s8 %v2471
        %v2473 = vlaneseq
        %v2474 = vshrl.u32 %v2473, 7
        %v2475 = vsub.s32 %v2472, %v2474
        %v2476 = vrot.slane %v2468, %v2475
        %v2478 = vunpack.c.l.s4 1934713408
        %v2479 = vunpack.c.0.s8 %v2478
        %v2480 = vlaneseq
        %v2481 = vshrl.u32 %v2480, 7
        %v2482 = vsub.s32 %v2479, %v2481
        %v2483 = vrot.slane %v2469, %v2482
        %v2484 = vcombine.low %v2459, %v2467
        %v2485 = vcombine.high %v2459, %v2467
        %v2487 = vunpack.c.l.s4 1934713408
        %v2488 = vunpack.c.0.s8 %v2487
        %v2489 = vlaneseq
        %v2490 = vshrl.u32 %v2489, 7
        %v2491 = vsub.s32 %v2488, %v2490
        %v2492 = vrot.slane %v2484, %v2491
        %v2494 = vunpack.c.l.s4 1934713408
        %v2495 = vunpack.c.0.s8 %v2494
        %v2496 = vlaneseq
        %v2497 = vshrl.u32 %v2496, 7
        %v2498 = vsub.s32 %v2495, %v2497
        %v2499 = vrot.slane %v2485, %v2498
        %v2500 = vcombine.low %v2476, %v2492
        %v2501 = vcombine.high %v2476, %v2492
        %v2502 = vcombine.low %v2483, %v2499
        %v2503 = vcombine.high %v2483, %v2499
        %2505 = vrot.lane.b32.xlu0 %v2501, 8
        %v2506 = vpop.permute.xlu0 %2505
        %2509 = vrot.lane.b32.xlu0 %v2502, 16
        %v2510 = vpop.permute.xlu0 %2509
        %2513 = vrot.lane.b32.xlu0 %v2503, 24
        %v2514 = vpop.permute.xlu0 %2513
        %v2516 = vsel %vm1713, %v2500, %v2506
        %vm2517 = vcmask 130048
        %v2518 = vsel %vm2517, %v2516, %v2510
        %vm2519 = vcmask 195584
        %v2520 = vsel %vm2519, %v2518, %v2514
        %v2521 = vld [vmem:[%s1034] sm:$0xff]
        %v2522 = vld [vmem:[%s1034 + $0x8] sm:$0xff]
        %v2523 = vld [vmem:[%s1034 + $0x10] sm:$0xff]
        %v2524 = vld [vmem:[%s1034 + $0x18] sm:$0xff]
        %v2525 = vld [vmem:[%s1041] sm:$0x1]
        %v2527 = vlaneseq
        %v2528 = vshrl.u32 %v2527, 7
        %v2529 = vsub.s32 0, %v2528
        %v2530 = vrot.slane %v2525, %v2529
        %v2533 = vsel %vm1115, %v2520, 0
        %2535 = vmatprep.subr.mxu0 0.0
        %2536 = vmatpush1.msra.mxu0 %v2521
        %2537 = vmatprep.subr.mxu0 0.0
        %2538 = vmatpush1.msra.mxu0 %v2522
        %2539 = vmatprep.subr.mxu0 0.0
        %2540 = vmatpush1.msra.mxu0 %v2523
        %2541 = vmatprep.subr.mxu0 0.0
        %2542 = vmatpush1.msra.mxu0 %v2524
        %2543 = vmatprep.subr.mxu0 0.0
        %2544 = vmatpush1.msra.mxu0 0.0
        %2545 = vmatprep.subr.mxu0 0.0
        %2546 = vmatpush1.msra.mxu0 0.0
        %2547 = vmatprep.subr.mxu0 0.0
        %2548 = vmatpush1.msra.mxu0 0.0
        %2549 = vmatprep.subr.mxu0 0.0
        %2550 = vmatpush1.msra.mxu0 0.0
        %2551 = vmatprep.subr.mxu0 0.0
        %2552 = vmatpush1.msra.mxu0 0.0
        %2553 = vmatprep.subr.mxu0 0.0
        %2554 = vmatpush1.msra.mxu0 0.0
        %2555 = vmatprep.subr.mxu0 0.0
        %2556 = vmatpush1.msra.mxu0 0.0
        %2557 = vmatprep.subr.mxu0 0.0
        %2558 = vmatpush1.msra.mxu0 0.0
        %2559 = vmatprep.subr.mxu0 0.0
        %2560 = vmatpush1.msra.mxu0 0.0
        %2561 = vmatprep.subr.mxu0 0.0
        %2562 = vmatpush1.msra.mxu0 0.0
        %2563 = vmatprep.subr.mxu0 0.0
        %2564 = vmatpush1.msra.mxu0 0.0
        %2565 = vmatprep.subr.mxu0 0.0
        %2566 = vmatpush1.msra.mxu0 0.0
        %2567 = vmatprep.subr.mxu0 0.0
        %2568 = vmatpush1.msra.mxu0 0.0
        %2569 = vmatprep.subr.mxu0 0.0
        %2570 = vmatpush1.msra.mxu0 0.0
        %2571 = vmatprep.subr.mxu0 0.0
        %2572 = vmatpush1.msra.mxu0 0.0
        %2573 = vmatprep.subr.mxu0 0.0
        %2574 = vmatpush1.msra.mxu0 0.0
        %2575 = vmatprep.subr.mxu0 0.0
        %2576 = vmatpush1.msra.mxu0 0.0
        %2577 = vmatprep.subr.mxu0 0.0
        %2578 = vmatpush1.msra.mxu0 0.0
        %2579 = vmatprep.subr.mxu0 0.0
        %2580 = vmatpush1.msra.mxu0 0.0
        %2581 = vmatprep.subr.mxu0 0.0
        %2582 = vmatpush1.msra.mxu0 0.0
        %2583 = vmatprep.subr.mxu0 0.0
        %2584 = vmatpush1.msra.mxu0 0.0
        %2585 = vmatprep.subr.mxu0 0.0
        %2586 = vmatpush1.msra.mxu0 0.0
        %2587 = vmatprep.subr.mxu0 0.0
        %2588 = vmatpush1.msra.mxu0 0.0
        %2589 = vmatprep.subr.mxu0 0.0
        %2590 = vmatpush1.msra.mxu0 0.0
        %2591 = vmatprep.subr.mxu0 0.0
        %2592 = vmatpush1.msra.mxu0 0.0
        %2593 = vmatprep.subr.mxu0 0.0
        %2594 = vmatpush1.msra.mxu0 0.0
        %2595 = vmatprep.subr.mxu0 0.0
        %2596 = vmatpush1.msra.mxu0 0.0
        %2597 = vmatprep.subr.mxu0 0.0
        %2598 = vmatpush1.msra.mxu0 0.0
        %2599 = vmatprep.mubr.f32.mxu0 0.0
        %2600 = vmatmul.mubr.f32.gmra.mrb[0].mxu0 %v2533
        %v2601 = vpop.f32.mrb[0].mxu0
        %v2602 = vadd.f32 %v2530, %v2601
        %v2603 = vpop.f32.mrb[0].mxu0
        %2604 = vdwg.mxu0
        %v2605 = vadd.f32 %v1100, %v2602
        %v2606 = vld [vmem:[%s1071] sm:$0x1]
        %v2607 = vld [vmem:[%s1078] sm:$0x1]
        %v2608 = vsel %vm1115, %v2605, 0.0
        %2609 = vadd.xlane.f32.xlu0 %v2608
        %v2610 = vpop.xlane.xlu0 %2609
        %v2611 = vrcp.pop 32.0
        %v2612 = vmul.f32 %v2610, %v2611
        %v2613 = vsub.f32 %v2605, %v2612
        %v2614 = vmul.f32 %v2613, %v2613
        %v2615 = vsel %vm1115, %v2614, 0.0
        %2616 = vadd.xlane.f32.xlu0 %v2615
        %v2617 = vpop.xlane.xlu0 %2616
        %v2618 = vmul.f32 %v2617, %v2611
        %v2619 = vadd.f32 %v2618, 1e-05
        %v2620 = vrsqrt.pop %v2619
        %v2621 = vmul.f32 %v2613, %v2620
        %v2623 = vlaneseq
        %v2624 = vshrl.u32 %v2623, 7
        %v2625 = vsub.s32 0, %v2624
        %v2626 = vrot.slane %v2606, %v2625
        %v2628 = vmul.f32 %v2621, %v2626
        %v2630 = vlaneseq
        %v2631 = vshrl.u32 %v2630, 7
        %v2632 = vsub.s32 0, %v2631
        %v2633 = vrot.slane %v2607, %v2632
        %v2635 = vadd.f32 %v2628, %v2633
        %v2636 = vld [vmem:[%s830] sm:$0xff]
        %v2637 = vld [vmem:[%s830 + $0x8] sm:$0xff]
        %v2638 = vld [vmem:[%s830 + $0x10] sm:$0xff]
        %v2639 = vld [vmem:[%s830 + $0x18] sm:$0xff]
        %v2640 = vld [vmem:[%s1048] sm:$0x1]
        %v2642 = vlaneseq
        %v2643 = vshrl.u32 %v2642, 7
        %v2644 = vsub.s32 0, %v2643
        %v2645 = vrot.slane %v2640, %v2644
        %v2648 = vsel %vm1115, %v2635, 0
        %2650 = vmatprep.subr.mxu0 0.0
        %2651 = vmatpush1.msra.mxu0 %v2636
        %2652 = vmatprep.subr.mxu0 0.0
        %2653 = vmatpush1.msra.mxu0 %v2637
        %2654 = vmatprep.subr.mxu0 0.0
        %2655 = vmatpush1.msra.mxu0 %v2638
        %2656 = vmatprep.subr.mxu0 0.0
        %2657 = vmatpush1.msra.mxu0 %v2639
        %2658 = vmatprep.subr.mxu0 0.0
        %2659 = vmatpush1.msra.mxu0 0.0
        %2660 = vmatprep.subr.mxu0 0.0
        %2661 = vmatpush1.msra.mxu0 0.0
        %2662 = vmatprep.subr.mxu0 0.0
        %2663 = vmatpush1.msra.mxu0 0.0
        %2664 = vmatprep.subr.mxu0 0.0
        %2665 = vmatpush1.msra.mxu0 0.0
        %2666 = vmatprep.subr.mxu0 0.0
        %2667 = vmatpush1.msra.mxu0 0.0
        %2668 = vmatprep.subr.mxu0 0.0
        %2669 = vmatpush1.msra.mxu0 0.0
        %2670 = vmatprep.subr.mxu0 0.0
        %2671 = vmatpush1.msra.mxu0 0.0
        %2672 = vmatprep.subr.mxu0 0.0
        %2673 = vmatpush1.msra.mxu0 0.0
        %2674 = vmatprep.subr.mxu0 0.0
        %2675 = vmatpush1.msra.mxu0 0.0
        %2676 = vmatprep.subr.mxu0 0.0
        %2677 = vmatpush1.msra.mxu0 0.0
        %2678 = vmatprep.subr.mxu0 0.0
        %2679 = vmatpush1.msra.mxu0 0.0
        %2680 = vmatprep.subr.mxu0 0.0
        %2681 = vmatpush1.msra.mxu0 0.0
        %2682 = vmatprep.subr.mxu0 0.0
        %2683 = vmatpush1.msra.mxu0 0.0
        %2684 = vmatprep.subr.mxu0 0.0
        %2685 = vmatpush1.msra.mxu0 0.0
        %2686 = vmatprep.subr.mxu0 0.0
        %2687 = vmatpush1.msra.mxu0 0.0
        %2688 = vmatprep.subr.mxu0 0.0
        %2689 = vmatpush1.msra.mxu0 0.0
        %2690 = vmatprep.subr.mxu0 0.0
        %2691 = vmatpush1.msra.mxu0 0.0
        %2692 = vmatprep.subr.mxu0 0.0
        %2693 = vmatpush1.msra.mxu0 0.0
        %2694 = vmatprep.subr.mxu0 0.0
        %2695 = vmatpush1.msra.mxu0 0.0
        %2696 = vmatprep.subr.mxu0 0.0
        %2697 = vmatpush1.msra.mxu0 0.0
        %2698 = vmatprep.subr.mxu0 0.0
        %2699 = vmatpush1.msra.mxu0 0.0
        %2700 = vmatprep.subr.mxu0 0.0
        %2701 = vmatpush1.msra.mxu0 0.0
        %2702 = vmatprep.subr.mxu0 0.0
        %2703 = vmatpush1.msra.mxu0 0.0
        %2704 = vmatprep.subr.mxu0 0.0
        %2705 = vmatpush1.msra.mxu0 0.0
        %2706 = vmatprep.subr.mxu0 0.0
        %2707 = vmatpush1.msra.mxu0 0.0
        %2708 = vmatprep.subr.mxu0 0.0
        %2709 = vmatpush1.msra.mxu0 0.0
        %2710 = vmatprep.subr.mxu0 0.0
        %2711 = vmatpush1.msra.mxu0 0.0
        %2712 = vmatprep.subr.mxu0 0.0
        %2713 = vmatpush1.msra.mxu0 0.0
        %2714 = vmatprep.mubr.f32.mxu0 0.0
        %2715 = vmatmul.mubr.f32.gmra.mrb[0].mxu0 %v2648
        %v2716 = vpop.f32.mrb[0].mxu0
        %v2717 = vadd.f32 %v2645, %v2716
        %v2718 = vpop.f32.mrb[0].mxu0
        %2719 = vdwg.mxu0
        %v2720 = vmax.f32 %v2717, 0.0
        %v2721 = vld [vmem:[%s1057] sm:$0xff]
        %v2722 = vld [vmem:[%s1057 + $0x8] sm:$0xff]
        %v2723 = vld [vmem:[%s1057 + $0x10] sm:$0xff]
        %v2724 = vld [vmem:[%s1057 + $0x18] sm:$0xff]
        %v2725 = vld [vmem:[%s1057 + $0x20] sm:$0xff]
        %v2726 = vld [vmem:[%s1057 + $0x28] sm:$0xff]
        %v2727 = vld [vmem:[%s1057 + $0x30] sm:$0xff]
        %v2728 = vld [vmem:[%s1057 + $0x38] sm:$0xff]
        %v2729 = vld [vmem:[%s1064] sm:$0x1]
        %v2731 = vlaneseq
        %v2732 = vshrl.u32 %v2731, 7
        %v2733 = vsub.s32 0, %v2732
        %v2734 = vrot.slane %v2729, %v2733
        %vm2736 = vcmask 523264
        %v2738 = vsel %vm2736, %v2720, 0
        %2740 = vmatprep.subr.mxu0 0.0
        %2741 = vmatpush1.msra.mxu0 %v2721
        %2742 = vmatprep.subr.mxu0 0.0
        %2743 = vmatpush1.msra.mxu0 %v2722
        %2744 = vmatprep.subr.mxu0 0.0
        %2745 = vmatpush1.msra.mxu0 %v2723
        %2746 = vmatprep.subr.mxu0 0.0
        %2747 = vmatpush1.msra.mxu0 %v2724
        %2748 = vmatprep.subr.mxu0 0.0
        %2749 = vmatpush1.msra.mxu0 %v2725
        %2750 = vmatprep.subr.mxu0 0.0
        %2751 = vmatpush1.msra.mxu0 %v2726
        %2752 = vmatprep.subr.mxu0 0.0
        %2753 = vmatpush1.msra.mxu0 %v2727
        %2754 = vmatprep.subr.mxu0 0.0
        %2755 = vmatpush1.msra.mxu0 %v2728
        %2756 = vmatprep.subr.mxu0 0.0
        %2757 = vmatpush1.msra.mxu0 0.0
        %2758 = vmatprep.subr.mxu0 0.0
        %2759 = vmatpush1.msra.mxu0 0.0
        %2760 = vmatprep.subr.mxu0 0.0
        %2761 = vmatpush1.msra.mxu0 0.0
        %2762 = vmatprep.subr.mxu0 0.0
        %2763 = vmatpush1.msra.mxu0 0.0
        %2764 = vmatprep.subr.mxu0 0.0
        %2765 = vmatpush1.msra.mxu0 0.0
        %2766 = vmatprep.subr.mxu0 0.0
        %2767 = vmatpush1.msra.mxu0 0.0
        %2768 = vmatprep.subr.mxu0 0.0
        %2769 = vmatpush1.msra.mxu0 0.0
        %2770 = vmatprep.subr.mxu0 0.0
        %2771 = vmatpush1.msra.mxu0 0.0
        %2772 = vmatprep.subr.mxu0 0.0
        %2773 = vmatpush1.msra.mxu0 0.0
        %2774 = vmatprep.subr.mxu0 0.0
        %2775 = vmatpush1.msra.mxu0 0.0
        %2776 = vmatprep.subr.mxu0 0.0
        %2777 = vmatpush1.msra.mxu0 0.0
        %2778 = vmatprep.subr.mxu0 0.0
        %2779 = vmatpush1.msra.mxu0 0.0
        %2780 = vmatprep.subr.mxu0 0.0
        %2781 = vmatpush1.msra.mxu0 0.0
        %2782 = vmatprep.subr.mxu0 0.0
        %2783 = vmatpush1.msra.mxu0 0.0
        %2784 = vmatprep.subr.mxu0 0.0
        %2785 = vmatpush1.msra.mxu0 0.0
        %2786 = vmatprep.subr.mxu0 0.0
        %2787 = vmatpush1.msra.mxu0 0.0
        %2788 = vmatprep.subr.mxu0 0.0
        %2789 = vmatpush1.msra.mxu0 0.0
        %2790 = vmatprep.subr.mxu0 0.0
        %2791 = vmatpush1.msra.mxu0 0.0
        %2792 = vmatprep.subr.mxu0 0.0
        %2793 = vmatpush1.msra.mxu0 0.0
        %2794 = vmatprep.subr.mxu0 0.0
        %2795 = vmatpush1.msra.mxu0 0.0
        %2796 = vmatprep.subr.mxu0 0.0
        %2797 = vmatpush1.msra.mxu0 0.0
        %2798 = vmatprep.subr.mxu0 0.0
        %2799 = vmatpush1.msra.mxu0 0.0
        %2800 = vmatprep.subr.mxu0 0.0
        %2801 = vmatpush1.msra.mxu0 0.0
        %2802 = vmatprep.subr.mxu0 0.0
        %2803 = vmatpush1.msra.mxu0 0.0
        %2804 = vmatprep.mubr.f32.mxu0 0.0
        %2805 = vmatmul.mubr.f32.gmra.mrb[0].mxu0 %v2738
        %v2806 = vpop.f32.mrb[0].mxu0
        %v2807 = vadd.f32 %v2734, %v2806
        %v2808 = vpop.f32.mrb[0].mxu0
        %2809 = vdwg.mxu0
        %v2810 = vadd.f32 %v2635, %v2807
        %v2811 = vld [vmem:[%s1085] sm:$0x1]
        %v2812 = vld [vmem:[%s1092] sm:$0x1]
        %v2813 = vsel %vm1115, %v2810, 0.0
        %2814 = vadd.xlane.f32.xlu0 %v2813
        %v2815 = vpop.xlane.xlu0 %2814
        %v2816 = vmul.f32 %v2815, %v2611
        %v2817 = vsub.f32 %v2810, %v2816
        %v2818 = vmul.f32 %v2817, %v2817
        %v2819 = vsel %vm1115, %v2818, 0.0
        %2820 = vadd.xlane.f32.xlu0 %v2819
        %v2821 = vpop.xlane.xlu0 %2820
        %v2822 = vmul.f32 %v2821, %v2611
        %v2823 = vadd.f32 %v2822, 1e-05
        %v2824 = vrsqrt.pop %v2823
        %v2825 = vmul.f32 %v2817, %v2824
        %v2827 = vlaneseq
        %v2828 = vshrl.u32 %v2827, 7
        %v2829 = vsub.s32 0, %v2828
        %v2830 = vrot.slane %v2811, %v2829
        %v2832 = vmul.f32 %v2825, %v2830
        %v2834 = vlaneseq
        %v2835 = vshrl.u32 %v2834, 7
        %v2836 = vsub.s32 0, %v2835
        %v2837 = vrot.slane %v2812, %v2836
        %v2839 = vadd.f32 %v2832, %v2837
        %2840 = vst.msk [vmem:[%s993] sm:$0xff] %vm1115, %v2839
        %s2841 = sand.u32 %s543, 1
        %s2842 = scalar_lea.sflag [#allocation4], %s2841
        %s2843 = sand.u32 %s543, 1
        %s2844 = smul.addr %s2843, 8
        %s2845 = scalar_lea.vmem [#allocation10], %s2844
        // Predicated region
        $region109: #{tpu_custom_call.1} parent=87 // pred_check
          %p2846 = pneg %p553
        $region110: #{tpu_custom_call.1} parent=87 // pred_check_branch
          %2848 = sbr.rel (%p2846) target = $region112
        $region111: #{tpu_custom_call.1} parent=87 // pred_region
          %s2850 = ssub.s32 128, 128
          %2851 = vsyncadd %s2842, %s2850
          %s2852 = smul.addr %s45, 2
          %s2853 = sadd.s32 %s46, %s2852
          %s2854 = smul.addr %s2853, 128
          %s2855 = scalar_lea.hbm %s17, %s2854
          %s2857 = sshll.u32 %s2845, 4
          %s2858 = int_to_ptr.vmem [resolvable:$true] %s2857
          %2860 = dma.vmem_to_hbm [thread:$0]  %s2858, 128, %s2855, %s2842
        $region112: #{tpu_custom_call.1} parent=87 // pred_fallthru
          _
      $region88: #{tpu_custom_call.1} parent=5 // pred_fallthru
        _
      %p2861 = scmp.le.s32.totalorder 2, %s35
      // Predicated region
      $region113: #{tpu_custom_call.1} parent=5 // pred_check
        %p2862 = pneg %p2861
      $region114: #{tpu_custom_call.1} parent=5 // pred_check_branch
        %2864 = sbr.rel (%p2862) target = $region116
      $region115: #{tpu_custom_call.1} parent=5 // pred_region
        %s2865 = ssub.s32 %s35, 2
        // Predicated region
        $region117: #{tpu_custom_call.1} parent=115 // pred_check
          %p2866 = pneg %p559
        $region118: #{tpu_custom_call.1} parent=115 // pred_check_branch
          %2868 = sbr.rel (%p2866) target = $region120
        $region119: #{tpu_custom_call.1} parent=115 // pred_region
          %s2869 = sand.u32 %s544, 1
          %s2870 = scalar_lea.sflag [#allocation4], %s2869
          %s2871 = sand.u32 %s544, 1
          %s2872 = smul.addr %s2871, 8
          %s2873 = scalar_lea.vmem [#allocation10], %s2872
          %2874 = dma.done %s2870, 128
        $region120: #{tpu_custom_call.1} parent=115 // pred_fallthru
          _
      $region116: #{tpu_custom_call.1} parent=5 // pred_fallthru
        _
    $region6: #{tpu_custom_call.1} parent=1 // loop_footer
      %s39 = sadd.s32 1, %s35
    $region7: #{tpu_custom_call.1} parent=1 // loop_footer_branch
      %34 = sbr.rel target = $region3
    $region8: #{tpu_custom_call.1} parent=1 // loop_exit
      _
    %2875 = vsyncpa [#allocation3], 1
    %s2876 = scalar_lea.sflag [#allocation3], 1
    %2877 = vsyncpa %s2876, 1
    %2878 = vsyncpa [#allocation6], 1
    %s2879 = scalar_lea.sflag [#allocation6], 1
    %2880 = vsyncpa %s2879, 1
    %2881 = vsyncpa [#allocation9], 1
    %s2882 = scalar_lea.sflag [#allocation9], 1
    %2883 = vsyncpa %s2882, 1
    %2884 = vsyncpa [#allocation4], 1
    %s2885 = scalar_lea.sflag [#allocation4], 1
    %2886 = vsyncpa %s2885, 1

</llo_original>
